<compile_context>
chip_gen: v7x
topology: tpu7x:2x2x1
jax: 0.10.0
libtpu: 0.0.40
codegen_flags: <defaults>
</compile_context>

<pallas_src>
import functools

import jax
import jax.numpy as jnp
from jax import lax
from jax.experimental import pallas as pl
from jax.experimental.pallas import tpu as pltpu


# ---------------------------------------------------------------------------
# small static helpers
# ---------------------------------------------------------------------------
def _round_up(x, m):
    return ((x + m - 1) // m) * m


def _pick_t_chunk(bs, h_dim, k_in, budget_bytes=20 * 2**20):
    """Largest time-chunk whose per-core VMEM footprint fits the budget."""
    gh = 4 * h_dim
    lane = 128
    # per-time-step bytes (per core):
    #   2 x input buffer (f32, lane-padded)  + 2 x output buffer (f32, lane-padded)
    #   + x_proj scratch (f32, 4H)           + hidden-chunk scratch (f32, H padded)
    per_step = bs * 4 * (2 * _round_up(k_in, lane)
                         + 2 * lane
                         + gh
                         + _round_up(h_dim, lane))
    for tc in (512, 256, 128, 64, 32, 16, 8):
        if tc * per_step <= budget_bytes:
            return tc
    return 8


# ---------------------------------------------------------------------------
# Fused kernel: per time-chunk
#   1) x_proj = t_diff * w_ih_t + relu(nan0(x_mod) @ W_embed_bd + b_e) @ w_ih_e + b
#      (whole chunk in one pass, written to VMEM scratch)
#   2) serial LSTM recurrence over the chunk (gate columns ordered i, f, o, g)
#      with (h, c) carried across chunks in VMEM scratch
#   3) fused output heads on the chunk's hidden states + mask, emit (tc, bs, 2)
# ---------------------------------------------------------------------------
def _fused_npp_kernel(xin_ref, we_ref, be_ref, wt_ref, wie_ref, bl_ref,
                      whh_ref, w1_ref, b1_ref, w2_ref, b2_ref,
                      o_ref, xp_scr, hall_scr, h_scr, c_scr, *, unroll):
    tc, bs, k_in = xin_ref.shape
    k_mod = we_ref.shape[0]
    h_dim = h_scr.shape[-1]
    gh = 4 * h_dim

    # reset carried (h, c) at the start of every batch-slice's time sweep
    @pl.when(pl.program_id(1) == 0)
    def _():
        h_scr[...] = jnp.zeros_like(h_scr)
        c_scr[...] = jnp.zeros_like(c_scr)

    # --- chunk preamble: fused embedding + hoisted LSTM input projection ----
    xin = xin_ref[...]                                        # (tc, bs, k_in)
    xin = jnp.where(jnp.isnan(xin), jnp.zeros_like(xin), xin)  # inputs[m][isnan]=0
    x2d = xin.reshape(tc * bs, k_in)
    xm = x2d[:, :k_mod]                                       # modality features
    td = x2d[:, k_mod:k_mod + 1]                              # t_diff column
    emb = jnp.maximum(
        jnp.dot(xm, we_ref[...], preferred_element_type=jnp.float32)
        + be_ref[...], 0.0)                                   # (R, n_mods*E)
    xp = (td * wt_ref[...]                                    # rank-1 VPU broadcast
          + jnp.dot(emb.astype(jnp.bfloat16), wie_ref[...],
                    preferred_element_type=jnp.float32)
          + bl_ref[...])                                      # (R, 4H)
    xp_scr[...] = xp.reshape(tc, bs, gh)

    # --- serial LSTM recurrence (gate order i, f, o, g) ----------------------
    def step(t, carry):
        h, c = carry
        gates = xp_scr[t] + jnp.dot(h.astype(jnp.bfloat16), whh_ref[...],
                                    preferred_element_type=jnp.float32)
        sig = jax.nn.sigmoid(gates[:, :3 * h_dim])            # one sigmoid: i|f|o
        g = jnp.tanh(gates[:, 3 * h_dim:])
        i = sig[:, :h_dim]
        f = sig[:, h_dim:2 * h_dim]
        o = sig[:, 2 * h_dim:3 * h_dim]
        c_new = f * c + i * g
        h_new = o * jnp.tanh(c_new)
        hall_scr[t] = h_new
        return h_new, c_new

    h, c = lax.fori_loop(0, tc, step, (h_scr[...], c_scr[...]), unroll=unroll)
    h_scr[...] = h
    c_scr[...] = c

    # --- fused output heads + mask over the whole chunk ----------------------
    h2d = hall_scr[...].reshape(tc * bs, h_dim)
    z = jnp.maximum(
        jnp.dot(h2d.astype(jnp.bfloat16), w1_ref[...],
                preferred_element_type=jnp.float32) + b1_ref[...], 0.0)
    y = (jnp.dot(z.astype(jnp.bfloat16), w2_ref[...],
                 preferred_element_type=jnp.float32) + b2_ref[...])  # (R, 2)
    xin2 = xin_ref[...]
    m = xin2[:, :, k_mod + 1:k_mod + 2]                       # mask column (tc, bs, 1)
    o_ref[...] = y.reshape(tc, bs, 2) * m


def fused_forward(xin_tm, prep, h_dim, *, batch_split, t_chunk, unroll,
                  vmem_limit):
    tp, bp, k_in = xin_tm.shape
    bs = bp // batch_split
    gh = 4 * h_dim
    k_mod = prep['embed_w'].shape[0]
    me = prep['embed_w'].shape[1]
    e2 = prep['head_w1'].shape[1]

    kernel = functools.partial(_fused_npp_kernel, unroll=unroll)
    return pl.pallas_call(
        kernel,
        out_shape=jax.ShapeDtypeStruct((tp, bp, 2), jnp.float32),
        grid_spec=pltpu.PrefetchScalarGridSpec(
            num_scalar_prefetch=0,
            grid=(batch_split, tp // t_chunk),
            in_specs=[
                pl.BlockSpec((t_chunk, bs, k_in), lambda b, s: (s, b, 0)),
                pl.BlockSpec((k_mod, me), lambda b, s: (0, 0)),
                pl.BlockSpec((1, me), lambda b, s: (0, 0)),
                pl.BlockSpec((1, gh), lambda b, s: (0, 0)),
                pl.BlockSpec((me, gh), lambda b, s: (0, 0)),
                pl.BlockSpec((1, gh), lambda b, s: (0, 0)),
                pl.BlockSpec((h_dim, gh), lambda b, s: (0, 0)),
                pl.BlockSpec((h_dim, e2), lambda b, s: (0, 0)),
                pl.BlockSpec((1, e2), lambda b, s: (0, 0)),
                pl.BlockSpec((e2, 2), lambda b, s: (0, 0)),
                pl.BlockSpec((1, 2), lambda b, s: (0, 0)),
            ],
            out_specs=pl.BlockSpec((t_chunk, bs, 2), lambda b, s: (s, b, 0)),
            scratch_shapes=[
                pltpu.VMEM((t_chunk, bs, gh), jnp.float32),     # x_proj chunk
                pltpu.VMEM((t_chunk, bs, h_dim), jnp.float32),  # hidden chunk
                pltpu.VMEM((bs, h_dim), jnp.float32),           # carried h
                pltpu.VMEM((bs, h_dim), jnp.float32),           # carried c
            ],
        ),
        compiler_params=pltpu.CompilerParams(
            dimension_semantics=("parallel", "arbitrary"),
            vmem_limit_bytes=vmem_limit),
    )(xin_tm, prep['embed_w'], prep['embed_b'], prep['w_ih_t'],
      prep['w_ih_e'], prep['b_lstm'], prep['w_hh'],
      prep['head_w1'], prep['head_b1'], prep['head_w2'], prep['head_b2'])


# ---------------------------------------------------------------------------
# Full forward: tiny glue in plain JAX, all heavy compute in the fused kernel.
# ---------------------------------------------------------------------------
def nonparam_npp_forward(inputs, mask, prep, modalities, h_dim):
    time = inputs['time'].astype(jnp.float32)                   # (B, T, 1)
    b_sz, t_sz, _ = time.shape
    time_clean = jnp.where(jnp.isnan(time), 0.0, time)

    # t_diff_in = time - pad_shift(time, 1)
    t_shift = jnp.concatenate(
        [jnp.zeros((b_sz, 1, 1), jnp.float32), time_clean[:, :-1, :]], axis=1)
    t_diff_in = time_clean - t_shift                            # (B, T, 1)

    x_mod = jnp.concatenate(
        [inputs[m].astype(jnp.float32) for m in modalities], axis=-1)  # (B,T,K)
    mask_f = mask.astype(jnp.float32)                           # (B, T, 1)
    xin = jnp.concatenate([x_mod, t_diff_in, mask_f], axis=-1)  # (B, T, K+2)
    k_in = xin.shape[-1]

    # pad batch to a multiple of 8 sublanes, pick an optional megacore split
    bp = _round_up(b_sz, 8)
    batch_split = 2 if (bp >= 16 and bp % 16 == 0) else 1
    bs = bp // batch_split

    # time-chunk from the VMEM budget (v7x: 64 MiB physical), then pad T
    tc = _pick_t_chunk(bs, h_dim, k_in)
    tc = min(tc, _round_up(t_sz, 8))
    tp = _round_up(t_sz, tc)
    unroll = min(8, tc)                                          # tc % 8 == 0

    xin = jnp.pad(xin, ((0, bp - b_sz), (0, tp - t_sz), (0, 0)))
    xin_tm = xin.transpose(1, 0, 2)                              # (Tp, Bp, K+2)

    out = fused_forward(xin_tm, prep, h_dim, batch_split=batch_split,
                        t_chunk=tc, unroll=unroll,
                        vmem_limit=32 * 1024 * 1024)             # (Tp, Bp, 2)

    out = out[:t_sz, :b_sz, :].transpose(1, 0, 2)                # tiny transpose
    t_diff = out[:, :, 0:1]
    value = out[:, :, 1:2]
    return t_diff, value


# ---------------------------------------------------------------------------
# Parameters: PyTorch-layout init + one-time prep into fused/permuted form.
# ---------------------------------------------------------------------------
def init_params(key, modalities, dims, embed_dim, h_dim):
    params = {'embed': {}}
    keys = jax.random.split(key, 4 + 2 * len(modalities))
    ki = iter(range(len(keys)))

    for m, d in zip(modalities, dims):
        params['embed'][m] = {
            'w': 0.1 * jax.random.normal(keys[next(ki)], (d, embed_dim), jnp.float32),
            'b': 0.1 * jax.random.normal(keys[next(ki)], (1, embed_dim), jnp.float32),
        }

    in_dim = 1 + len(modalities) * embed_dim
    k1, k2, k3, k4 = jax.random.split(keys[next(ki)], 4)
    params['lstm'] = {
        # PyTorch gate order along the 4H axis: (i, f, g, o)
        'w_ih': 0.1 * jax.random.normal(k1, (in_dim, 4 * h_dim), jnp.float32),
        'w_hh': 0.1 * jax.random.normal(k2, (h_dim, 4 * h_dim), jnp.float32),
        'b': (0.1 * jax.random.normal(k3, (1, 4 * h_dim), jnp.float32)
              + 0.1 * jax.random.normal(k4, (1, 4 * h_dim), jnp.float32)),
    }

    for name in ('time_out', 'val_out'):
        k1, k2, k3, k4 = jax.random.split(keys[next(ki)], 4)
        params[name] = {
            'w1': 0.1 * jax.random.normal(k1, (h_dim, embed_dim), jnp.float32),
            'b1': 0.1 * jax.random.normal(k2, (1, embed_dim), jnp.float32),
            'w2': 0.1 * jax.random.normal(k3, (embed_dim, 1), jnp.float32),
            'b2': 0.1 * jax.random.normal(k4, (1, 1), jnp.float32),
        }
    return params


def prepare_params(params, modalities, dims, embed_dim, h_dim):
    """One-time (outside the kernel) fusion / permutation / bf16 cast of weights."""
    n_mods = len(modalities)
    me = n_mods * embed_dim
    k_tot = sum(dims)

    # block-diagonal embedding weight + concatenated bias
    w_bd = jnp.zeros((k_tot, me), jnp.float32)
    b_cat = []
    row = 0
    for mi, m in enumerate(modalities):
        w = params['embed'][m]['w']
        d = w.shape[0]
        w_bd = w_bd.at[row:row + d, mi * embed_dim:(mi + 1) * embed_dim].set(w)
        b_cat.append(params['embed'][m]['b'])
        row += d
    b_cat = jnp.concatenate(b_cat, axis=1)                       # (1, n_mods*E)

    # permute gate columns (i, f, g, o) -> (i, f, o, g)
    def reorder(w):
        gi, gf, gg, go = jnp.split(w, 4, axis=-1)
        return jnp.concatenate([gi, gf, go, gg], axis=-1)

    w_ih = reorder(params['lstm']['w_ih'])                       # (1+ME, 4H)
    w_hh = reorder(params['lstm']['w_hh'])                       # (H, 4H)
    b_l = reorder(params['lstm']['b'])                           # (1, 4H)

    # fused heads: concat W1 along output, block-diagonal W2
    w1 = jnp.concatenate([params['time_out']['w1'],
                          params['val_out']['w1']], axis=1)      # (H, 2E)
    b1 = jnp.concatenate([params['time_out']['b1'],
                          params['val_out']['b1']], axis=1)      # (1, 2E)
    w2 = jnp.zeros((2 * embed_dim, 2), jnp.float32)
    w2 = w2.at[:embed_dim, 0:1].set(params['time_out']['w2'])
    w2 = w2.at[embed_dim:, 1:2].set(params['val_out']['w2'])
    b2 = jnp.concatenate([params['time_out']['b2'],
                          params['val_out']['b2']], axis=1)      # (1, 2)

    return {
        'embed_w': w_bd,                                # f32 (tiny contraction)
        'embed_b': b_cat,
        'w_ih_t': w_ih[0:1, :],                         # f32, rank-1 broadcast
        'w_ih_e': w_ih[1:, :].astype(jnp.bfloat16),
        'b_lstm': b_l,
        'w_hh': w_hh.astype(jnp.bfloat16),
        'head_w1': w1.astype(jnp.bfloat16),
        'head_b1': b1,
        'head_w2': w2.astype(jnp.bfloat16),
        'head_b2': b2,
    }


# ---------------------------------------------------------------------------
# Pure-JAX f32 reference (PyTorch semantics) for numerical validation.
# ---------------------------------------------------------------------------
def reference_forward(inputs, mask, params, modalities, dims, h_dim):
    dims_map = dict(zip(modalities, dims))
    time = inputs['time'].astype(jnp.float32)
    b_sz, t_sz, _ = time.shape
    clean = {m: jnp.where(jnp.isnan(inputs[m]), 0.0, inputs[m]).astype(jnp.float32)
             for m in modalities}

    embeds = []
    for m in modalities:
        x = clean[m].reshape(-1, dims_map[m])
        e = jax.nn.relu(x @ params['embed'][m]['w'] + params['embed'][m]['b'])
        embeds.append(e)
    embed = jnp.concatenate(embeds, axis=1)

    t_clean = clean['time']
    t_shift = jnp.concatenate(
        [jnp.zeros((b_sz, 1, 1), jnp.float32), t_clean[:, :-1, :]], axis=1)
    t_diff_in = t_clean - t_shift
    x = jnp.concatenate([t_diff_in.reshape(-1, 1), embed], axis=1)
    x = x.reshape(b_sz, t_sz, -1)

    w_ih = params['lstm']['w_ih']; w_hh = params['lstm']['w_hh']
    b = params['lstm']['b']

    def cell(carry, x_t):
        h, c = carry
        gates = x_t @ w_ih + h @ w_hh + b
        i_, f_, g_, o_ = jnp.split(gates, 4, axis=-1)
        i_ = jax.nn.sigmoid(i_); f_ = jax.nn.sigmoid(f_)
        g_ = jnp.tanh(g_); o_ = jax.nn.sigmoid(o_)
        c = f_ * c + i_ * g_
        h = o_ * jnp.tanh(c)
        return (h, c), h

    h0 = jnp.zeros((b_sz, h_dim), jnp.float32)
    c0 = jnp.zeros((b_sz, h_dim), jnp.float32)
    (_, _), hs = lax.scan(cell, (h0, c0), jnp.transpose(x, (1, 0, 2)))
    h = jnp.transpose(hs, (1, 0, 2)).reshape(-1, h_dim)

    def head(p, h_):
        z = jax.nn.relu(h_ @ p['w1'] + p['b1'])
        return z @ p['w2'] + p['b2']

    mask_f = mask.astype(jnp.float32)
    t_diff = head(params['time_out'], h).reshape(b_sz, t_sz, 1) * mask_f
    value = head(params['val_out'], h).reshape(b_sz, t_sz, 1) * mask_f
    return t_diff, value


if __name__ == "__main__":
    modalities = ['time', 'visual']
    dims = [1, 4]
    embed_dim = 32
    h_dim = 128
    B, T = 2, 8

    key = jax.random.PRNGKey(0)
    k_time, k_vis, k_par = jax.random.split(key, 3)

    # monotonically increasing event times, one modality of features (with a NaN)
    time = jnp.cumsum(
        jax.random.uniform(k_time, (B, T, 1), jnp.float32, 0.1, 1.0), axis=1)
    visual = jax.random.normal(k_vis, (B, T, dims[1]), jnp.float32)
    visual = visual.at[0, 3, 1].set(jnp.nan)           # exercise NaN -> 0 path
    inputs = {'time': time, 'visual': visual}

    # variable-length sequences -> mask zero beyond length (trailing padding)
    lengths = jnp.array([T, T - 2], dtype=jnp.int32)
    mask = (jnp.arange(T)[None, :, None] < lengths[:, None, None]).astype(jnp.float32)

    params = init_params(k_par, modalities, dims, embed_dim, h_dim)
    prep = prepare_params(params, modalities, dims, embed_dim, h_dim)

    t_diff, value = nonparam_npp_forward(inputs, mask, prep, modalities, h_dim)
    jax.block_until_ready((t_diff, value))

    assert t_diff.shape == (B, T, 1) and value.shape == (B, T, 1)
    assert bool(jnp.all(jnp.isfinite(t_diff))) and bool(jnp.all(jnp.isfinite(value)))
    # masked-out (padded) positions must be exactly zero, like the reference
    assert bool(jnp.all(jnp.where(mask == 0.0, t_diff, 0.0) == 0.0))
    assert bool(jnp.all(jnp.where(mask == 0.0, value, 0.0) == 0.0))

    # numerical check against the pure-JAX f32 reference (bf16 MXU tolerance)
    ref_t, ref_v = reference_forward(inputs, mask, params, modalities, dims, h_dim)
    assert float(jnp.max(jnp.abs(t_diff - ref_t))) < 5e-2
    assert float(jnp.max(jnp.abs(value - ref_v))) < 5e-2

    print("KERNEL_OK")
</pallas_src>

<mosaic_0001>
module attributes {stable_mosaic.version = 11 : i64} {
  func.func @_fused_npp_kernel(%arg0: i32, %arg1: i32, %arg2: memref<8x8x7xf32, #tpu.memory_space<vmem>>, %arg3: memref<5x64xf32, #tpu.memory_space<vmem>>, %arg4: memref<1x64xf32, #tpu.memory_space<vmem>>, %arg5: memref<1x512xf32, #tpu.memory_space<vmem>>, %arg6: memref<64x512xbf16, #tpu.memory_space<vmem>>, %arg7: memref<1x512xf32, #tpu.memory_space<vmem>>, %arg8: memref<128x512xbf16, #tpu.memory_space<vmem>>, %arg9: memref<128x64xbf16, #tpu.memory_space<vmem>>, %arg10: memref<1x64xf32, #tpu.memory_space<vmem>>, %arg11: memref<64x2xbf16, #tpu.memory_space<vmem>>, %arg12: memref<1x2xf32, #tpu.memory_space<vmem>>, %arg13: memref<8x8x2xf32, #tpu.memory_space<vmem>>, %arg14: memref<8x8x512xf32, #tpu.memory_space<vmem>>, %arg15: memref<8x8x128xf32, #tpu.memory_space<vmem>>, %arg16: memref<8x128xf32, #tpu.memory_space<vmem>>, %arg17: memref<8x128xf32, #tpu.memory_space<vmem>>) attributes {dimension_semantics = [#tpu.dimension_semantics<parallel>, #tpu.dimension_semantics<arbitrary>], iteration_bounds = array<i64: 1, 1>, scalar_prefetch = 0 : i64, scratch_operands = 4 : i64, tpu.core_type = #tpu.core_type<tc>, window_params = [{transform_indices = @transform_0, window_bounds = array<i64: 8, 8, 7>}, {pipeline_mode = #tpu.pipeline_mode<synchronous>, transform_indices = @transform_1, window_bounds = array<i64: 5, 64>}, {pipeline_mode = #tpu.pipeline_mode<synchronous>, transform_indices = @transform_2, window_bounds = array<i64: 1, 64>}, {pipeline_mode = #tpu.pipeline_mode<synchronous>, transform_indices = @transform_3, window_bounds = array<i64: 1, 512>}, {pipeline_mode = #tpu.pipeline_mode<synchronous>, transform_indices = @transform_4, window_bounds = array<i64: 64, 512>}, {pipeline_mode = #tpu.pipeline_mode<synchronous>, transform_indices = @transform_5, window_bounds = array<i64: 1, 512>}, {pipeline_mode = #tpu.pipeline_mode<synchronous>, transform_indices = @transform_6, window_bounds = array<i64: 128, 512>}, {pipeline_mode = #tpu.pipeline_mode<synchronous>, transform_indices = @transform_7, window_bounds = array<i64: 128, 64>}, {pipeline_mode = #tpu.pipeline_mode<synchronous>, transform_indices = @transform_8, window_bounds = array<i64: 1, 64>}, {pipeline_mode = #tpu.pipeline_mode<synchronous>, transform_indices = @transform_9, window_bounds = array<i64: 64, 2>}, {pipeline_mode = #tpu.pipeline_mode<synchronous>, transform_indices = @transform_10, window_bounds = array<i64: 1, 2>}, {transform_indices = @transform_11, window_bounds = array<i64: 8, 8, 2>}]} {
    %c0_i32 = arith.constant 0 : i32
    %0 = arith.cmpi eq, %arg1, %c0_i32 : i32
    %1 = arith.extui %0 : i1 to i32
    %c0_i32_0 = arith.constant 0 : i32
    %2 = arith.cmpi ne, %1, %c0_i32_0 : i32
    scf.if %2 {
      %cst_112 = arith.constant 0.000000e+00 : f32
      %272 = vector.broadcast %cst_112 : f32 to vector<8x128xf32>
      %c0_113 = arith.constant 0 : index
      %c0_114 = arith.constant 0 : index
      %273 = vector.load %arg16[%c0_113, %c0_114] : memref<8x128xf32, #tpu.memory_space<vmem>>, vector<8x128xf32>
      tpu.vector_store %arg16[%c0_113, %c0_114], %272 {strides = array<i32>} : memref<8x128xf32, #tpu.memory_space<vmem>>, vector<8x128xf32>,
      %cst_115 = arith.constant 0.000000e+00 : f32
      %274 = vector.broadcast %cst_115 : f32 to vector<8x128xf32>
      %c0_116 = arith.constant 0 : index
      %c0_117 = arith.constant 0 : index
      %275 = vector.load %arg17[%c0_116, %c0_117] : memref<8x128xf32, #tpu.memory_space<vmem>>, vector<8x128xf32>
      tpu.vector_store %arg17[%c0_116, %c0_117], %274 {strides = array<i32>} : memref<8x128xf32, #tpu.memory_space<vmem>>, vector<8x128xf32>,
    } else {
    }
    %c0 = arith.constant 0 : index
    %c0_1 = arith.constant 0 : index
    %c0_2 = arith.constant 0 : index
    %3 = vector.load %arg2[%c0, %c0_1, %c0_2] : memref<8x8x7xf32, #tpu.memory_space<vmem>>, vector<8x8x7xf32>
    %4 = arith.cmpf one, %3, %3 : vector<8x8x7xf32>
    %cst = arith.constant 0.000000e+00 : f32
    %5 = vector.broadcast %cst : f32 to vector<8x8x7xf32>
    %6 = arith.select %4, %5, %3 : vector<8x8x7xi1>, vector<8x8x7xf32>
    %7 = vector.shape_cast %6 : vector<8x8x7xf32> to vector<64x7xf32>
    %8 = vector.extract_strided_slice %7 {offsets = [0, 0], sizes = [64, 5], strides = [1, 1]} : vector<64x7xf32> to vector<64x5xf32>
    %9 = vector.extract_strided_slice %7 {offsets = [0, 5], sizes = [64, 1], strides = [1, 1]} : vector<64x7xf32> to vector<64x1xf32>
    %c0_3 = arith.constant 0 : index
    %c0_4 = arith.constant 0 : index
    %10 = vector.load %arg3[%c0_3, %c0_4] : memref<5x64xf32, #tpu.memory_space<vmem>>, vector<5x64xf32>
    %cst_5 = arith.constant dense<0.000000e+00> : vector<64x64xf32>
    %11 = tpu.matmul %8, %10, %cst_5 {dimension_numbers = #tpu.dot_dimension_numbers<[1], [0], [0], [1], [0, 0, 1, 1], [], []>} : vector<64x5xf32>, vector<5x64xf32>, vector<64x64xf32> -> vector<64x64xf32>
    %c0_6 = arith.constant 0 : index
    %c0_7 = arith.constant 0 : index
    %12 = vector.load %arg4[%c0_6, %c0_7] : memref<1x64xf32, #tpu.memory_space<vmem>>, vector<1x64xf32>
    %13 = vector.broadcast %12 : vector<1x64xf32> to vector<64x64xf32>
    %14 = arith.addf %11, %13 : vector<64x64xf32>
    %cst_8 = arith.constant 0.000000e+00 : f32
    %15 = vector.broadcast %cst_8 : f32 to vector<64x64xf32>
    %16 = arith.maximumf %14, %15 : vector<64x64xf32>
    %c0_9 = arith.constant 0 : index
    %c0_10 = arith.constant 0 : index
    %17 = vector.load %arg5[%c0_9, %c0_10] : memref<1x512xf32, #tpu.memory_space<vmem>>, vector<1x512xf32>
    %18 = vector.broadcast %9 : vector<64x1xf32> to vector<64x512xf32>
    %19 = vector.broadcast %17 : vector<1x512xf32> to vector<64x512xf32>
    %20 = arith.mulf %18, %19 : vector<64x512xf32>
    %21 = arith.truncf %16 : vector<64x64xf32> to vector<64x64xbf16>
    %c0_11 = arith.constant 0 : index
    %c0_12 = arith.constant 0 : index
    %22 = vector.load %arg6[%c0_11, %c0_12] : memref<64x512xbf16, #tpu.memory_space<vmem>>, vector<64x512xbf16>
    %cst_13 = arith.constant dense<0.000000e+00> : vector<64x512xf32>
    %23 = tpu.matmul %21, %22, %cst_13 {dimension_numbers = #tpu.dot_dimension_numbers<[1], [0], [0], [1], [0, 0, 1, 1], [], []>} : vector<64x64xbf16>, vector<64x512xbf16>, vector<64x512xf32> -> vector<64x512xf32>
    %24 = arith.addf %20, %23 : vector<64x512xf32>
    %c0_14 = arith.constant 0 : index
    %c0_15 = arith.constant 0 : index
    %25 = vector.load %arg7[%c0_14, %c0_15] : memref<1x512xf32, #tpu.memory_space<vmem>>, vector<1x512xf32>
    %26 = vector.broadcast %25 : vector<1x512xf32> to vector<64x512xf32>
    %27 = arith.addf %24, %26 : vector<64x512xf32>
    %28 = vector.shape_cast %27 : vector<64x512xf32> to vector<8x8x512xf32>
    %c0_16 = arith.constant 0 : index
    %c0_17 = arith.constant 0 : index
    %c0_18 = arith.constant 0 : index
    %29 = vector.load %arg14[%c0_16, %c0_17, %c0_18] : memref<8x8x512xf32, #tpu.memory_space<vmem>>, vector<8x8x512xf32>
    tpu.vector_store %arg14[%c0_16, %c0_17, %c0_18], %28 {strides = array<i32>} : memref<8x8x512xf32, #tpu.memory_space<vmem>>, vector<8x8x512xf32>,
    %c0_19 = arith.constant 0 : index
    %c0_20 = arith.constant 0 : index
    %30 = vector.load %arg16[%c0_19, %c0_20] : memref<8x128xf32, #tpu.memory_space<vmem>>, vector<8x128xf32>
    %c0_21 = arith.constant 0 : index
    %c0_22 = arith.constant 0 : index
    %31 = vector.load %arg17[%c0_21, %c0_22] : memref<8x128xf32, #tpu.memory_space<vmem>>, vector<8x128xf32>
    %c0_i32_23 = arith.constant 0 : i32
    %32 = arith.index_cast %c0_i32_23 : i32 to index
    %c0_24 = arith.constant 0 : index
    %c0_25 = arith.constant 0 : index
    %33 = vector.load %arg14[%32, %c0_24, %c0_25] : memref<8x8x512xf32, #tpu.memory_space<vmem>>, vector<1x8x512xf32>
    %34 = vector.shape_cast %33 : vector<1x8x512xf32> to vector<8x512xf32>
    %35 = arith.truncf %30 : vector<8x128xf32> to vector<8x128xbf16>
    %c0_26 = arith.constant 0 : index
    %c0_27 = arith.constant 0 : index
    %36 = vector.load %arg8[%c0_26, %c0_27] : memref<128x512xbf16, #tpu.memory_space<vmem>>, vector<128x512xbf16>
    %cst_28 = arith.constant dense<0.000000e+00> : vector<8x512xf32>
    %37 = tpu.matmul %35, %36, %cst_28 {dimension_numbers = #tpu.dot_dimension_numbers<[1], [0], [0], [1], [0, 0, 1, 1], [], []>} : vector<8x128xbf16>, vector<128x512xbf16>, vector<8x512xf32> -> vector<8x512xf32>
    %38 = arith.addf %34, %37 : vector<8x512xf32>
    %39 = vector.extract_strided_slice %38 {offsets = [0, 0], sizes = [8, 384], strides = [1, 1]} : vector<8x512xf32> to vector<8x384xf32>
    %40 = arith.negf %39 : vector<8x384xf32>
    %41 = math.exp %40 : vector<8x384xf32>
    %cst_29 = arith.constant 1.000000e+00 : f32
    %42 = vector.broadcast %cst_29 : f32 to vector<8x384xf32>
    %43 = arith.addf %42, %41 : vector<8x384xf32>
    %44 = arith.divf %42, %43 : vector<8x384xf32>
    %45 = vector.extract_strided_slice %38 {offsets = [0, 384], sizes = [8, 128], strides = [1, 1]} : vector<8x512xf32> to vector<8x128xf32>
    %46 = math.tanh %45 : vector<8x128xf32>
    %47 = vector.extract_strided_slice %44 {offsets = [0, 0], sizes = [8, 128], strides = [1, 1]} : vector<8x384xf32> to vector<8x128xf32>
    %48 = vector.extract_strided_slice %44 {offsets = [0, 128], sizes = [8, 128], strides = [1, 1]} : vector<8x384xf32> to vector<8x128xf32>
    %49 = vector.extract_strided_slice %44 {offsets = [0, 256], sizes = [8, 128], strides = [1, 1]} : vector<8x384xf32> to vector<8x128xf32>
    %50 = arith.mulf %48, %31 : vector<8x128xf32>
    %51 = arith.mulf %47, %46 : vector<8x128xf32>
    %52 = arith.addf %50, %51 : vector<8x128xf32>
    %53 = math.tanh %52 : vector<8x128xf32>
    %54 = arith.mulf %49, %53 : vector<8x128xf32>
    %55 = arith.index_cast %c0_i32_23 : i32 to index
    %c0_30 = arith.constant 0 : index
    %c0_31 = arith.constant 0 : index
    %56 = vector.load %arg15[%55, %c0_30, %c0_31] : memref<8x8x128xf32, #tpu.memory_space<vmem>>, vector<1x8x128xf32>
    %57 = vector.shape_cast %56 : vector<1x8x128xf32> to vector<8x128xf32>
    %58 = vector.shape_cast %54 : vector<8x128xf32> to vector<1x8x128xf32>
    tpu.vector_store %arg15[%55, %c0_30, %c0_31], %58 {strides = array<i32>} : memref<8x8x128xf32, #tpu.memory_space<vmem>>, vector<1x8x128xf32>,
    %c1_i32 = arith.constant 1 : i32
    %59 = arith.index_cast %c1_i32 : i32 to index
    %c0_32 = arith.constant 0 : index
    %c0_33 = arith.constant 0 : index
    %60 = vector.load %arg14[%59, %c0_32, %c0_33] : memref<8x8x512xf32, #tpu.memory_space<vmem>>, vector<1x8x512xf32>
    %61 = vector.shape_cast %60 : vector<1x8x512xf32> to vector<8x512xf32>
    %62 = arith.truncf %54 : vector<8x128xf32> to vector<8x128xbf16>
    %c0_34 = arith.constant 0 : index
    %c0_35 = arith.constant 0 : index
    %63 = vector.load %arg8[%c0_34, %c0_35] : memref<128x512xbf16, #tpu.memory_space<vmem>>, vector<128x512xbf16>
    %cst_36 = arith.constant dense<0.000000e+00> : vector<8x512xf32>
    %64 = tpu.matmul %62, %63, %cst_36 {dimension_numbers = #tpu.dot_dimension_numbers<[1], [0], [0], [1], [0, 0, 1, 1], [], []>} : vector<8x128xbf16>, vector<128x512xbf16>, vector<8x512xf32> -> vector<8x512xf32>
    %65 = arith.addf %61, %64 : vector<8x512xf32>
    %66 = vector.extract_strided_slice %65 {offsets = [0, 0], sizes = [8, 384], strides = [1, 1]} : vector<8x512xf32> to vector<8x384xf32>
    %67 = arith.negf %66 : vector<8x384xf32>
    %68 = math.exp %67 : vector<8x384xf32>
    %cst_37 = arith.constant 1.000000e+00 : f32
    %69 = vector.broadcast %cst_37 : f32 to vector<8x384xf32>
    %70 = arith.addf %69, %68 : vector<8x384xf32>
    %71 = arith.divf %69, %70 : vector<8x384xf32>
    %72 = vector.extract_strided_slice %65 {offsets = [0, 384], sizes = [8, 128], strides = [1, 1]} : vector<8x512xf32> to vector<8x128xf32>
    %73 = math.tanh %72 : vector<8x128xf32>
    %74 = vector.extract_strided_slice %71 {offsets = [0, 0], sizes = [8, 128], strides = [1, 1]} : vector<8x384xf32> to vector<8x128xf32>
    %75 = vector.extract_strided_slice %71 {offsets = [0, 128], sizes = [8, 128], strides = [1, 1]} : vector<8x384xf32> to vector<8x128xf32>
    %76 = vector.extract_strided_slice %71 {offsets = [0, 256], sizes = [8, 128], strides = [1, 1]} : vector<8x384xf32> to vector<8x128xf32>
    %77 = arith.mulf %75, %52 : vector<8x128xf32>
    %78 = arith.mulf %74, %73 : vector<8x128xf32>
    %79 = arith.addf %77, %78 : vector<8x128xf32>
    %80 = math.tanh %79 : vector<8x128xf32>
    %81 = arith.mulf %76, %80 : vector<8x128xf32>
    %82 = arith.index_cast %c1_i32 : i32 to index
    %c0_38 = arith.constant 0 : index
    %c0_39 = arith.constant 0 : index
    %83 = vector.load %arg15[%82, %c0_38, %c0_39] : memref<8x8x128xf32, #tpu.memory_space<vmem>>, vector<1x8x128xf32>
    %84 = vector.shape_cast %83 : vector<1x8x128xf32> to vector<8x128xf32>
    %85 = vector.shape_cast %81 : vector<8x128xf32> to vector<1x8x128xf32>
    tpu.vector_store %arg15[%82, %c0_38, %c0_39], %85 {strides = array<i32>} : memref<8x8x128xf32, #tpu.memory_space<vmem>>, vector<1x8x128xf32>,
    %c2_i32 = arith.constant 2 : i32
    %86 = arith.index_cast %c2_i32 : i32 to index
    %c0_40 = arith.constant 0 : index
    %c0_41 = arith.constant 0 : index
    %87 = vector.load %arg14[%86, %c0_40, %c0_41] : memref<8x8x512xf32, #tpu.memory_space<vmem>>, vector<1x8x512xf32>
    %88 = vector.shape_cast %87 : vector<1x8x512xf32> to vector<8x512xf32>
    %89 = arith.truncf %81 : vector<8x128xf32> to vector<8x128xbf16>
    %c0_42 = arith.constant 0 : index
    %c0_43 = arith.constant 0 : index
    %90 = vector.load %arg8[%c0_42, %c0_43] : memref<128x512xbf16, #tpu.memory_space<vmem>>, vector<128x512xbf16>
    %cst_44 = arith.constant dense<0.000000e+00> : vector<8x512xf32>
    %91 = tpu.matmul %89, %90, %cst_44 {dimension_numbers = #tpu.dot_dimension_numbers<[1], [0], [0], [1], [0, 0, 1, 1], [], []>} : vector<8x128xbf16>, vector<128x512xbf16>, vector<8x512xf32> -> vector<8x512xf32>
    %92 = arith.addf %88, %91 : vector<8x512xf32>
    %93 = vector.extract_strided_slice %92 {offsets = [0, 0], sizes = [8, 384], strides = [1, 1]} : vector<8x512xf32> to vector<8x384xf32>
    %94 = arith.negf %93 : vector<8x384xf32>
    %95 = math.exp %94 : vector<8x384xf32>
    %cst_45 = arith.constant 1.000000e+00 : f32
    %96 = vector.broadcast %cst_45 : f32 to vector<8x384xf32>
    %97 = arith.addf %96, %95 : vector<8x384xf32>
    %98 = arith.divf %96, %97 : vector<8x384xf32>
    %99 = vector.extract_strided_slice %92 {offsets = [0, 384], sizes = [8, 128], strides = [1, 1]} : vector<8x512xf32> to vector<8x128xf32>
    %100 = math.tanh %99 : vector<8x128xf32>
    %101 = vector.extract_strided_slice %98 {offsets = [0, 0], sizes = [8, 128], strides = [1, 1]} : vector<8x384xf32> to vector<8x128xf32>
    %102 = vector.extract_strided_slice %98 {offsets = [0, 128], sizes = [8, 128], strides = [1, 1]} : vector<8x384xf32> to vector<8x128xf32>
    %103 = vector.extract_strided_slice %98 {offsets = [0, 256], sizes = [8, 128], strides = [1, 1]} : vector<8x384xf32> to vector<8x128xf32>
    %104 = arith.mulf %102, %79 : vector<8x128xf32>
    %105 = arith.mulf %101, %100 : vector<8x128xf32>
    %106 = arith.addf %104, %105 : vector<8x128xf32>
    %107 = math.tanh %106 : vector<8x128xf32>
    %108 = arith.mulf %103, %107 : vector<8x128xf32>
    %109 = arith.index_cast %c2_i32 : i32 to index
    %c0_46 = arith.constant 0 : index
    %c0_47 = arith.constant 0 : index
    %110 = vector.load %arg15[%109, %c0_46, %c0_47] : memref<8x8x128xf32, #tpu.memory_space<vmem>>, vector<1x8x128xf32>
    %111 = vector.shape_cast %110 : vector<1x8x128xf32> to vector<8x128xf32>
    %112 = vector.shape_cast %108 : vector<8x128xf32> to vector<1x8x128xf32>
    tpu.vector_store %arg15[%109, %c0_46, %c0_47], %112 {strides = array<i32>} : memref<8x8x128xf32, #tpu.memory_space<vmem>>, vector<1x8x128xf32>,
    %c3_i32 = arith.constant 3 : i32
    %113 = arith.index_cast %c3_i32 : i32 to index
    %c0_48 = arith.constant 0 : index
    %c0_49 = arith.constant 0 : index
    %114 = vector.load %arg14[%113, %c0_48, %c0_49] : memref<8x8x512xf32, #tpu.memory_space<vmem>>, vector<1x8x512xf32>
    %115 = vector.shape_cast %114 : vector<1x8x512xf32> to vector<8x512xf32>
    %116 = arith.truncf %108 : vector<8x128xf32> to vector<8x128xbf16>
    %c0_50 = arith.constant 0 : index
    %c0_51 = arith.constant 0 : index
    %117 = vector.load %arg8[%c0_50, %c0_51] : memref<128x512xbf16, #tpu.memory_space<vmem>>, vector<128x512xbf16>
    %cst_52 = arith.constant dense<0.000000e+00> : vector<8x512xf32>
    %118 = tpu.matmul %116, %117, %cst_52 {dimension_numbers = #tpu.dot_dimension_numbers<[1], [0], [0], [1], [0, 0, 1, 1], [], []>} : vector<8x128xbf16>, vector<128x512xbf16>, vector<8x512xf32> -> vector<8x512xf32>
    %119 = arith.addf %115, %118 : vector<8x512xf32>
    %120 = vector.extract_strided_slice %119 {offsets = [0, 0], sizes = [8, 384], strides = [1, 1]} : vector<8x512xf32> to vector<8x384xf32>
    %121 = arith.negf %120 : vector<8x384xf32>
    %122 = math.exp %121 : vector<8x384xf32>
    %cst_53 = arith.constant 1.000000e+00 : f32
    %123 = vector.broadcast %cst_53 : f32 to vector<8x384xf32>
    %124 = arith.addf %123, %122 : vector<8x384xf32>
    %125 = arith.divf %123, %124 : vector<8x384xf32>
    %126 = vector.extract_strided_slice %119 {offsets = [0, 384], sizes = [8, 128], strides = [1, 1]} : vector<8x512xf32> to vector<8x128xf32>
    %127 = math.tanh %126 : vector<8x128xf32>
    %128 = vector.extract_strided_slice %125 {offsets = [0, 0], sizes = [8, 128], strides = [1, 1]} : vector<8x384xf32> to vector<8x128xf32>
    %129 = vector.extract_strided_slice %125 {offsets = [0, 128], sizes = [8, 128], strides = [1, 1]} : vector<8x384xf32> to vector<8x128xf32>
    %130 = vector.extract_strided_slice %125 {offsets = [0, 256], sizes = [8, 128], strides = [1, 1]} : vector<8x384xf32> to vector<8x128xf32>
    %131 = arith.mulf %129, %106 : vector<8x128xf32>
    %132 = arith.mulf %128, %127 : vector<8x128xf32>
    %133 = arith.addf %131, %132 : vector<8x128xf32>
    %134 = math.tanh %133 : vector<8x128xf32>
    %135 = arith.mulf %130, %134 : vector<8x128xf32>
    %136 = arith.index_cast %c3_i32 : i32 to index
    %c0_54 = arith.constant 0 : index
    %c0_55 = arith.constant 0 : index
    %137 = vector.load %arg15[%136, %c0_54, %c0_55] : memref<8x8x128xf32, #tpu.memory_space<vmem>>, vector<1x8x128xf32>
    %138 = vector.shape_cast %137 : vector<1x8x128xf32> to vector<8x128xf32>
    %139 = vector.shape_cast %135 : vector<8x128xf32> to vector<1x8x128xf32>
    tpu.vector_store %arg15[%136, %c0_54, %c0_55], %139 {strides = array<i32>} : memref<8x8x128xf32, #tpu.memory_space<vmem>>, vector<1x8x128xf32>,
    %c4_i32 = arith.constant 4 : i32
    %140 = arith.index_cast %c4_i32 : i32 to index
    %c0_56 = arith.constant 0 : index
    %c0_57 = arith.constant 0 : index
    %141 = vector.load %arg14[%140, %c0_56, %c0_57] : memref<8x8x512xf32, #tpu.memory_space<vmem>>, vector<1x8x512xf32>
    %142 = vector.shape_cast %141 : vector<1x8x512xf32> to vector<8x512xf32>
    %143 = arith.truncf %135 : vector<8x128xf32> to vector<8x128xbf16>
    %c0_58 = arith.constant 0 : index
    %c0_59 = arith.constant 0 : index
    %144 = vector.load %arg8[%c0_58, %c0_59] : memref<128x512xbf16, #tpu.memory_space<vmem>>, vector<128x512xbf16>
    %cst_60 = arith.constant dense<0.000000e+00> : vector<8x512xf32>
    %145 = tpu.matmul %143, %144, %cst_60 {dimension_numbers = #tpu.dot_dimension_numbers<[1], [0], [0], [1], [0, 0, 1, 1], [], []>} : vector<8x128xbf16>, vector<128x512xbf16>, vector<8x512xf32> -> vector<8x512xf32>
    %146 = arith.addf %142, %145 : vector<8x512xf32>
    %147 = vector.extract_strided_slice %146 {offsets = [0, 0], sizes = [8, 384], strides = [1, 1]} : vector<8x512xf32> to vector<8x384xf32>
    %148 = arith.negf %147 : vector<8x384xf32>
    %149 = math.exp %148 : vector<8x384xf32>
    %cst_61 = arith.constant 1.000000e+00 : f32
    %150 = vector.broadcast %cst_61 : f32 to vector<8x384xf32>
    %151 = arith.addf %150, %149 : vector<8x384xf32>
    %152 = arith.divf %150, %151 : vector<8x384xf32>
    %153 = vector.extract_strided_slice %146 {offsets = [0, 384], sizes = [8, 128], strides = [1, 1]} : vector<8x512xf32> to vector<8x128xf32>
    %154 = math.tanh %153 : vector<8x128xf32>
    %155 = vector.extract_strided_slice %152 {offsets = [0, 0], sizes = [8, 128], strides = [1, 1]} : vector<8x384xf32> to vector<8x128xf32>
    %156 = vector.extract_strided_slice %152 {offsets = [0, 128], sizes = [8, 128], strides = [1, 1]} : vector<8x384xf32> to vector<8x128xf32>
    %157 = vector.extract_strided_slice %152 {offsets = [0, 256], sizes = [8, 128], strides = [1, 1]} : vector<8x384xf32> to vector<8x128xf32>
    %158 = arith.mulf %156, %133 : vector<8x128xf32>
    %159 = arith.mulf %155, %154 : vector<8x128xf32>
    %160 = arith.addf %158, %159 : vector<8x128xf32>
    %161 = math.tanh %160 : vector<8x128xf32>
    %162 = arith.mulf %157, %161 : vector<8x128xf32>
    %163 = arith.index_cast %c4_i32 : i32 to index
    %c0_62 = arith.constant 0 : index
    %c0_63 = arith.constant 0 : index
    %164 = vector.load %arg15[%163, %c0_62, %c0_63] : memref<8x8x128xf32, #tpu.memory_space<vmem>>, vector<1x8x128xf32>
    %165 = vector.shape_cast %164 : vector<1x8x128xf32> to vector<8x128xf32>
    %166 = vector.shape_cast %162 : vector<8x128xf32> to vector<1x8x128xf32>
    tpu.vector_store %arg15[%163, %c0_62, %c0_63], %166 {strides = array<i32>} : memref<8x8x128xf32, #tpu.memory_space<vmem>>, vector<1x8x128xf32>,
    %c5_i32 = arith.constant 5 : i32
    %167 = arith.index_cast %c5_i32 : i32 to index
    %c0_64 = arith.constant 0 : index
    %c0_65 = arith.constant 0 : index
    %168 = vector.load %arg14[%167, %c0_64, %c0_65] : memref<8x8x512xf32, #tpu.memory_space<vmem>>, vector<1x8x512xf32>
    %169 = vector.shape_cast %168 : vector<1x8x512xf32> to vector<8x512xf32>
    %170 = arith.truncf %162 : vector<8x128xf32> to vector<8x128xbf16>
    %c0_66 = arith.constant 0 : index
    %c0_67 = arith.constant 0 : index
    %171 = vector.load %arg8[%c0_66, %c0_67] : memref<128x512xbf16, #tpu.memory_space<vmem>>, vector<128x512xbf16>
    %cst_68 = arith.constant dense<0.000000e+00> : vector<8x512xf32>
    %172 = tpu.matmul %170, %171, %cst_68 {dimension_numbers = #tpu.dot_dimension_numbers<[1], [0], [0], [1], [0, 0, 1, 1], [], []>} : vector<8x128xbf16>, vector<128x512xbf16>, vector<8x512xf32> -> vector<8x512xf32>
    %173 = arith.addf %169, %172 : vector<8x512xf32>
    %174 = vector.extract_strided_slice %173 {offsets = [0, 0], sizes = [8, 384], strides = [1, 1]} : vector<8x512xf32> to vector<8x384xf32>
    %175 = arith.negf %174 : vector<8x384xf32>
    %176 = math.exp %175 : vector<8x384xf32>
    %cst_69 = arith.constant 1.000000e+00 : f32
    %177 = vector.broadcast %cst_69 : f32 to vector<8x384xf32>
    %178 = arith.addf %177, %176 : vector<8x384xf32>
    %179 = arith.divf %177, %178 : vector<8x384xf32>
    %180 = vector.extract_strided_slice %173 {offsets = [0, 384], sizes = [8, 128], strides = [1, 1]} : vector<8x512xf32> to vector<8x128xf32>
    %181 = math.tanh %180 : vector<8x128xf32>
    %182 = vector.extract_strided_slice %179 {offsets = [0, 0], sizes = [8, 128], strides = [1, 1]} : vector<8x384xf32> to vector<8x128xf32>
    %183 = vector.extract_strided_slice %179 {offsets = [0, 128], sizes = [8, 128], strides = [1, 1]} : vector<8x384xf32> to vector<8x128xf32>
    %184 = vector.extract_strided_slice %179 {offsets = [0, 256], sizes = [8, 128], strides = [1, 1]} : vector<8x384xf32> to vector<8x128xf32>
    %185 = arith.mulf %183, %160 : vector<8x128xf32>
    %186 = arith.mulf %182, %181 : vector<8x128xf32>
    %187 = arith.addf %185, %186 : vector<8x128xf32>
    %188 = math.tanh %187 : vector<8x128xf32>
    %189 = arith.mulf %184, %188 : vector<8x128xf32>
    %190 = arith.index_cast %c5_i32 : i32 to index
    %c0_70 = arith.constant 0 : index
    %c0_71 = arith.constant 0 : index
    %191 = vector.load %arg15[%190, %c0_70, %c0_71] : memref<8x8x128xf32, #tpu.memory_space<vmem>>, vector<1x8x128xf32>
    %192 = vector.shape_cast %191 : vector<1x8x128xf32> to vector<8x128xf32>
    %193 = vector.shape_cast %189 : vector<8x128xf32> to vector<1x8x128xf32>
    tpu.vector_store %arg15[%190, %c0_70, %c0_71], %193 {strides = array<i32>} : memref<8x8x128xf32, #tpu.memory_space<vmem>>, vector<1x8x128xf32>,
    %c6_i32 = arith.constant 6 : i32
    %194 = arith.index_cast %c6_i32 : i32 to index
    %c0_72 = arith.constant 0 : index
    %c0_73 = arith.constant 0 : index
    %195 = vector.load %arg14[%194, %c0_72, %c0_73] : memref<8x8x512xf32, #tpu.memory_space<vmem>>, vector<1x8x512xf32>
    %196 = vector.shape_cast %195 : vector<1x8x512xf32> to vector<8x512xf32>
    %197 = arith.truncf %189 : vector<8x128xf32> to vector<8x128xbf16>
    %c0_74 = arith.constant 0 : index
    %c0_75 = arith.constant 0 : index
    %198 = vector.load %arg8[%c0_74, %c0_75] : memref<128x512xbf16, #tpu.memory_space<vmem>>, vector<128x512xbf16>
    %cst_76 = arith.constant dense<0.000000e+00> : vector<8x512xf32>
    %199 = tpu.matmul %197, %198, %cst_76 {dimension_numbers = #tpu.dot_dimension_numbers<[1], [0], [0], [1], [0, 0, 1, 1], [], []>} : vector<8x128xbf16>, vector<128x512xbf16>, vector<8x512xf32> -> vector<8x512xf32>
    %200 = arith.addf %196, %199 : vector<8x512xf32>
    %201 = vector.extract_strided_slice %200 {offsets = [0, 0], sizes = [8, 384], strides = [1, 1]} : vector<8x512xf32> to vector<8x384xf32>
    %202 = arith.negf %201 : vector<8x384xf32>
    %203 = math.exp %202 : vector<8x384xf32>
    %cst_77 = arith.constant 1.000000e+00 : f32
    %204 = vector.broadcast %cst_77 : f32 to vector<8x384xf32>
    %205 = arith.addf %204, %203 : vector<8x384xf32>
    %206 = arith.divf %204, %205 : vector<8x384xf32>
    %207 = vector.extract_strided_slice %200 {offsets = [0, 384], sizes = [8, 128], strides = [1, 1]} : vector<8x512xf32> to vector<8x128xf32>
    %208 = math.tanh %207 : vector<8x128xf32>
    %209 = vector.extract_strided_slice %206 {offsets = [0, 0], sizes = [8, 128], strides = [1, 1]} : vector<8x384xf32> to vector<8x128xf32>
    %210 = vector.extract_strided_slice %206 {offsets = [0, 128], sizes = [8, 128], strides = [1, 1]} : vector<8x384xf32> to vector<8x128xf32>
    %211 = vector.extract_strided_slice %206 {offsets = [0, 256], sizes = [8, 128], strides = [1, 1]} : vector<8x384xf32> to vector<8x128xf32>
    %212 = arith.mulf %210, %187 : vector<8x128xf32>
    %213 = arith.mulf %209, %208 : vector<8x128xf32>
    %214 = arith.addf %212, %213 : vector<8x128xf32>
    %215 = math.tanh %214 : vector<8x128xf32>
    %216 = arith.mulf %211, %215 : vector<8x128xf32>
    %217 = arith.index_cast %c6_i32 : i32 to index
    %c0_78 = arith.constant 0 : index
    %c0_79 = arith.constant 0 : index
    %218 = vector.load %arg15[%217, %c0_78, %c0_79] : memref<8x8x128xf32, #tpu.memory_space<vmem>>, vector<1x8x128xf32>
    %219 = vector.shape_cast %218 : vector<1x8x128xf32> to vector<8x128xf32>
    %220 = vector.shape_cast %216 : vector<8x128xf32> to vector<1x8x128xf32>
    tpu.vector_store %arg15[%217, %c0_78, %c0_79], %220 {strides = array<i32>} : memref<8x8x128xf32, #tpu.memory_space<vmem>>, vector<1x8x128xf32>,
    %c7_i32 = arith.constant 7 : i32
    %221 = arith.index_cast %c7_i32 : i32 to index
    %c0_80 = arith.constant 0 : index
    %c0_81 = arith.constant 0 : index
    %222 = vector.load %arg14[%221, %c0_80, %c0_81] : memref<8x8x512xf32, #tpu.memory_space<vmem>>, vector<1x8x512xf32>
    %223 = vector.shape_cast %222 : vector<1x8x512xf32> to vector<8x512xf32>
    %224 = arith.truncf %216 : vector<8x128xf32> to vector<8x128xbf16>
    %c0_82 = arith.constant 0 : index
    %c0_83 = arith.constant 0 : index
    %225 = vector.load %arg8[%c0_82, %c0_83] : memref<128x512xbf16, #tpu.memory_space<vmem>>, vector<128x512xbf16>
    %cst_84 = arith.constant dense<0.000000e+00> : vector<8x512xf32>
    %226 = tpu.matmul %224, %225, %cst_84 {dimension_numbers = #tpu.dot_dimension_numbers<[1], [0], [0], [1], [0, 0, 1, 1], [], []>} : vector<8x128xbf16>, vector<128x512xbf16>, vector<8x512xf32> -> vector<8x512xf32>
    %227 = arith.addf %223, %226 : vector<8x512xf32>
    %228 = vector.extract_strided_slice %227 {offsets = [0, 0], sizes = [8, 384], strides = [1, 1]} : vector<8x512xf32> to vector<8x384xf32>
    %229 = arith.negf %228 : vector<8x384xf32>
    %230 = math.exp %229 : vector<8x384xf32>
    %cst_85 = arith.constant 1.000000e+00 : f32
    %231 = vector.broadcast %cst_85 : f32 to vector<8x384xf32>
    %232 = arith.addf %231, %230 : vector<8x384xf32>
    %233 = arith.divf %231, %232 : vector<8x384xf32>
    %234 = vector.extract_strided_slice %227 {offsets = [0, 384], sizes = [8, 128], strides = [1, 1]} : vector<8x512xf32> to vector<8x128xf32>
    %235 = math.tanh %234 : vector<8x128xf32>
    %236 = vector.extract_strided_slice %233 {offsets = [0, 0], sizes = [8, 128], strides = [1, 1]} : vector<8x384xf32> to vector<8x128xf32>
    %237 = vector.extract_strided_slice %233 {offsets = [0, 128], sizes = [8, 128], strides = [1, 1]} : vector<8x384xf32> to vector<8x128xf32>
    %238 = vector.extract_strided_slice %233 {offsets = [0, 256], sizes = [8, 128], strides = [1, 1]} : vector<8x384xf32> to vector<8x128xf32>
    %239 = arith.mulf %237, %214 : vector<8x128xf32>
    %240 = arith.mulf %236, %235 : vector<8x128xf32>
    %241 = arith.addf %239, %240 : vector<8x128xf32>
    %242 = math.tanh %241 : vector<8x128xf32>
    %243 = arith.mulf %238, %242 : vector<8x128xf32>
    %244 = arith.index_cast %c7_i32 : i32 to index
    %c0_86 = arith.constant 0 : index
    %c0_87 = arith.constant 0 : index
    %245 = vector.load %arg15[%244, %c0_86, %c0_87] : memref<8x8x128xf32, #tpu.memory_space<vmem>>, vector<1x8x128xf32>
    %246 = vector.shape_cast %245 : vector<1x8x128xf32> to vector<8x128xf32>
    %247 = vector.shape_cast %243 : vector<8x128xf32> to vector<1x8x128xf32>
    tpu.vector_store %arg15[%244, %c0_86, %c0_87], %247 {strides = array<i32>} : memref<8x8x128xf32, #tpu.memory_space<vmem>>, vector<1x8x128xf32>,
    %c8_i32 = arith.constant 8 : i32
    %c0_88 = arith.constant 0 : index
    %c0_89 = arith.constant 0 : index
    %248 = vector.load %arg16[%c0_88, %c0_89] : memref<8x128xf32, #tpu.memory_space<vmem>>, vector<8x128xf32>
    tpu.vector_store %arg16[%c0_88, %c0_89], %243 {strides = array<i32>} : memref<8x128xf32, #tpu.memory_space<vmem>>, vector<8x128xf32>,
    %c0_90 = arith.constant 0 : index
    %c0_91 = arith.constant 0 : index
    %249 = vector.load %arg17[%c0_90, %c0_91] : memref<8x128xf32, #tpu.memory_space<vmem>>, vector<8x128xf32>
    tpu.vector_store %arg17[%c0_90, %c0_91], %241 {strides = array<i32>} : memref<8x128xf32, #tpu.memory_space<vmem>>, vector<8x128xf32>,
    %c0_92 = arith.constant 0 : index
    %c0_93 = arith.constant 0 : index
    %c0_94 = arith.constant 0 : index
    %250 = vector.load %arg15[%c0_92, %c0_93, %c0_94] : memref<8x8x128xf32, #tpu.memory_space<vmem>>, vector<8x8x128xf32>
    %251 = vector.shape_cast %250 : vector<8x8x128xf32> to vector<64x128xf32>
    %252 = arith.truncf %251 : vector<64x128xf32> to vector<64x128xbf16>
    %c0_95 = arith.constant 0 : index
    %c0_96 = arith.constant 0 : index
    %253 = vector.load %arg9[%c0_95, %c0_96] : memref<128x64xbf16, #tpu.memory_space<vmem>>, vector<128x64xbf16>
    %cst_97 = arith.constant dense<0.000000e+00> : vector<64x64xf32>
    %254 = tpu.matmul %252, %253, %cst_97 {dimension_numbers = #tpu.dot_dimension_numbers<[1], [0], [0], [1], [0, 0, 1, 1], [], []>} : vector<64x128xbf16>, vector<128x64xbf16>, vector<64x64xf32> -> vector<64x64xf32>
    %c0_98 = arith.constant 0 : index
    %c0_99 = arith.constant 0 : index
    %255 = vector.load %arg10[%c0_98, %c0_99] : memref<1x64xf32, #tpu.memory_space<vmem>>, vector<1x64xf32>
    %256 = vector.broadcast %255 : vector<1x64xf32> to vector<64x64xf32>
    %257 = arith.addf %254, %256 : vector<64x64xf32>
    %cst_100 = arith.constant 0.000000e+00 : f32
    %258 = vector.broadcast %cst_100 : f32 to vector<64x64xf32>
    %259 = arith.maximumf %257, %258 : vector<64x64xf32>
    %260 = arith.truncf %259 : vector<64x64xf32> to vector<64x64xbf16>
    %c0_101 = arith.constant 0 : index
    %c0_102 = arith.constant 0 : index
    %261 = vector.load %arg11[%c0_101, %c0_102] : memref<64x2xbf16, #tpu.memory_space<vmem>>, vector<64x2xbf16>
    %cst_103 = arith.constant dense<0.000000e+00> : vector<64x2xf32>
    %262 = tpu.matmul %260, %261, %cst_103 {dimension_numbers = #tpu.dot_dimension_numbers<[1], [0], [0], [1], [0, 0, 1, 1], [], []>} : vector<64x64xbf16>, vector<64x2xbf16>, vector<64x2xf32> -> vector<64x2xf32>
    %c0_104 = arith.constant 0 : index
    %c0_105 = arith.constant 0 : index
    %263 = vector.load %arg12[%c0_104, %c0_105] : memref<1x2xf32, #tpu.memory_space<vmem>>, vector<1x2xf32>
    %264 = vector.broadcast %263 : vector<1x2xf32> to vector<64x2xf32>
    %265 = arith.addf %262, %264 : vector<64x2xf32>
    %c0_106 = arith.constant 0 : index
    %c0_107 = arith.constant 0 : index
    %c0_108 = arith.constant 0 : index
    %266 = vector.load %arg2[%c0_106, %c0_107, %c0_108] : memref<8x8x7xf32, #tpu.memory_space<vmem>>, vector<8x8x7xf32>
    %267 = vector.extract_strided_slice %266 {offsets = [0, 0, 6], sizes = [8, 8, 1], strides = [1, 1, 1]} : vector<8x8x7xf32> to vector<8x8x1xf32>
    %268 = vector.shape_cast %265 : vector<64x2xf32> to vector<8x8x2xf32>
    %269 = vector.broadcast %267 : vector<8x8x1xf32> to vector<8x8x2xf32>
    %270 = arith.mulf %268, %269 : vector<8x8x2xf32>
    %c0_109 = arith.constant 0 : index
    %c0_110 = arith.constant 0 : index
    %c0_111 = arith.constant 0 : index
    %271 = vector.load %arg13[%c0_109, %c0_110, %c0_111] : memref<8x8x2xf32, #tpu.memory_space<vmem>>, vector<8x8x2xf32>
    tpu.vector_store %arg13[%c0_109, %c0_110, %c0_111], %270 {strides = array<i32>} : memref<8x8x2xf32, #tpu.memory_space<vmem>>, vector<8x8x2xf32>,
    return
  }
  func.func @transform_0(%arg0: i32, %arg1: i32) -> (i32, i32, i32) {
    %c0_i32 = arith.constant 0 : i32
    %c0_i32_0 = arith.constant 0 : i32
    return %arg1, %arg0, %c0_i32 : i32, i32, i32
  }
  func.func @transform_1(%arg0: i32, %arg1: i32) -> (i32, i32) {
    %c0_i32 = arith.constant 0 : i32
    %c0_i32_0 = arith.constant 0 : i32
    %c0_i32_1 = arith.constant 0 : i32
    return %c0_i32, %c0_i32_0 : i32, i32
  }
  func.func @transform_2(%arg0: i32, %arg1: i32) -> (i32, i32) {
    %c0_i32 = arith.constant 0 : i32
    %c0_i32_0 = arith.constant 0 : i32
    %c0_i32_1 = arith.constant 0 : i32
    return %c0_i32, %c0_i32_0 : i32, i32
  }
  func.func @transform_3(%arg0: i32, %arg1: i32) -> (i32, i32) {
    %c0_i32 = arith.constant 0 : i32
    %c0_i32_0 = arith.constant 0 : i32
    %c0_i32_1 = arith.constant 0 : i32
    return %c0_i32, %c0_i32_0 : i32, i32
  }
  func.func @transform_4(%arg0: i32, %arg1: i32) -> (i32, i32) {
    %c0_i32 = arith.constant 0 : i32
    %c0_i32_0 = arith.constant 0 : i32
    %c0_i32_1 = arith.constant 0 : i32
    return %c0_i32, %c0_i32_0 : i32, i32
  }
  func.func @transform_5(%arg0: i32, %arg1: i32) -> (i32, i32) {
    %c0_i32 = arith.constant 0 : i32
    %c0_i32_0 = arith.constant 0 : i32
    %c0_i32_1 = arith.constant 0 : i32
    return %c0_i32, %c0_i32_0 : i32, i32
  }
  func.func @transform_6(%arg0: i32, %arg1: i32) -> (i32, i32) {
    %c0_i32 = arith.constant 0 : i32
    %c0_i32_0 = arith.constant 0 : i32
    %c0_i32_1 = arith.constant 0 : i32
    return %c0_i32, %c0_i32_0 : i32, i32
  }
  func.func @transform_7(%arg0: i32, %arg1: i32) -> (i32, i32) {
    %c0_i32 = arith.constant 0 : i32
    %c0_i32_0 = arith.constant 0 : i32
    %c0_i32_1 = arith.constant 0 : i32
    return %c0_i32, %c0_i32_0 : i32, i32
  }
  func.func @transform_8(%arg0: i32, %arg1: i32) -> (i32, i32) {
    %c0_i32 = arith.constant 0 : i32
    %c0_i32_0 = arith.constant 0 : i32
    %c0_i32_1 = arith.constant 0 : i32
    return %c0_i32, %c0_i32_0 : i32, i32
  }
  func.func @transform_9(%arg0: i32, %arg1: i32) -> (i32, i32) {
    %c0_i32 = arith.constant 0 : i32
    %c0_i32_0 = arith.constant 0 : i32
    %c0_i32_1 = arith.constant 0 : i32
    return %c0_i32, %c0_i32_0 : i32, i32
  }
  func.func @transform_10(%arg0: i32, %arg1: i32) -> (i32, i32) {
    %c0_i32 = arith.constant 0 : i32
    %c0_i32_0 = arith.constant 0 : i32
    %c0_i32_1 = arith.constant 0 : i32
    return %c0_i32, %c0_i32_0 : i32, i32
  }
  func.func @transform_11(%arg0: i32, %arg1: i32) -> (i32, i32, i32) {
    %c0_i32 = arith.constant 0 : i32
    %c0_i32_0 = arith.constant 0 : i32
    return %arg1, %arg0, %c0_i32 : i32, i32, i32
  }
}

</mosaic_0001>

<llo_original>
// kernel: tpu_custom_call.1
$region0: #{tpu_custom_call.1}
  #allocation0 [shape = 'u32[]', space=smem, size = 0x4, offset = 0x4, fixed_abs, tag = 'smem constant byte address 0x4 - core index']
  #allocation1 [shape = 'u32[144,128]{1,0:T(1,128)}', space=vmem, size = 0x12000, scoped, tag = 'internal scratch']
  #allocation2 [shape = 'f32[8,8,512]{2,1,0:T(8,128)}', space=vmem, size = 0x20000, scoped, tag = 'scratch operand']
  #allocation3 [shape = 'f32[8,8,128]{2,1,0:T(8,128)}', space=vmem, size = 0x8000, scoped, tag = 'scratch operand']
  #allocation4 [shape = 'f32[8,128]{1,0:T(8,128)}', space=vmem, size = 0x1000, scoped, tag = 'scratch operand']
  #allocation5 [shape = 'f32[8,128]{1,0:T(8,128)}', space=vmem, size = 0x1000, scoped, tag = 'scratch operand']
  %s0 = inlined_call_operand.vmem [shape: f32[8,8,7], index: 0, kind: input, shape index: {}]
  %s1 = inlined_call_operand.vmem [shape: f32[5,64], index: 1, kind: input, shape index: {}]
  %s2 = inlined_call_operand.vmem [shape: f32[1,64], index: 2, kind: input, shape index: {}]
  %s3 = inlined_call_operand.vmem [shape: f32[1,512], index: 3, kind: input, shape index: {}]
  %s4 = inlined_call_operand.hbm [shape: bf16[64,512], index: 4, kind: input, shape index: {}]
  %s5 = inlined_call_operand.hbm [shape: f32[1,512], index: 5, kind: input, shape index: {}]
  %s6 = inlined_call_operand.vmem [shape: bf16[128,512], index: 6, kind: input, shape index: {}]
  %s7 = inlined_call_operand.vmem [shape: bf16[128,64], index: 7, kind: input, shape index: {}]
  %s8 = inlined_call_operand.vmem [shape: f32[1,64], index: 8, kind: input, shape index: {}]
  %s9 = inlined_call_operand.vmem [shape: bf16[64,2], index: 9, kind: input, shape index: {}]
  %s10 = inlined_call_operand.vmem [shape: f32[1,2], index: 10, kind: input, shape index: {}]
  %s11 = inlined_call_operand.vmem [shape: f32[8,8,2], index: 11, kind: output, shape index: {}]
  %s12 = sld [smem:[#allocation0]]
  $region66: #{tpu_custom_call.1} parent=0
    _
  %s14 = ssub.s32 1, %s12
  %s15 = scalar_select 0, %s14, %s12
  $region1: #{tpu_custom_call.1} parent=0
    #allocation6 [shape = 'u8[65536]{0}', space=vmem, size = 0x10000, scoped, tag = 'input window, operand 4, single buffered']
    #allocation7 [shape = 's32[1]{0}', space=sflag, size = 0x4, scoped, tag = 'scoped memory for tpu_custom_call.1']
    #allocation8 [shape = 'u8[2048]{0}', space=vmem, size = 0x800, scoped, tag = 'input window, operand 5, single buffered']
    #allocation9 [shape = 's32[1]{0}', space=sflag, size = 0x4, scoped, tag = 'scoped memory for tpu_custom_call.1']
    %16 = vsyncpa [#allocation7], 0
    %17 = vsyncpa [#allocation9], 0
    // Predicated region
    $region2: #{tpu_custom_call.1} parent=1 // pred_check
      _
    $region3: #{tpu_custom_call.1} parent=1 // pred_check_branch
      %19 = sbr.rel (0) target = $region5
    $region4: #{tpu_custom_call.1} parent=1 // pred_region
      _
    $region5: #{tpu_custom_call.1} parent=1 // pred_fallthru
      _
    // Predicated region
    $region6: #{tpu_custom_call.1} parent=1 // pred_check
      _
    $region7: #{tpu_custom_call.1} parent=1 // pred_check_branch
      %21 = sbr.rel (0) target = $region9
    $region8: #{tpu_custom_call.1} parent=1 // pred_region
      _
    $region9: #{tpu_custom_call.1} parent=1 // pred_fallthru
      _
    // Predicated region
    $region10: #{tpu_custom_call.1} parent=1 // pred_check
      _
    $region11: #{tpu_custom_call.1} parent=1 // pred_check_branch
      %23 = sbr.rel (0) target = $region13
    $region12: #{tpu_custom_call.1} parent=1 // pred_region
      _
    $region13: #{tpu_custom_call.1} parent=1 // pred_fallthru
      _
    // Predicated region
    $region14: #{tpu_custom_call.1} parent=1 // pred_check
      _
    $region15: #{tpu_custom_call.1} parent=1 // pred_check_branch
      %25 = sbr.rel (0) target = $region17
    $region16: #{tpu_custom_call.1} parent=1 // pred_region
      _
    $region17: #{tpu_custom_call.1} parent=1 // pred_fallthru
      _
    // Predicated region
    $region18: #{tpu_custom_call.1} parent=1 // pred_check
      _
    $region19: #{tpu_custom_call.1} parent=1 // pred_check_branch
      %27 = sbr.rel (0) target = $region21
    $region20: #{tpu_custom_call.1} parent=1 // pred_region
      %s29 = ssub.s32 2048, 2048
      %30 = vsyncadd [#allocation7], %s29
      %s31 = sshll.u32 [#allocation6], 4
      %s32 = int_to_ptr.vmem [resolvable:$true] %s31
      %37 = dma.hbm_to_vmem [thread:$0]  %s4, 2048, %s32, [#allocation7], 256, 256, 16
    $region21: #{tpu_custom_call.1} parent=1 // pred_fallthru
      _
    // Predicated region
    $region22: #{tpu_custom_call.1} parent=1 // pred_check
      _
    $region23: #{tpu_custom_call.1} parent=1 // pred_check_branch
      %39 = sbr.rel (0) target = $region25
    $region24: #{tpu_custom_call.1} parent=1 // pred_region
      %s41 = ssub.s32 64, 64
      %42 = vsyncadd [#allocation9], %s41
      %s44 = sshll.u32 [#allocation8], 4
      %s45 = int_to_ptr.vmem [resolvable:$true] %s44
      %47 = dma.hbm_to_vmem [thread:$0]  %s5, 64, %s45, [#allocation9]
    $region25: #{tpu_custom_call.1} parent=1 // pred_fallthru
      _
    // Predicated region
    $region26: #{tpu_custom_call.1} parent=1 // pred_check
      _
    $region27: #{tpu_custom_call.1} parent=1 // pred_check_branch
      %49 = sbr.rel (0) target = $region29
    $region28: #{tpu_custom_call.1} parent=1 // pred_region
      _
    $region29: #{tpu_custom_call.1} parent=1 // pred_fallthru
      _
    // Predicated region
    $region30: #{tpu_custom_call.1} parent=1 // pred_check
      _
    $region31: #{tpu_custom_call.1} parent=1 // pred_check_branch
      %51 = sbr.rel (0) target = $region33
    $region32: #{tpu_custom_call.1} parent=1 // pred_region
      _
    $region33: #{tpu_custom_call.1} parent=1 // pred_fallthru
      _
    // Predicated region
    $region34: #{tpu_custom_call.1} parent=1 // pred_check
      _
    $region35: #{tpu_custom_call.1} parent=1 // pred_check_branch
      %53 = sbr.rel (0) target = $region37
    $region36: #{tpu_custom_call.1} parent=1 // pred_region
      _
    $region37: #{tpu_custom_call.1} parent=1 // pred_fallthru
      _
    // Predicated region
    $region38: #{tpu_custom_call.1} parent=1 // pred_check
      _
    $region39: #{tpu_custom_call.1} parent=1 // pred_check_branch
      %55 = sbr.rel (0) target = $region41
    $region40: #{tpu_custom_call.1} parent=1 // pred_region
      _
    $region41: #{tpu_custom_call.1} parent=1 // pred_fallthru
      _
    // Predicated region
    $region42: #{tpu_custom_call.1} parent=1 // pred_check
      _
    $region43: #{tpu_custom_call.1} parent=1 // pred_check_branch
      %57 = sbr.rel (0) target = $region45
    $region44: #{tpu_custom_call.1} parent=1 // pred_region
      _
    $region45: #{tpu_custom_call.1} parent=1 // pred_fallthru
      _
    // Predicated region
    $region46: #{tpu_custom_call.1} parent=1 // pred_check
      _
    $region47: #{tpu_custom_call.1} parent=1 // pred_check_branch
      %59 = sbr.rel (0) target = $region49
    $region48: #{tpu_custom_call.1} parent=1 // pred_region
      %60 = dma.done [#allocation7], 2048
    $region49: #{tpu_custom_call.1} parent=1 // pred_fallthru
      _
    // Predicated region
    $region50: #{tpu_custom_call.1} parent=1 // pred_check
      _
    $region51: #{tpu_custom_call.1} parent=1 // pred_check_branch
      %62 = sbr.rel (0) target = $region53
    $region52: #{tpu_custom_call.1} parent=1 // pred_region
      %63 = dma.done [#allocation9], 64
    $region53: #{tpu_custom_call.1} parent=1 // pred_fallthru
      _
    %p65 = scmp.eq.s32.totalorder 0, 0
    // Predicated region
    $region54: #{tpu_custom_call.1} parent=1 // pred_check
      %p66 = pneg %p65
    $region55: #{tpu_custom_call.1} parent=1 // pred_check_branch
      %68 = sbr.rel (%p66) target = $region57
    $region56: #{tpu_custom_call.1} parent=1 // pred_region
      %69 = vst [vmem:[#allocation4] sm:$0xff] 0.0
      %70 = vst [vmem:[#allocation5] sm:$0xff] 0.0
    $region57: #{tpu_custom_call.1} parent=1 // pred_fallthru
      _
    %v71 = vld [vmem:[%s0] sm:$0xff]
    %v72 = vld [vmem:[%s0 + $0x8] sm:$0xff]
    %v73 = vld [vmem:[%s0 + $0x10] sm:$0xff]
    %v74 = vld [vmem:[%s0 + $0x18] sm:$0xff]
    %v75 = vld [vmem:[%s0 + $0x20] sm:$0xff]
    %v76 = vld [vmem:[%s0 + $0x28] sm:$0xff]
    %v77 = vld [vmem:[%s0 + $0x30] sm:$0xff]
    %v78 = vld [vmem:[%s0 + $0x38] sm:$0xff]
    %vm79 = vcmp.ne.f32.partialorder %v71, %v71
    %vm80 = vcmp.ne.f32.partialorder %v72, %v72
    %vm81 = vcmp.ne.f32.partialorder %v73, %v73
    %vm82 = vcmp.ne.f32.partialorder %v74, %v74
    %vm83 = vcmp.ne.f32.partialorder %v75, %v75
    %vm84 = vcmp.ne.f32.partialorder %v76, %v76
    %vm85 = vcmp.ne.f32.partialorder %v77, %v77
    %vm86 = vcmp.ne.f32.partialorder %v78, %v78
    %v87 = vsel %vm79, 0.0, %v71
    %v88 = vsel %vm80, 0.0, %v72
    %v89 = vsel %vm81, 0.0, %v73
    %v90 = vsel %vm82, 0.0, %v74
    %v91 = vsel %vm83, 0.0, %v75
    %v92 = vsel %vm84, 0.0, %v76
    %v93 = vsel %vm85, 0.0, %v77
    %v94 = vsel %vm86, 0.0, %v78
    %v95 = vld [vmem:[%s1] sm:$0x1f]
    %v96 = vld [vmem:[%s2] sm:$0x1]
    %v98 = vlaneseq
    %v99 = vshrl.u32 %v98, 7
    %v100 = vsub.s32 0, %v99
    %v101 = vrot.slane %v96, %v100
    %vm103 = vcmask 39936
    %v105 = vsel %vm103, %v87, 0
    %v108 = vsel %vm103, %v88, 0
    %v111 = vsel %vm103, %v89, 0
    %v114 = vsel %vm103, %v90, 0
    %v117 = vsel %vm103, %v91, 0
    %v120 = vsel %vm103, %v92, 0
    %v123 = vsel %vm103, %v93, 0
    %v126 = vsel %vm103, %v94, 0
    %vm128 = vcmask 1044480
    %v130 = vsel %vm128, %v95, 0
    %132 = vmatprep.subr.mxu0 0.0
    %133 = vmatpush1.msra.mxu0 %v130
    %134 = vmatprep.subr.mxu0 0.0
    %135 = vmatpush1.msra.mxu0 0.0
    %136 = vmatprep.subr.mxu0 0.0
    %137 = vmatpush1.msra.mxu0 0.0
    %138 = vmatprep.subr.mxu0 0.0
    %139 = vmatpush1.msra.mxu0 0.0
    %140 = vmatprep.subr.mxu0 0.0
    %141 = vmatpush1.msra.mxu0 0.0
    %142 = vmatprep.subr.mxu0 0.0
    %143 = vmatpush1.msra.mxu0 0.0
    %144 = vmatprep.subr.mxu0 0.0
    %145 = vmatpush1.msra.mxu0 0.0
    %146 = vmatprep.subr.mxu0 0.0
    %147 = vmatpush1.msra.mxu0 0.0
    %148 = vmatprep.subr.mxu0 0.0
    %149 = vmatpush1.msra.mxu0 0.0
    %150 = vmatprep.subr.mxu0 0.0
    %151 = vmatpush1.msra.mxu0 0.0
    %152 = vmatprep.subr.mxu0 0.0
    %153 = vmatpush1.msra.mxu0 0.0
    %154 = vmatprep.subr.mxu0 0.0
    %155 = vmatpush1.msra.mxu0 0.0
    %156 = vmatprep.subr.mxu0 0.0
    %157 = vmatpush1.msra.mxu0 0.0
    %158 = vmatprep.subr.mxu0 0.0
    %159 = vmatpush1.msra.mxu0 0.0
    %160 = vmatprep.subr.mxu0 0.0
    %161 = vmatpush1.msra.mxu0 0.0
    %162 = vmatprep.subr.mxu0 0.0
    %163 = vmatpush1.msra.mxu0 0.0
    %164 = vmatprep.subr.mxu0 0.0
    %165 = vmatpush1.msra.mxu0 0.0
    %166 = vmatprep.subr.mxu0 0.0
    %167 = vmatpush1.msra.mxu0 0.0
    %168 = vmatprep.subr.mxu0 0.0
    %169 = vmatpush1.msra.mxu0 0.0
    %170 = vmatprep.subr.mxu0 0.0
    %171 = vmatpush1.msra.mxu0 0.0
    %172 = vmatprep.subr.mxu0 0.0
    %173 = vmatpush1.msra.mxu0 0.0
    %174 = vmatprep.subr.mxu0 0.0
    %175 = vmatpush1.msra.mxu0 0.0
    %176 = vmatprep.subr.mxu0 0.0
    %177 = vmatpush1.msra.mxu0 0.0
    %178 = vmatprep.subr.mxu0 0.0
    %179 = vmatpush1.msra.mxu0 0.0
    %180 = vmatprep.subr.mxu0 0.0
    %181 = vmatpush1.msra.mxu0 0.0
    %182 = vmatprep.subr.mxu0 0.0
    %183 = vmatpush1.msra.mxu0 0.0
    %184 = vmatprep.subr.mxu0 0.0
    %185 = vmatpush1.msra.mxu0 0.0
    %186 = vmatprep.subr.mxu0 0.0
    %187 = vmatpush1.msra.mxu0 0.0
    %188 = vmatprep.subr.mxu0 0.0
    %189 = vmatpush1.msra.mxu0 0.0
    %190 = vmatprep.subr.mxu0 0.0
    %191 = vmatpush1.msra.mxu0 0.0
    %192 = vmatprep.subr.mxu0 0.0
    %193 = vmatpush1.msra.mxu0 0.0
    %194 = vmatprep.subr.mxu0 0.0
    %195 = vmatpush1.msra.mxu0 0.0
    %196 = vmatprep.mubr.f32.mxu0 0.0
    %197 = vmatmul.mubr.f32.gmra.mrb[0].mxu0 %v105
    %v198 = vpop.f32.mrb[0].mxu0
    %v199 = vadd.f32 %v101, %v198
    %v200 = vpop.f32.mrb[0].mxu0
    %201 = vmatprep.mubr.f32.mxu0 0.0
    %202 = vmatmul.mubr.f32.gmra.mrb[0].mxu0 %v108
    %v203 = vpop.f32.mrb[0].mxu0
    %v204 = vadd.f32 %v101, %v203
    %v205 = vpop.f32.mrb[0].mxu0
    %206 = vmatprep.mubr.f32.mxu0 0.0
    %207 = vmatmul.mubr.f32.gmra.mrb[0].mxu0 %v111
    %v208 = vpop.f32.mrb[0].mxu0
    %v209 = vadd.f32 %v101, %v208
    %v210 = vpop.f32.mrb[0].mxu0
    %211 = vmatprep.mubr.f32.mxu0 0.0
    %212 = vmatmul.mubr.f32.gmra.mrb[0].mxu0 %v114
    %v213 = vpop.f32.mrb[0].mxu0
    %v214 = vadd.f32 %v101, %v213
    %v215 = vpop.f32.mrb[0].mxu0
    %216 = vmatprep.mubr.f32.mxu0 0.0
    %217 = vmatmul.mubr.f32.gmra.mrb[0].mxu0 %v117
    %v218 = vpop.f32.mrb[0].mxu0
    %v219 = vadd.f32 %v101, %v218
    %v220 = vpop.f32.mrb[0].mxu0
    %221 = vmatprep.mubr.f32.mxu0 0.0
    %222 = vmatmul.mubr.f32.gmra.mrb[0].mxu0 %v120
    %v223 = vpop.f32.mrb[0].mxu0
    %v224 = vadd.f32 %v101, %v223
    %v225 = vpop.f32.mrb[0].mxu0
    %226 = vmatprep.mubr.f32.mxu0 0.0
    %227 = vmatmul.mubr.f32.gmra.mrb[0].mxu0 %v123
    %v228 = vpop.f32.mrb[0].mxu0
    %v229 = vadd.f32 %v101, %v228
    %v230 = vpop.f32.mrb[0].mxu0
    %231 = vmatprep.mubr.f32.mxu0 0.0
    %232 = vmatmul.mubr.f32.gmra.mrb[0].mxu0 %v126
    %v233 = vpop.f32.mrb[0].mxu0
    %v234 = vadd.f32 %v101, %v233
    %v235 = vpop.f32.mrb[0].mxu0
    %236 = vdwg.mxu0
    %v237 = vmax.f32 %v199, 0.0
    %v238 = vmax.f32 %v204, 0.0
    %v239 = vmax.f32 %v209, 0.0
    %v240 = vmax.f32 %v214, 0.0
    %v241 = vmax.f32 %v219, 0.0
    %v242 = vmax.f32 %v224, 0.0
    %v243 = vmax.f32 %v229, 0.0
    %v244 = vmax.f32 %v234, 0.0
    %v245 = vld [vmem:[%s3] sm:$0xf]
    %246 = vset.pattern.permute.xlu0 5
    %247 = vperm.xlu0 %246, %v87
    %v248 = vpop.permute.xlu0 %247
    %250 = vset.pattern.permute.xlu0 5
    %251 = vperm.xlu0 %250, %v88
    %v252 = vpop.permute.xlu0 %251
    %254 = vset.pattern.permute.xlu0 5
    %255 = vperm.xlu0 %254, %v89
    %v256 = vpop.permute.xlu0 %255
    %258 = vset.pattern.permute.xlu0 5
    %259 = vperm.xlu0 %258, %v90
    %v260 = vpop.permute.xlu0 %259
    %262 = vset.pattern.permute.xlu0 5
    %263 = vperm.xlu0 %262, %v91
    %v264 = vpop.permute.xlu0 %263
    %266 = vset.pattern.permute.xlu0 5
    %267 = vperm.xlu0 %266, %v92
    %v268 = vpop.permute.xlu0 %267
    %270 = vset.pattern.permute.xlu0 5
    %271 = vperm.xlu0 %270, %v93
    %v272 = vpop.permute.xlu0 %271
    %274 = vset.pattern.permute.xlu0 5
    %275 = vperm.xlu0 %274, %v94
    %v276 = vpop.permute.xlu0 %275
    %v279 = vlaneseq
    %v280 = vshrl.u32 %v279, 7
    %v281 = vsub.s32 0, %v280
    %v282 = vrot.slane %v245, %v281
    %v283 = vlaneseq
    %v284 = vshrl.u32 %v283, 7
    %v285 = vsub.s32 1, %v284
    %v286 = vrot.slane %v245, %v285
    %v287 = vlaneseq
    %v288 = vshrl.u32 %v287, 7
    %v289 = vsub.s32 2, %v288
    %v290 = vrot.slane %v245, %v289
    %v291 = vlaneseq
    %v292 = vshrl.u32 %v291, 7
    %v293 = vsub.s32 3, %v292
    %v294 = vrot.slane %v245, %v293
    %v299 = vmul.f32 %v248, %v282
    %v300 = vmul.f32 %v248, %v286
    %v301 = vmul.f32 %v248, %v290
    %v302 = vmul.f32 %v248, %v294
    %v303 = vmul.f32 %v252, %v282
    %v304 = vmul.f32 %v252, %v286
    %v305 = vmul.f32 %v252, %v290
    %v306 = vmul.f32 %v252, %v294
    %v307 = vmul.f32 %v256, %v282
    %v308 = vmul.f32 %v256, %v286
    %v309 = vmul.f32 %v256, %v290
    %v310 = vmul.f32 %v256, %v294
    %v311 = vmul.f32 %v260, %v282
    %v312 = vmul.f32 %v260, %v286
    %v313 = vmul.f32 %v260, %v290
    %v314 = vmul.f32 %v260, %v294
    %v315 = vmul.f32 %v264, %v282
    %v316 = vmul.f32 %v264, %v286
    %v317 = vmul.f32 %v264, %v290
    %v318 = vmul.f32 %v264, %v294
    %v319 = vmul.f32 %v268, %v282
    %v320 = vmul.f32 %v268, %v286
    %v321 = vmul.f32 %v268, %v290
    %v322 = vmul.f32 %v268, %v294
    %v323 = vmul.f32 %v272, %v282
    %v324 = vmul.f32 %v272, %v286
    %v325 = vmul.f32 %v272, %v290
    %v326 = vmul.f32 %v272, %v294
    %v327 = vmul.f32 %v276, %v282
    %v328 = vmul.f32 %v276, %v286
    %v329 = vmul.f32 %v276, %v290
    %v330 = vmul.f32 %v276, %v294
    %v331 = vpack.c.bf16 %v238, %v237
    %v332 = vpack.c.bf16 %v240, %v239
    %v333 = vpack.c.bf16 %v242, %v241
    %v334 = vpack.c.bf16 %v244, %v243
    %v335 = vld [vmem:[#allocation6] sm:$0xff]
    %v336 = vld [vmem:[#allocation6 + $0x8] sm:$0xff]
    %v337 = vld [vmem:[#allocation6 + $0x10] sm:$0xff]
    %v338 = vld [vmem:[#allocation6 + $0x18] sm:$0xff]
    %v339 = vld [vmem:[#allocation6 + $0x20] sm:$0xff]
    %v340 = vld [vmem:[#allocation6 + $0x28] sm:$0xff]
    %v341 = vld [vmem:[#allocation6 + $0x30] sm:$0xff]
    %v342 = vld [vmem:[#allocation6 + $0x38] sm:$0xff]
    %v343 = vld [vmem:[#allocation6 + $0x40] sm:$0xff]
    %v344 = vld [vmem:[#allocation6 + $0x48] sm:$0xff]
    %v345 = vld [vmem:[#allocation6 + $0x50] sm:$0xff]
    %v346 = vld [vmem:[#allocation6 + $0x58] sm:$0xff]
    %v347 = vld [vmem:[#allocation6 + $0x60] sm:$0xff]
    %v348 = vld [vmem:[#allocation6 + $0x68] sm:$0xff]
    %v349 = vld [vmem:[#allocation6 + $0x70] sm:$0xff]
    %v350 = vld [vmem:[#allocation6 + $0x78] sm:$0xff]
    %v367 = vunpack.c.l.b16 %v335
    %v368 = vunpack.c.h.b16 %v335
    %v369 = vunpack.c.l.b16 %v336
    %v370 = vunpack.c.h.b16 %v336
    %v371 = vunpack.c.l.b16 %v337
    %v372 = vunpack.c.h.b16 %v337
    %v373 = vunpack.c.l.b16 %v338
    %v374 = vunpack.c.h.b16 %v338
    %v375 = vunpack.c.l.b16 %v339
    %v376 = vunpack.c.h.b16 %v339
    %v377 = vunpack.c.l.b16 %v340
    %v378 = vunpack.c.h.b16 %v340
    %v379 = vunpack.c.l.b16 %v341
    %v380 = vunpack.c.h.b16 %v341
    %v381 = vunpack.c.l.b16 %v342
    %v382 = vunpack.c.h.b16 %v342
    %v383 = vunpack.c.l.b16 %v343
    %v384 = vunpack.c.h.b16 %v343
    %v385 = vunpack.c.l.b16 %v344
    %v386 = vunpack.c.h.b16 %v344
    %v387 = vunpack.c.l.b16 %v345
    %v388 = vunpack.c.h.b16 %v345
    %v389 = vunpack.c.l.b16 %v346
    %v390 = vunpack.c.h.b16 %v346
    %v391 = vunpack.c.l.b16 %v347
    %v392 = vunpack.c.h.b16 %v347
    %v393 = vunpack.c.l.b16 %v348
    %v394 = vunpack.c.h.b16 %v348
    %v395 = vunpack.c.l.b16 %v349
    %v396 = vunpack.c.h.b16 %v349
    %v397 = vunpack.c.l.b16 %v350
    %v398 = vunpack.c.h.b16 %v350
    %v399 = vpack.c.b16 %v371, %v367
    %v400 = vpack.c.b16 %v372, %v368
    %v401 = vpack.c.b16 %v373, %v369
    %v402 = vpack.c.b16 %v374, %v370
    %v403 = vpack.c.b16 %v379, %v375
    %v404 = vpack.c.b16 %v380, %v376
    %v405 = vpack.c.b16 %v381, %v377
    %v406 = vpack.c.b16 %v382, %v378
    %v407 = vpack.c.b16 %v387, %v383
    %v408 = vpack.c.b16 %v388, %v384
    %v409 = vpack.c.b16 %v389, %v385
    %v410 = vpack.c.b16 %v390, %v386
    %v411 = vpack.c.b16 %v395, %v391
    %v412 = vpack.c.b16 %v396, %v392
    %v413 = vpack.c.b16 %v397, %v393
    %v414 = vpack.c.b16 %v398, %v394
    %vm431 = vcmask 523264
    %v433 = vsel %vm431, %v331, 0
    %v436 = vsel %vm431, %v332, 0
    %v439 = vsel %vm431, %v333, 0
    %v442 = vsel %vm431, %v334, 0
    %444 = vmatprep.subr.bf16.mxu0 %v400
    %445 = vmatpush1.bf16.msra.mxu0 %v399
    %446 = vmatprep.subr.bf16.mxu0 %v404
    %447 = vmatpush1.bf16.msra.mxu0 %v403
    %448 = vmatprep.subr.bf16.mxu0 %v408
    %449 = vmatpush1.bf16.msra.mxu0 %v407
    %450 = vmatprep.subr.bf16.mxu0 %v412
    %451 = vmatpush1.bf16.msra.mxu0 %v411
    %452 = vmatprep.subr.bf16.mxu0 0
    %453 = vmatpush1.bf16.msra.mxu0 0
    %454 = vmatprep.subr.bf16.mxu0 0
    %455 = vmatpush1.bf16.msra.mxu0 0
    %456 = vmatprep.subr.bf16.mxu0 0
    %457 = vmatpush1.bf16.msra.mxu0 0
    %458 = vmatprep.subr.bf16.mxu0 0
    %459 = vmatpush1.bf16.msra.mxu0 0
    %460 = vmatprep.subr.bf16.mxu0 0
    %461 = vmatpush1.bf16.msra.mxu0 0
    %462 = vmatprep.subr.bf16.mxu0 0
    %463 = vmatpush1.bf16.msra.mxu0 0
    %464 = vmatprep.subr.bf16.mxu0 0
    %465 = vmatpush1.bf16.msra.mxu0 0
    %466 = vmatprep.subr.bf16.mxu0 0
    %467 = vmatpush1.bf16.msra.mxu0 0
    %468 = vmatprep.subr.bf16.mxu0 0
    %469 = vmatpush1.bf16.msra.mxu0 0
    %470 = vmatprep.subr.bf16.mxu0 0
    %471 = vmatpush1.bf16.msra.mxu0 0
    %472 = vmatprep.subr.bf16.mxu0 0
    %473 = vmatpush1.bf16.msra.mxu0 0
    %474 = vmatprep.subr.bf16.mxu0 0
    %475 = vmatpush1.bf16.msra.mxu0 0
    %476 = vmatprep.mubr.bf16.mxu0 0
    %477 = vmatmul.mubr.bf16.gmra.mrb[0].mxu0 %v433
    %v478 = vpop.f32.mrb[0].mxu0
    %v479 = vadd.f32 0.0, %v478
    %v480 = vpop.f32.mrb[0].mxu0
    %v481 = vadd.f32 0.0, %v480
    %v482 = vpop.f32.mrb[0].mxu0
    %v483 = vadd.f32 0.0, %v482
    %v484 = vpop.f32.mrb[0].mxu0
    %v485 = vadd.f32 0.0, %v484
    %486 = vmatprep.mubr.bf16.mxu0 0
    %487 = vmatmul.mubr.bf16.gmra.mrb[0].mxu0 %v436
    %v488 = vpop.f32.mrb[0].mxu0
    %v489 = vadd.f32 0.0, %v488
    %v490 = vpop.f32.mrb[0].mxu0
    %v491 = vadd.f32 0.0, %v490
    %v492 = vpop.f32.mrb[0].mxu0
    %v493 = vadd.f32 0.0, %v492
    %v494 = vpop.f32.mrb[0].mxu0
    %v495 = vadd.f32 0.0, %v494
    %496 = vmatprep.mubr.bf16.mxu0 0
    %497 = vmatmul.mubr.bf16.gmra.mrb[0].mxu0 %v439
    %v498 = vpop.f32.mrb[0].mxu0
    %v499 = vadd.f32 0.0, %v498
    %v500 = vpop.f32.mrb[0].mxu0
    %v501 = vadd.f32 0.0, %v500
    %v502 = vpop.f32.mrb[0].mxu0
    %v503 = vadd.f32 0.0, %v502
    %v504 = vpop.f32.mrb[0].mxu0
    %v505 = vadd.f32 0.0, %v504
    %506 = vmatprep.mubr.bf16.mxu0 0
    %507 = vmatmul.mubr.bf16.gmra.mrb[0].mxu0 %v442
    %v508 = vpop.f32.mrb[0].mxu0
    %v509 = vadd.f32 0.0, %v508
    %v510 = vpop.f32.mrb[0].mxu0
    %v511 = vadd.f32 0.0, %v510
    %v512 = vpop.f32.mrb[0].mxu0
    %v513 = vadd.f32 0.0, %v512
    %v514 = vpop.f32.mrb[0].mxu0
    %v515 = vadd.f32 0.0, %v514
    %516 = vdwg.mxu0
    %517 = vmatprep.subr.bf16.mxu0 %v402
    %518 = vmatpush1.bf16.msra.mxu0 %v401
    %519 = vmatprep.subr.bf16.mxu0 %v406
    %520 = vmatpush1.bf16.msra.mxu0 %v405
    %521 = vmatprep.subr.bf16.mxu0 %v410
    %522 = vmatpush1.bf16.msra.mxu0 %v409
    %523 = vmatprep.subr.bf16.mxu0 %v414
    %524 = vmatpush1.bf16.msra.mxu0 %v413
    %525 = vmatprep.subr.bf16.mxu0 0
    %526 = vmatpush1.bf16.msra.mxu0 0
    %527 = vmatprep.subr.bf16.mxu0 0
    %528 = vmatpush1.bf16.msra.mxu0 0
    %529 = vmatprep.subr.bf16.mxu0 0
    %530 = vmatpush1.bf16.msra.mxu0 0
    %531 = vmatprep.subr.bf16.mxu0 0
    %532 = vmatpush1.bf16.msra.mxu0 0
    %533 = vmatprep.subr.bf16.mxu0 0
    %534 = vmatpush1.bf16.msra.mxu0 0
    %535 = vmatprep.subr.bf16.mxu0 0
    %536 = vmatpush1.bf16.msra.mxu0 0
    %537 = vmatprep.subr.bf16.mxu0 0
    %538 = vmatpush1.bf16.msra.mxu0 0
    %539 = vmatprep.subr.bf16.mxu0 0
    %540 = vmatpush1.bf16.msra.mxu0 0
    %541 = vmatprep.subr.bf16.mxu0 0
    %542 = vmatpush1.bf16.msra.mxu0 0
    %543 = vmatprep.subr.bf16.mxu0 0
    %544 = vmatpush1.bf16.msra.mxu0 0
    %545 = vmatprep.subr.bf16.mxu0 0
    %546 = vmatpush1.bf16.msra.mxu0 0
    %547 = vmatprep.subr.bf16.mxu0 0
    %548 = vmatpush1.bf16.msra.mxu0 0
    %549 = vmatprep.mubr.bf16.mxu0 0
    %550 = vmatmul.mubr.bf16.gmra.mrb[0].mxu0 %v433
    %v551 = vpop.f32.mrb[0].mxu0
    %v552 = vadd.f32 0.0, %v551
    %v553 = vpop.f32.mrb[0].mxu0
    %v554 = vadd.f32 0.0, %v553
    %v555 = vpop.f32.mrb[0].mxu0
    %v556 = vadd.f32 0.0, %v555
    %v557 = vpop.f32.mrb[0].mxu0
    %v558 = vadd.f32 0.0, %v557
    %559 = vmatprep.mubr.bf16.mxu0 0
    %560 = vmatmul.mubr.bf16.gmra.mrb[0].mxu0 %v436
    %v561 = vpop.f32.mrb[0].mxu0
    %v562 = vadd.f32 0.0, %v561
    %v563 = vpop.f32.mrb[0].mxu0
    %v564 = vadd.f32 0.0, %v563
    %v565 = vpop.f32.mrb[0].mxu0
    %v566 = vadd.f32 0.0, %v565
    %v567 = vpop.f32.mrb[0].mxu0
    %v568 = vadd.f32 0.0, %v567
    %569 = vmatprep.mubr.bf16.mxu0 0
    %570 = vmatmul.mubr.bf16.gmra.mrb[0].mxu0 %v439
    %v571 = vpop.f32.mrb[0].mxu0
    %v572 = vadd.f32 0.0, %v571
    %v573 = vpop.f32.mrb[0].mxu0
    %v574 = vadd.f32 0.0, %v573
    %v575 = vpop.f32.mrb[0].mxu0
    %v576 = vadd.f32 0.0, %v575
    %v577 = vpop.f32.mrb[0].mxu0
    %v578 = vadd.f32 0.0, %v577
    %579 = vmatprep.mubr.bf16.mxu0 0
    %580 = vmatmul.mubr.bf16.gmra.mrb[0].mxu0 %v442
    %v581 = vpop.f32.mrb[0].mxu0
    %v582 = vadd.f32 0.0, %v581
    %v583 = vpop.f32.mrb[0].mxu0
    %v584 = vadd.f32 0.0, %v583
    %v585 = vpop.f32.mrb[0].mxu0
    %v586 = vadd.f32 0.0, %v585
    %v587 = vpop.f32.mrb[0].mxu0
    %v588 = vadd.f32 0.0, %v587
    %589 = vdwg.mxu0
    %v590 = vadd.f32 %v299, %v479
    %v591 = vadd.f32 %v300, %v481
    %v592 = vadd.f32 %v301, %v552
    %v593 = vadd.f32 %v302, %v554
    %v594 = vadd.f32 %v303, %v483
    %v595 = vadd.f32 %v304, %v485
    %v596 = vadd.f32 %v305, %v556
    %v597 = vadd.f32 %v306, %v558
    %v598 = vadd.f32 %v307, %v489
    %v599 = vadd.f32 %v308, %v491
    %v600 = vadd.f32 %v309, %v562
    %v601 = vadd.f32 %v310, %v564
    %v602 = vadd.f32 %v311, %v493
    %v603 = vadd.f32 %v312, %v495
    %v604 = vadd.f32 %v313, %v566
    %v605 = vadd.f32 %v314, %v568
    %v606 = vadd.f32 %v315, %v499
    %v607 = vadd.f32 %v316, %v501
    %v608 = vadd.f32 %v317, %v572
    %v609 = vadd.f32 %v318, %v574
    %v610 = vadd.f32 %v319, %v503
    %v611 = vadd.f32 %v320, %v505
    %v612 = vadd.f32 %v321, %v576
    %v613 = vadd.f32 %v322, %v578
    %v614 = vadd.f32 %v323, %v509
    %v615 = vadd.f32 %v324, %v511
    %v616 = vadd.f32 %v325, %v582
    %v617 = vadd.f32 %v326, %v584
    %v618 = vadd.f32 %v327, %v513
    %v619 = vadd.f32 %v328, %v515
    %v620 = vadd.f32 %v329, %v586
    %v621 = vadd.f32 %v330, %v588
    %v622 = vld [vmem:[#allocation8] sm:$0xf]
    %v624 = vlaneseq
    %v625 = vshrl.u32 %v624, 7
    %v626 = vsub.s32 0, %v625
    %v627 = vrot.slane %v622, %v626
    %v628 = vlaneseq
    %v629 = vshrl.u32 %v628, 7
    %v630 = vsub.s32 1, %v629
    %v631 = vrot.slane %v622, %v630
    %v632 = vlaneseq
    %v633 = vshrl.u32 %v632, 7
    %v634 = vsub.s32 2, %v633
    %v635 = vrot.slane %v622, %v634
    %v636 = vlaneseq
    %v637 = vshrl.u32 %v636, 7
    %v638 = vsub.s32 3, %v637
    %v639 = vrot.slane %v622, %v638
    %v644 = vadd.f32 %v590, %v627
    %v645 = vadd.f32 %v591, %v631
    %v646 = vadd.f32 %v592, %v635
    %v647 = vadd.f32 %v593, %v639
    %v648 = vadd.f32 %v594, %v627
    %v649 = vadd.f32 %v595, %v631
    %v650 = vadd.f32 %v596, %v635
    %v651 = vadd.f32 %v597, %v639
    %v652 = vadd.f32 %v598, %v627
    %v653 = vadd.f32 %v599, %v631
    %v654 = vadd.f32 %v600, %v635
    %v655 = vadd.f32 %v601, %v639
    %v656 = vadd.f32 %v602, %v627
    %v657 = vadd.f32 %v603, %v631
    %v658 = vadd.f32 %v604, %v635
    %v659 = vadd.f32 %v605, %v639
    %v660 = vadd.f32 %v606, %v627
    %v661 = vadd.f32 %v607, %v631
    %v662 = vadd.f32 %v608, %v635
    %v663 = vadd.f32 %v609, %v639
    %v664 = vadd.f32 %v610, %v627
    %v665 = vadd.f32 %v611, %v631
    %v666 = vadd.f32 %v612, %v635
    %v667 = vadd.f32 %v613, %v639
    %v668 = vadd.f32 %v614, %v627
    %v669 = vadd.f32 %v615, %v631
    %v670 = vadd.f32 %v616, %v635
    %v671 = vadd.f32 %v617, %v639
    %v672 = vadd.f32 %v618, %v627
    %v673 = vadd.f32 %v619, %v631
    %v674 = vadd.f32 %v620, %v635
    %v675 = vadd.f32 %v621, %v639
    %676 = vst [vmem:[#allocation2] sm:$0xff] %v644
    %677 = vst [vmem:[#allocation2 + $0x8] sm:$0xff] %v645
    %678 = vst [vmem:[#allocation2 + $0x10] sm:$0xff] %v646
    %679 = vst [vmem:[#allocation2 + $0x18] sm:$0xff] %v647
    %680 = vst [vmem:[#allocation2 + $0x20] sm:$0xff] %v648
    %681 = vst [vmem:[#allocation2 + $0x28] sm:$0xff] %v649
    %682 = vst [vmem:[#allocation2 + $0x30] sm:$0xff] %v650
    %683 = vst [vmem:[#allocation2 + $0x38] sm:$0xff] %v651
    %684 = vst [vmem:[#allocation2 + $0x40] sm:$0xff] %v652
    %685 = vst [vmem:[#allocation2 + $0x48] sm:$0xff] %v653
    %686 = vst [vmem:[#allocation2 + $0x50] sm:$0xff] %v654
    %687 = vst [vmem:[#allocation2 + $0x58] sm:$0xff] %v655
    %688 = vst [vmem:[#allocation2 + $0x60] sm:$0xff] %v656
    %689 = vst [vmem:[#allocation2 + $0x68] sm:$0xff] %v657
    %690 = vst [vmem:[#allocation2 + $0x70] sm:$0xff] %v658
    %691 = vst [vmem:[#allocation2 + $0x78] sm:$0xff] %v659
    %692 = vst [vmem:[#allocation2 + $0x80] sm:$0xff] %v660
    %693 = vst [vmem:[#allocation2 + $0x88] sm:$0xff] %v661
    %694 = vst [vmem:[#allocation2 + $0x90] sm:$0xff] %v662
    %695 = vst [vmem:[#allocation2 + $0x98] sm:$0xff] %v663
    %696 = vst [vmem:[#allocation2 + $0xa0] sm:$0xff] %v664
    %697 = vst [vmem:[#allocation2 + $0xa8] sm:$0xff] %v665
    %698 = vst [vmem:[#allocation2 + $0xb0] sm:$0xff] %v666
    %699 = vst [vmem:[#allocation2 + $0xb8] sm:$0xff] %v667
    %700 = vst [vmem:[#allocation2 + $0xc0] sm:$0xff] %v668
    %701 = vst [vmem:[#allocation2 + $0xc8] sm:$0xff] %v669
    %702 = vst [vmem:[#allocation2 + $0xd0] sm:$0xff] %v670
    %703 = vst [vmem:[#allocation2 + $0xd8] sm:$0xff] %v671
    %704 = vst [vmem:[#allocation2 + $0xe0] sm:$0xff] %v672
    %705 = vst [vmem:[#allocation2 + $0xe8] sm:$0xff] %v673
    %706 = vst [vmem:[#allocation2 + $0xf0] sm:$0xff] %v674
    %707 = vst [vmem:[#allocation2 + $0xf8] sm:$0xff] %v675
    %v708 = vld [vmem:[#allocation4] sm:$0xff]
    %v709 = vld [vmem:[#allocation5] sm:$0xff]
    %v710 = vld [vmem:[#allocation2] sm:$0xff]
    %v711 = vld [vmem:[#allocation2 + $0x8] sm:$0xff]
    %v712 = vld [vmem:[#allocation2 + $0x10] sm:$0xff]
    %v713 = vld [vmem:[#allocation2 + $0x18] sm:$0xff]
    %v714 = vpack.c.bf16 %v708, %v708
    %v715 = vld [vmem:[%s6] sm:$0xff]
    %v716 = vld [vmem:[%s6 + $0x8] sm:$0xff]
    %v717 = vld [vmem:[%s6 + $0x10] sm:$0xff]
    %v718 = vld [vmem:[%s6 + $0x18] sm:$0xff]
    %v719 = vld [vmem:[%s6 + $0x20] sm:$0xff]
    %v720 = vld [vmem:[%s6 + $0x28] sm:$0xff]
    %v721 = vld [vmem:[%s6 + $0x30] sm:$0xff]
    %v722 = vld [vmem:[%s6 + $0x38] sm:$0xff]
    %v723 = vld [vmem:[%s6 + $0x40] sm:$0xff]
    %v724 = vld [vmem:[%s6 + $0x48] sm:$0xff]
    %v725 = vld [vmem:[%s6 + $0x50] sm:$0xff]
    %v726 = vld [vmem:[%s6 + $0x58] sm:$0xff]
    %v727 = vld [vmem:[%s6 + $0x60] sm:$0xff]
    %v728 = vld [vmem:[%s6 + $0x68] sm:$0xff]
    %v729 = vld [vmem:[%s6 + $0x70] sm:$0xff]
    %v730 = vld [vmem:[%s6 + $0x78] sm:$0xff]
    %v731 = vld [vmem:[%s6 + $0x80] sm:$0xff]
    %v732 = vld [vmem:[%s6 + $0x88] sm:$0xff]
    %v733 = vld [vmem:[%s6 + $0x90] sm:$0xff]
    %v734 = vld [vmem:[%s6 + $0x98] sm:$0xff]
    %v735 = vld [vmem:[%s6 + $0xa0] sm:$0xff]
    %v736 = vld [vmem:[%s6 + $0xa8] sm:$0xff]
    %v737 = vld [vmem:[%s6 + $0xb0] sm:$0xff]
    %v738 = vld [vmem:[%s6 + $0xb8] sm:$0xff]
    %v739 = vld [vmem:[%s6 + $0xc0] sm:$0xff]
    %v740 = vld [vmem:[%s6 + $0xc8] sm:$0xff]
    %v741 = vld [vmem:[%s6 + $0xd0] sm:$0xff]
    %v742 = vld [vmem:[%s6 + $0xd8] sm:$0xff]
    %v743 = vld [vmem:[%s6 + $0xe0] sm:$0xff]
    %v744 = vld [vmem:[%s6 + $0xe8] sm:$0xff]
    %v745 = vld [vmem:[%s6 + $0xf0] sm:$0xff]
    %v746 = vld [vmem:[%s6 + $0xf8] sm:$0xff]
    %v779 = vunpack.c.l.b16 %v715
    %v780 = vunpack.c.h.b16 %v715
    %v781 = vunpack.c.l.b16 %v716
    %v782 = vunpack.c.h.b16 %v716
    %v783 = vunpack.c.l.b16 %v717
    %v784 = vunpack.c.h.b16 %v717
    %v785 = vunpack.c.l.b16 %v718
    %v786 = vunpack.c.h.b16 %v718
    %v787 = vunpack.c.l.b16 %v719
    %v788 = vunpack.c.h.b16 %v719
    %v789 = vunpack.c.l.b16 %v720
    %v790 = vunpack.c.h.b16 %v720
    %v791 = vunpack.c.l.b16 %v721
    %v792 = vunpack.c.h.b16 %v721
    %v793 = vunpack.c.l.b16 %v722
    %v794 = vunpack.c.h.b16 %v722
    %v795 = vunpack.c.l.b16 %v723
    %v796 = vunpack.c.h.b16 %v723
    %v797 = vunpack.c.l.b16 %v724
    %v798 = vunpack.c.h.b16 %v724
    %v799 = vunpack.c.l.b16 %v725
    %v800 = vunpack.c.h.b16 %v725
    %v801 = vunpack.c.l.b16 %v726
    %v802 = vunpack.c.h.b16 %v726
    %v803 = vunpack.c.l.b16 %v727
    %v804 = vunpack.c.h.b16 %v727
    %v805 = vunpack.c.l.b16 %v728
    %v806 = vunpack.c.h.b16 %v728
    %v807 = vunpack.c.l.b16 %v729
    %v808 = vunpack.c.h.b16 %v729
    %v809 = vunpack.c.l.b16 %v730
    %v810 = vunpack.c.h.b16 %v730
    %v811 = vunpack.c.l.b16 %v731
    %v812 = vunpack.c.h.b16 %v731
    %v813 = vunpack.c.l.b16 %v732
    %v814 = vunpack.c.h.b16 %v732
    %v815 = vunpack.c.l.b16 %v733
    %v816 = vunpack.c.h.b16 %v733
    %v817 = vunpack.c.l.b16 %v734
    %v818 = vunpack.c.h.b16 %v734
    %v819 = vunpack.c.l.b16 %v735
    %v820 = vunpack.c.h.b16 %v735
    %v821 = vunpack.c.l.b16 %v736
    %v822 = vunpack.c.h.b16 %v736
    %v823 = vunpack.c.l.b16 %v737
    %v824 = vunpack.c.h.b16 %v737
    %v825 = vunpack.c.l.b16 %v738
    %v826 = vunpack.c.h.b16 %v738
    %v827 = vunpack.c.l.b16 %v739
    %v828 = vunpack.c.h.b16 %v739
    %v829 = vunpack.c.l.b16 %v740
    %v830 = vunpack.c.h.b16 %v740
    %v831 = vunpack.c.l.b16 %v741
    %v832 = vunpack.c.h.b16 %v741
    %v833 = vunpack.c.l.b16 %v742
    %v834 = vunpack.c.h.b16 %v742
    %v835 = vunpack.c.l.b16 %v743
    %v836 = vunpack.c.h.b16 %v743
    %v837 = vunpack.c.l.b16 %v744
    %v838 = vunpack.c.h.b16 %v744
    %v839 = vunpack.c.l.b16 %v745
    %v840 = vunpack.c.h.b16 %v745
    %v841 = vunpack.c.l.b16 %v746
    %v842 = vunpack.c.h.b16 %v746
    %v843 = vpack.c.b16 %v783, %v779
    %v844 = vpack.c.b16 %v784, %v780
    %v845 = vpack.c.b16 %v785, %v781
    %v846 = vpack.c.b16 %v786, %v782
    %v847 = vpack.c.b16 %v791, %v787
    %v848 = vpack.c.b16 %v792, %v788
    %v849 = vpack.c.b16 %v793, %v789
    %v850 = vpack.c.b16 %v794, %v790
    %v851 = vpack.c.b16 %v799, %v795
    %v852 = vpack.c.b16 %v800, %v796
    %v853 = vpack.c.b16 %v801, %v797
    %v854 = vpack.c.b16 %v802, %v798
    %v855 = vpack.c.b16 %v807, %v803
    %v856 = vpack.c.b16 %v808, %v804
    %v857 = vpack.c.b16 %v809, %v805
    %v858 = vpack.c.b16 %v810, %v806
    %v859 = vpack.c.b16 %v815, %v811
    %v860 = vpack.c.b16 %v816, %v812
    %v861 = vpack.c.b16 %v817, %v813
    %v862 = vpack.c.b16 %v818, %v814
    %v863 = vpack.c.b16 %v823, %v819
    %v864 = vpack.c.b16 %v824, %v820
    %v865 = vpack.c.b16 %v825, %v821
    %v866 = vpack.c.b16 %v826, %v822
    %v867 = vpack.c.b16 %v831, %v827
    %v868 = vpack.c.b16 %v832, %v828
    %v869 = vpack.c.b16 %v833, %v829
    %v870 = vpack.c.b16 %v834, %v830
    %v871 = vpack.c.b16 %v839, %v835
    %v872 = vpack.c.b16 %v840, %v836
    %v873 = vpack.c.b16 %v841, %v837
    %v874 = vpack.c.b16 %v842, %v838
    %907 = vmatprep.subr.bf16.mxu0 %v844
    %908 = vmatpush1.bf16.msra.mxu0 %v843
    %909 = vmatprep.subr.bf16.mxu0 %v848
    %910 = vmatpush1.bf16.msra.mxu0 %v847
    %911 = vmatprep.subr.bf16.mxu0 %v852
    %912 = vmatpush1.bf16.msra.mxu0 %v851
    %913 = vmatprep.subr.bf16.mxu0 %v856
    %914 = vmatpush1.bf16.msra.mxu0 %v855
    %915 = vmatprep.subr.bf16.mxu0 %v860
    %916 = vmatpush1.bf16.msra.mxu0 %v859
    %917 = vmatprep.subr.bf16.mxu0 %v864
    %918 = vmatpush1.bf16.msra.mxu0 %v863
    %919 = vmatprep.subr.bf16.mxu0 %v868
    %920 = vmatpush1.bf16.msra.mxu0 %v867
    %921 = vmatprep.subr.bf16.mxu0 %v872
    %922 = vmatpush1.bf16.msra.mxu0 %v871
    %923 = vmatprep.subr.bf16.mxu0 0
    %924 = vmatpush1.bf16.msra.mxu0 0
    %925 = vmatprep.subr.bf16.mxu0 0
    %926 = vmatpush1.bf16.msra.mxu0 0
    %927 = vmatprep.subr.bf16.mxu0 0
    %928 = vmatpush1.bf16.msra.mxu0 0
    %929 = vmatprep.subr.bf16.mxu0 0
    %930 = vmatpush1.bf16.msra.mxu0 0
    %931 = vmatprep.subr.bf16.mxu0 0
    %932 = vmatpush1.bf16.msra.mxu0 0
    %933 = vmatprep.subr.bf16.mxu0 0
    %934 = vmatpush1.bf16.msra.mxu0 0
    %935 = vmatprep.subr.bf16.mxu0 0
    %936 = vmatpush1.bf16.msra.mxu0 0
    %937 = vmatprep.subr.bf16.mxu0 0
    %938 = vmatpush1.bf16.msra.mxu0 0
    %939 = vmatprep.mubr.bf16.mxu0 0
    %940 = vmatmul.mubr.bf16.gmra.mrb[0].mxu0 %v714
    %v941 = vpop.f32.mrb[0].mxu0
    %v942 = vadd.f32 0.0, %v941
    %v943 = vpop.f32.mrb[0].mxu0
    %v944 = vadd.f32 0.0, %v943
    %v945 = vpop.f32.mrb[0].mxu0
    %v946 = vpop.f32.mrb[0].mxu0
    %947 = vdwg.mxu0
    %948 = vmatprep.subr.bf16.mxu0 %v846
    %949 = vmatpush1.bf16.msra.mxu0 %v845
    %950 = vmatprep.subr.bf16.mxu0 %v850
    %951 = vmatpush1.bf16.msra.mxu0 %v849
    %952 = vmatprep.subr.bf16.mxu0 %v854
    %953 = vmatpush1.bf16.msra.mxu0 %v853
    %954 = vmatprep.subr.bf16.mxu0 %v858
    %955 = vmatpush1.bf16.msra.mxu0 %v857
    %956 = vmatprep.subr.bf16.mxu0 %v862
    %957 = vmatpush1.bf16.msra.mxu0 %v861
    %958 = vmatprep.subr.bf16.mxu0 %v866
    %959 = vmatpush1.bf16.msra.mxu0 %v865
    %960 = vmatprep.subr.bf16.mxu0 %v870
    %961 = vmatpush1.bf16.msra.mxu0 %v869
    %962 = vmatprep.subr.bf16.mxu0 %v874
    %963 = vmatpush1.bf16.msra.mxu0 %v873
    %964 = vmatprep.subr.bf16.mxu0 0
    %965 = vmatpush1.bf16.msra.mxu0 0
    %966 = vmatprep.subr.bf16.mxu0 0
    %967 = vmatpush1.bf16.msra.mxu0 0
    %968 = vmatprep.subr.bf16.mxu0 0
    %969 = vmatpush1.bf16.msra.mxu0 0
    %970 = vmatprep.subr.bf16.mxu0 0
    %971 = vmatpush1.bf16.msra.mxu0 0
    %972 = vmatprep.subr.bf16.mxu0 0
    %973 = vmatpush1.bf16.msra.mxu0 0
    %974 = vmatprep.subr.bf16.mxu0 0
    %975 = vmatpush1.bf16.msra.mxu0 0
    %976 = vmatprep.subr.bf16.mxu0 0
    %977 = vmatpush1.bf16.msra.mxu0 0
    %978 = vmatprep.subr.bf16.mxu0 0
    %979 = vmatpush1.bf16.msra.mxu0 0
    %980 = vmatprep.mubr.bf16.mxu0 0
    %981 = vmatmul.mubr.bf16.gmra.mrb[0].mxu0 %v714
    %v982 = vpop.f32.mrb[0].mxu0
    %v983 = vadd.f32 0.0, %v982
    %v984 = vpop.f32.mrb[0].mxu0
    %v985 = vadd.f32 0.0, %v984
    %v986 = vpop.f32.mrb[0].mxu0
    %v987 = vpop.f32.mrb[0].mxu0
    %988 = vdwg.mxu0
    %v989 = vadd.f32 %v710, %v942
    %v990 = vadd.f32 %v711, %v944
    %v991 = vadd.f32 %v712, %v983
    %v992 = vadd.f32 %v713, %v985
    %v993 = vxor.u32 %v989, 2147483648
    %v994 = vxor.u32 %v990, 2147483648
    %v995 = vxor.u32 %v991, 2147483648
    %v996 = vmul.f32 %v993, 1.442695
    %v997 = vpow.pop %v996
    %v998 = vmul.f32 %v994, 1.442695
    %v999 = vpow.pop %v998
    %v1000 = vmul.f32 %v995, 1.442695
    %v1001 = vpow.pop %v1000
    %v1002 = vadd.f32 %v997, 1.0
    %v1003 = vadd.f32 %v999, 1.0
    %v1004 = vadd.f32 %v1001, 1.0
    %v1005 = vrcp.pop %v1002
    %v1006 = vmul.f32 1.0, %v1005
    %v1007 = vrcp.pop %v1003
    %v1008 = vmul.f32 1.0, %v1007
    %v1009 = vrcp.pop %v1004
    %v1010 = vmul.f32 1.0, %v1009
    %v1011 = vtanh.pop %v992
    %v1012 = vmul.f32 %v1008, %v709
    %v1013 = vmul.f32 %v1006, %v1011
    %v1014 = vadd.f32 %v1012, %v1013
    %v1015 = vtanh.pop %v1014
    %v1016 = vmul.f32 %v1010, %v1015
    %1017 = vst [vmem:[#allocation3] sm:$0xff] %v1016
    %s1018 = scalar_lea.vmem [#allocation2], 32
    %v1019 = vld [vmem:[%s1018] sm:$0xff]
    %v1020 = vld [vmem:[%s1018 + $0x8] sm:$0xff]
    %v1021 = vld [vmem:[%s1018 + $0x10] sm:$0xff]
    %v1022 = vld [vmem:[%s1018 + $0x18] sm:$0xff]
    %v1023 = vpack.c.bf16 %v1016, %v1016
    %v1024 = vld [vmem:[%s6] sm:$0xff]
    %v1025 = vld [vmem:[%s6 + $0x8] sm:$0xff]
    %v1026 = vld [vmem:[%s6 + $0x10] sm:$0xff]
    %v1027 = vld [vmem:[%s6 + $0x18] sm:$0xff]
    %v1028 = vld [vmem:[%s6 + $0x20] sm:$0xff]
    %v1029 = vld [vmem:[%s6 + $0x28] sm:$0xff]
    %v1030 = vld [vmem:[%s6 + $0x30] sm:$0xff]
    %v1031 = vld [vmem:[%s6 + $0x38] sm:$0xff]
    %v1032 = vld [vmem:[%s6 + $0x40] sm:$0xff]
    %v1033 = vld [vmem:[%s6 + $0x48] sm:$0xff]
    %v1034 = vld [vmem:[%s6 + $0x50] sm:$0xff]
    %v1035 = vld [vmem:[%s6 + $0x58] sm:$0xff]
    %v1036 = vld [vmem:[%s6 + $0x60] sm:$0xff]
    %v1037 = vld [vmem:[%s6 + $0x68] sm:$0xff]
    %v1038 = vld [vmem:[%s6 + $0x70] sm:$0xff]
    %v1039 = vld [vmem:[%s6 + $0x78] sm:$0xff]
    %v1040 = vld [vmem:[%s6 + $0x80] sm:$0xff]
    %v1041 = vld [vmem:[%s6 + $0x88] sm:$0xff]
    %v1042 = vld [vmem:[%s6 + $0x90] sm:$0xff]
    %v1043 = vld [vmem:[%s6 + $0x98] sm:$0xff]
    %v1044 = vld [vmem:[%s6 + $0xa0] sm:$0xff]
    %v1045 = vld [vmem:[%s6 + $0xa8] sm:$0xff]
    %v1046 = vld [vmem:[%s6 + $0xb0] sm:$0xff]
    %v1047 = vld [vmem:[%s6 + $0xb8] sm:$0xff]
    %v1048 = vld [vmem:[%s6 + $0xc0] sm:$0xff]
    %v1049 = vld [vmem:[%s6 + $0xc8] sm:$0xff]
    %v1050 = vld [vmem:[%s6 + $0xd0] sm:$0xff]
    %v1051 = vld [vmem:[%s6 + $0xd8] sm:$0xff]
    %v1052 = vld [vmem:[%s6 + $0xe0] sm:$0xff]
    %v1053 = vld [vmem:[%s6 + $0xe8] sm:$0xff]
    %v1054 = vld [vmem:[%s6 + $0xf0] sm:$0xff]
    %v1055 = vld [vmem:[%s6 + $0xf8] sm:$0xff]
    %v1088 = vunpack.c.l.b16 %v1024
    %v1089 = vunpack.c.h.b16 %v1024
    %v1090 = vunpack.c.l.b16 %v1025
    %v1091 = vunpack.c.h.b16 %v1025
    %v1092 = vunpack.c.l.b16 %v1026
    %v1093 = vunpack.c.h.b16 %v1026
    %v1094 = vunpack.c.l.b16 %v1027
    %v1095 = vunpack.c.h.b16 %v1027
    %v1096 = vunpack.c.l.b16 %v1028
    %v1097 = vunpack.c.h.b16 %v1028
    %v1098 = vunpack.c.l.b16 %v1029
    %v1099 = vunpack.c.h.b16 %v1029
    %v1100 = vunpack.c.l.b16 %v1030
    %v1101 = vunpack.c.h.b16 %v1030
    %v1102 = vunpack.c.l.b16 %v1031
    %v1103 = vunpack.c.h.b16 %v1031
    %v1104 = vunpack.c.l.b16 %v1032
    %v1105 = vunpack.c.h.b16 %v1032
    %v1106 = vunpack.c.l.b16 %v1033
    %v1107 = vunpack.c.h.b16 %v1033
    %v1108 = vunpack.c.l.b16 %v1034
    %v1109 = vunpack.c.h.b16 %v1034
    %v1110 = vunpack.c.l.b16 %v1035
    %v1111 = vunpack.c.h.b16 %v1035
    %v1112 = vunpack.c.l.b16 %v1036
    %v1113 = vunpack.c.h.b16 %v1036
    %v1114 = vunpack.c.l.b16 %v1037
    %v1115 = vunpack.c.h.b16 %v1037
    %v1116 = vunpack.c.l.b16 %v1038
    %v1117 = vunpack.c.h.b16 %v1038
    %v1118 = vunpack.c.l.b16 %v1039
    %v1119 = vunpack.c.h.b16 %v1039
    %v1120 = vunpack.c.l.b16 %v1040
    %v1121 = vunpack.c.h.b16 %v1040
    %v1122 = vunpack.c.l.b16 %v1041
    %v1123 = vunpack.c.h.b16 %v1041
    %v1124 = vunpack.c.l.b16 %v1042
    %v1125 = vunpack.c.h.b16 %v1042
    %v1126 = vunpack.c.l.b16 %v1043
    %v1127 = vunpack.c.h.b16 %v1043
    %v1128 = vunpack.c.l.b16 %v1044
    %v1129 = vunpack.c.h.b16 %v1044
    %v1130 = vunpack.c.l.b16 %v1045
    %v1131 = vunpack.c.h.b16 %v1045
    %v1132 = vunpack.c.l.b16 %v1046
    %v1133 = vunpack.c.h.b16 %v1046
    %v1134 = vunpack.c.l.b16 %v1047
    %v1135 = vunpack.c.h.b16 %v1047
    %v1136 = vunpack.c.l.b16 %v1048
    %v1137 = vunpack.c.h.b16 %v1048
    %v1138 = vunpack.c.l.b16 %v1049
    %v1139 = vunpack.c.h.b16 %v1049
    %v1140 = vunpack.c.l.b16 %v1050
    %v1141 = vunpack.c.h.b16 %v1050
    %v1142 = vunpack.c.l.b16 %v1051
    %v1143 = vunpack.c.h.b16 %v1051
    %v1144 = vunpack.c.l.b16 %v1052
    %v1145 = vunpack.c.h.b16 %v1052
    %v1146 = vunpack.c.l.b16 %v1053
    %v1147 = vunpack.c.h.b16 %v1053
    %v1148 = vunpack.c.l.b16 %v1054
    %v1149 = vunpack.c.h.b16 %v1054
    %v1150 = vunpack.c.l.b16 %v1055
    %v1151 = vunpack.c.h.b16 %v1055
    %v1152 = vpack.c.b16 %v1092, %v1088
    %v1153 = vpack.c.b16 %v1093, %v1089
    %v1154 = vpack.c.b16 %v1094, %v1090
    %v1155 = vpack.c.b16 %v1095, %v1091
    %v1156 = vpack.c.b16 %v1100, %v1096
    %v1157 = vpack.c.b16 %v1101, %v1097
    %v1158 = vpack.c.b16 %v1102, %v1098
    %v1159 = vpack.c.b16 %v1103, %v1099
    %v1160 = vpack.c.b16 %v1108, %v1104
    %v1161 = vpack.c.b16 %v1109, %v1105
    %v1162 = vpack.c.b16 %v1110, %v1106
    %v1163 = vpack.c.b16 %v1111, %v1107
    %v1164 = vpack.c.b16 %v1116, %v1112
    %v1165 = vpack.c.b16 %v1117, %v1113
    %v1166 = vpack.c.b16 %v1118, %v1114
    %v1167 = vpack.c.b16 %v1119, %v1115
    %v1168 = vpack.c.b16 %v1124, %v1120
    %v1169 = vpack.c.b16 %v1125, %v1121
    %v1170 = vpack.c.b16 %v1126, %v1122
    %v1171 = vpack.c.b16 %v1127, %v1123
    %v1172 = vpack.c.b16 %v1132, %v1128
    %v1173 = vpack.c.b16 %v1133, %v1129
    %v1174 = vpack.c.b16 %v1134, %v1130
    %v1175 = vpack.c.b16 %v1135, %v1131
    %v1176 = vpack.c.b16 %v1140, %v1136
    %v1177 = vpack.c.b16 %v1141, %v1137
    %v1178 = vpack.c.b16 %v1142, %v1138
    %v1179 = vpack.c.b16 %v1143, %v1139
    %v1180 = vpack.c.b16 %v1148, %v1144
    %v1181 = vpack.c.b16 %v1149, %v1145
    %v1182 = vpack.c.b16 %v1150, %v1146
    %v1183 = vpack.c.b16 %v1151, %v1147
    %1216 = vmatprep.subr.bf16.mxu0 %v1153
    %1217 = vmatpush1.bf16.msra.mxu0 %v1152
    %1218 = vmatprep.subr.bf16.mxu0 %v1157
    %1219 = vmatpush1.bf16.msra.mxu0 %v1156
    %1220 = vmatprep.subr.bf16.mxu0 %v1161
    %1221 = vmatpush1.bf16.msra.mxu0 %v1160
    %1222 = vmatprep.subr.bf16.mxu0 %v1165
    %1223 = vmatpush1.bf16.msra.mxu0 %v1164
    %1224 = vmatprep.subr.bf16.mxu0 %v1169
    %1225 = vmatpush1.bf16.msra.mxu0 %v1168
    %1226 = vmatprep.subr.bf16.mxu0 %v1173
    %1227 = vmatpush1.bf16.msra.mxu0 %v1172
    %1228 = vmatprep.subr.bf16.mxu0 %v1177
    %1229 = vmatpush1.bf16.msra.mxu0 %v1176
    %1230 = vmatprep.subr.bf16.mxu0 %v1181
    %1231 = vmatpush1.bf16.msra.mxu0 %v1180
    %1232 = vmatprep.subr.bf16.mxu0 0
    %1233 = vmatpush1.bf16.msra.mxu0 0
    %1234 = vmatprep.subr.bf16.mxu0 0
    %1235 = vmatpush1.bf16.msra.mxu0 0
    %1236 = vmatprep.subr.bf16.mxu0 0
    %1237 = vmatpush1.bf16.msra.mxu0 0
    %1238 = vmatprep.subr.bf16.mxu0 0
    %1239 = vmatpush1.bf16.msra.mxu0 0
    %1240 = vmatprep.subr.bf16.mxu0 0
    %1241 = vmatpush1.bf16.msra.mxu0 0
    %1242 = vmatprep.subr.bf16.mxu0 0
    %1243 = vmatpush1.bf16.msra.mxu0 0
    %1244 = vmatprep.subr.bf16.mxu0 0
    %1245 = vmatpush1.bf16.msra.mxu0 0
    %1246 = vmatprep.subr.bf16.mxu0 0
    %1247 = vmatpush1.bf16.msra.mxu0 0
    %1248 = vmatprep.mubr.bf16.mxu0 0
    %1249 = vmatmul.mubr.bf16.gmra.mrb[0].mxu0 %v1023
    %v1250 = vpop.f32.mrb[0].mxu0
    %v1251 = vadd.f32 0.0, %v1250
    %v1252 = vpop.f32.mrb[0].mxu0
    %v1253 = vadd.f32 0.0, %v1252
    %v1254 = vpop.f32.mrb[0].mxu0
    %v1255 = vpop.f32.mrb[0].mxu0
    %1256 = vdwg.mxu0
    %1257 = vmatprep.subr.bf16.mxu0 %v1155
    %1258 = vmatpush1.bf16.msra.mxu0 %v1154
    %1259 = vmatprep.subr.bf16.mxu0 %v1159
    %1260 = vmatpush1.bf16.msra.mxu0 %v1158
    %1261 = vmatprep.subr.bf16.mxu0 %v1163
    %1262 = vmatpush1.bf16.msra.mxu0 %v1162
    %1263 = vmatprep.subr.bf16.mxu0 %v1167
    %1264 = vmatpush1.bf16.msra.mxu0 %v1166
    %1265 = vmatprep.subr.bf16.mxu0 %v1171
    %1266 = vmatpush1.bf16.msra.mxu0 %v1170
    %1267 = vmatprep.subr.bf16.mxu0 %v1175
    %1268 = vmatpush1.bf16.msra.mxu0 %v1174
    %1269 = vmatprep.subr.bf16.mxu0 %v1179
    %1270 = vmatpush1.bf16.msra.mxu0 %v1178
    %1271 = vmatprep.subr.bf16.mxu0 %v1183
    %1272 = vmatpush1.bf16.msra.mxu0 %v1182
    %1273 = vmatprep.subr.bf16.mxu0 0
    %1274 = vmatpush1.bf16.msra.mxu0 0
    %1275 = vmatprep.subr.bf16.mxu0 0
    %1276 = vmatpush1.bf16.msra.mxu0 0
    %1277 = vmatprep.subr.bf16.mxu0 0
    %1278 = vmatpush1.bf16.msra.mxu0 0
    %1279 = vmatprep.subr.bf16.mxu0 0
    %1280 = vmatpush1.bf16.msra.mxu0 0
    %1281 = vmatprep.subr.bf16.mxu0 0
    %1282 = vmatpush1.bf16.msra.mxu0 0
    %1283 = vmatprep.subr.bf16.mxu0 0
    %1284 = vmatpush1.bf16.msra.mxu0 0
    %1285 = vmatprep.subr.bf16.mxu0 0
    %1286 = vmatpush1.bf16.msra.mxu0 0
    %1287 = vmatprep.subr.bf16.mxu0 0
    %1288 = vmatpush1.bf16.msra.mxu0 0
    %1289 = vmatprep.mubr.bf16.mxu0 0
    %1290 = vmatmul.mubr.bf16.gmra.mrb[0].mxu0 %v1023
    %v1291 = vpop.f32.mrb[0].mxu0
    %v1292 = vadd.f32 0.0, %v1291
    %v1293 = vpop.f32.mrb[0].mxu0
    %v1294 = vadd.f32 0.0, %v1293
    %v1295 = vpop.f32.mrb[0].mxu0
    %v1296 = vpop.f32.mrb[0].mxu0
    %1297 = vdwg.mxu0
    %v1298 = vadd.f32 %v1019, %v1251
    %v1299 = vadd.f32 %v1020, %v1253
    %v1300 = vadd.f32 %v1021, %v1292
    %v1301 = vadd.f32 %v1022, %v1294
    %v1302 = vxor.u32 %v1298, 2147483648
    %v1303 = vxor.u32 %v1299, 2147483648
    %v1304 = vxor.u32 %v1300, 2147483648
    %v1305 = vmul.f32 %v1302, 1.442695
    %v1306 = vpow.pop %v1305
    %v1307 = vmul.f32 %v1303, 1.442695
    %v1308 = vpow.pop %v1307
    %v1309 = vmul.f32 %v1304, 1.442695
    %v1310 = vpow.pop %v1309
    %v1311 = vadd.f32 %v1306, 1.0
    %v1312 = vadd.f32 %v1308, 1.0
    %v1313 = vadd.f32 %v1310, 1.0
    %v1314 = vrcp.pop %v1311
    %v1315 = vmul.f32 1.0, %v1314
    %v1316 = vrcp.pop %v1312
    %v1317 = vmul.f32 1.0, %v1316
    %v1318 = vrcp.pop %v1313
    %v1319 = vmul.f32 1.0, %v1318
    %v1320 = vtanh.pop %v1301
    %v1321 = vmul.f32 %v1317, %v1014
    %v1322 = vmul.f32 %v1315, %v1320
    %v1323 = vadd.f32 %v1321, %v1322
    %v1324 = vtanh.pop %v1323
    %v1325 = vmul.f32 %v1319, %v1324
    %s1326 = scalar_lea.vmem [#allocation3], 8
    %1327 = vst [vmem:[%s1326] sm:$0xff] %v1325
    %s1328 = scalar_lea.vmem [#allocation2], 64
    %v1329 = vld [vmem:[%s1328] sm:$0xff]
    %v1330 = vld [vmem:[%s1328 + $0x8] sm:$0xff]
    %v1331 = vld [vmem:[%s1328 + $0x10] sm:$0xff]
    %v1332 = vld [vmem:[%s1328 + $0x18] sm:$0xff]
    %v1333 = vpack.c.bf16 %v1325, %v1325
    %v1334 = vld [vmem:[%s6] sm:$0xff]
    %v1335 = vld [vmem:[%s6 + $0x8] sm:$0xff]
    %v1336 = vld [vmem:[%s6 + $0x10] sm:$0xff]
    %v1337 = vld [vmem:[%s6 + $0x18] sm:$0xff]
    %v1338 = vld [vmem:[%s6 + $0x20] sm:$0xff]
    %v1339 = vld [vmem:[%s6 + $0x28] sm:$0xff]
    %v1340 = vld [vmem:[%s6 + $0x30] sm:$0xff]
    %v1341 = vld [vmem:[%s6 + $0x38] sm:$0xff]
    %v1342 = vld [vmem:[%s6 + $0x40] sm:$0xff]
    %v1343 = vld [vmem:[%s6 + $0x48] sm:$0xff]
    %v1344 = vld [vmem:[%s6 + $0x50] sm:$0xff]
    %v1345 = vld [vmem:[%s6 + $0x58] sm:$0xff]
    %v1346 = vld [vmem:[%s6 + $0x60] sm:$0xff]
    %v1347 = vld [vmem:[%s6 + $0x68] sm:$0xff]
    %v1348 = vld [vmem:[%s6 + $0x70] sm:$0xff]
    %v1349 = vld [vmem:[%s6 + $0x78] sm:$0xff]
    %v1350 = vld [vmem:[%s6 + $0x80] sm:$0xff]
    %v1351 = vld [vmem:[%s6 + $0x88] sm:$0xff]
    %v1352 = vld [vmem:[%s6 + $0x90] sm:$0xff]
    %v1353 = vld [vmem:[%s6 + $0x98] sm:$0xff]
    %v1354 = vld [vmem:[%s6 + $0xa0] sm:$0xff]
    %v1355 = vld [vmem:[%s6 + $0xa8] sm:$0xff]
    %v1356 = vld [vmem:[%s6 + $0xb0] sm:$0xff]
    %v1357 = vld [vmem:[%s6 + $0xb8] sm:$0xff]
    %v1358 = vld [vmem:[%s6 + $0xc0] sm:$0xff]
    %v1359 = vld [vmem:[%s6 + $0xc8] sm:$0xff]
    %v1360 = vld [vmem:[%s6 + $0xd0] sm:$0xff]
    %v1361 = vld [vmem:[%s6 + $0xd8] sm:$0xff]
    %v1362 = vld [vmem:[%s6 + $0xe0] sm:$0xff]
    %v1363 = vld [vmem:[%s6 + $0xe8] sm:$0xff]
    %v1364 = vld [vmem:[%s6 + $0xf0] sm:$0xff]
    %v1365 = vld [vmem:[%s6 + $0xf8] sm:$0xff]
    %v1398 = vunpack.c.l.b16 %v1334
    %v1399 = vunpack.c.h.b16 %v1334
    %v1400 = vunpack.c.l.b16 %v1335
    %v1401 = vunpack.c.h.b16 %v1335
    %v1402 = vunpack.c.l.b16 %v1336
    %v1403 = vunpack.c.h.b16 %v1336
    %v1404 = vunpack.c.l.b16 %v1337
    %v1405 = vunpack.c.h.b16 %v1337
    %v1406 = vunpack.c.l.b16 %v1338
    %v1407 = vunpack.c.h.b16 %v1338
    %v1408 = vunpack.c.l.b16 %v1339
    %v1409 = vunpack.c.h.b16 %v1339
    %v1410 = vunpack.c.l.b16 %v1340
    %v1411 = vunpack.c.h.b16 %v1340
    %v1412 = vunpack.c.l.b16 %v1341
    %v1413 = vunpack.c.h.b16 %v1341
    %v1414 = vunpack.c.l.b16 %v1342
    %v1415 = vunpack.c.h.b16 %v1342
    %v1416 = vunpack.c.l.b16 %v1343
    %v1417 = vunpack.c.h.b16 %v1343
    %v1418 = vunpack.c.l.b16 %v1344
    %v1419 = vunpack.c.h.b16 %v1344
    %v1420 = vunpack.c.l.b16 %v1345
    %v1421 = vunpack.c.h.b16 %v1345
    %v1422 = vunpack.c.l.b16 %v1346
    %v1423 = vunpack.c.h.b16 %v1346
    %v1424 = vunpack.c.l.b16 %v1347
    %v1425 = vunpack.c.h.b16 %v1347
    %v1426 = vunpack.c.l.b16 %v1348
    %v1427 = vunpack.c.h.b16 %v1348
    %v1428 = vunpack.c.l.b16 %v1349
    %v1429 = vunpack.c.h.b16 %v1349
    %v1430 = vunpack.c.l.b16 %v1350
    %v1431 = vunpack.c.h.b16 %v1350
    %v1432 = vunpack.c.l.b16 %v1351
    %v1433 = vunpack.c.h.b16 %v1351
    %v1434 = vunpack.c.l.b16 %v1352
    %v1435 = vunpack.c.h.b16 %v1352
    %v1436 = vunpack.c.l.b16 %v1353
    %v1437 = vunpack.c.h.b16 %v1353
    %v1438 = vunpack.c.l.b16 %v1354
    %v1439 = vunpack.c.h.b16 %v1354
    %v1440 = vunpack.c.l.b16 %v1355
    %v1441 = vunpack.c.h.b16 %v1355
    %v1442 = vunpack.c.l.b16 %v1356
    %v1443 = vunpack.c.h.b16 %v1356
    %v1444 = vunpack.c.l.b16 %v1357
    %v1445 = vunpack.c.h.b16 %v1357
    %v1446 = vunpack.c.l.b16 %v1358
    %v1447 = vunpack.c.h.b16 %v1358
    %v1448 = vunpack.c.l.b16 %v1359
    %v1449 = vunpack.c.h.b16 %v1359
    %v1450 = vunpack.c.l.b16 %v1360
    %v1451 = vunpack.c.h.b16 %v1360
    %v1452 = vunpack.c.l.b16 %v1361
    %v1453 = vunpack.c.h.b16 %v1361
    %v1454 = vunpack.c.l.b16 %v1362
    %v1455 = vunpack.c.h.b16 %v1362
    %v1456 = vunpack.c.l.b16 %v1363
    %v1457 = vunpack.c.h.b16 %v1363
    %v1458 = vunpack.c.l.b16 %v1364
    %v1459 = vunpack.c.h.b16 %v1364
    %v1460 = vunpack.c.l.b16 %v1365
    %v1461 = vunpack.c.h.b16 %v1365
    %v1462 = vpack.c.b16 %v1402, %v1398
    %v1463 = vpack.c.b16 %v1403, %v1399
    %v1464 = vpack.c.b16 %v1404, %v1400
    %v1465 = vpack.c.b16 %v1405, %v1401
    %v1466 = vpack.c.b16 %v1410, %v1406
    %v1467 = vpack.c.b16 %v1411, %v1407
    %v1468 = vpack.c.b16 %v1412, %v1408
    %v1469 = vpack.c.b16 %v1413, %v1409
    %v1470 = vpack.c.b16 %v1418, %v1414
    %v1471 = vpack.c.b16 %v1419, %v1415
    %v1472 = vpack.c.b16 %v1420, %v1416
    %v1473 = vpack.c.b16 %v1421, %v1417
    %v1474 = vpack.c.b16 %v1426, %v1422
    %v1475 = vpack.c.b16 %v1427, %v1423
    %v1476 = vpack.c.b16 %v1428, %v1424
    %v1477 = vpack.c.b16 %v1429, %v1425
    %v1478 = vpack.c.b16 %v1434, %v1430
    %v1479 = vpack.c.b16 %v1435, %v1431
    %v1480 = vpack.c.b16 %v1436, %v1432
    %v1481 = vpack.c.b16 %v1437, %v1433
    %v1482 = vpack.c.b16 %v1442, %v1438
    %v1483 = vpack.c.b16 %v1443, %v1439
    %v1484 = vpack.c.b16 %v1444, %v1440
    %v1485 = vpack.c.b16 %v1445, %v1441
    %v1486 = vpack.c.b16 %v1450, %v1446
    %v1487 = vpack.c.b16 %v1451, %v1447
    %v1488 = vpack.c.b16 %v1452, %v1448
    %v1489 = vpack.c.b16 %v1453, %v1449
    %v1490 = vpack.c.b16 %v1458, %v1454
    %v1491 = vpack.c.b16 %v1459, %v1455
    %v1492 = vpack.c.b16 %v1460, %v1456
    %v1493 = vpack.c.b16 %v1461, %v1457
    %1526 = vmatprep.subr.bf16.mxu0 %v1463
    %1527 = vmatpush1.bf16.msra.mxu0 %v1462
    %1528 = vmatprep.subr.bf16.mxu0 %v1467
    %1529 = vmatpush1.bf16.msra.mxu0 %v1466
    %1530 = vmatprep.subr.bf16.mxu0 %v1471
    %1531 = vmatpush1.bf16.msra.mxu0 %v1470
    %1532 = vmatprep.subr.bf16.mxu0 %v1475
    %1533 = vmatpush1.bf16.msra.mxu0 %v1474
    %1534 = vmatprep.subr.bf16.mxu0 %v1479
    %1535 = vmatpush1.bf16.msra.mxu0 %v1478
    %1536 = vmatprep.subr.bf16.mxu0 %v1483
    %1537 = vmatpush1.bf16.msra.mxu0 %v1482
    %1538 = vmatprep.subr.bf16.mxu0 %v1487
    %1539 = vmatpush1.bf16.msra.mxu0 %v1486
    %1540 = vmatprep.subr.bf16.mxu0 %v1491
    %1541 = vmatpush1.bf16.msra.mxu0 %v1490
    %1542 = vmatprep.subr.bf16.mxu0 0
    %1543 = vmatpush1.bf16.msra.mxu0 0
    %1544 = vmatprep.subr.bf16.mxu0 0
    %1545 = vmatpush1.bf16.msra.mxu0 0
    %1546 = vmatprep.subr.bf16.mxu0 0
    %1547 = vmatpush1.bf16.msra.mxu0 0
    %1548 = vmatprep.subr.bf16.mxu0 0
    %1549 = vmatpush1.bf16.msra.mxu0 0
    %1550 = vmatprep.subr.bf16.mxu0 0
    %1551 = vmatpush1.bf16.msra.mxu0 0
    %1552 = vmatprep.subr.bf16.mxu0 0
    %1553 = vmatpush1.bf16.msra.mxu0 0
    %1554 = vmatprep.subr.bf16.mxu0 0
    %1555 = vmatpush1.bf16.msra.mxu0 0
    %1556 = vmatprep.subr.bf16.mxu0 0
    %1557 = vmatpush1.bf16.msra.mxu0 0
    %1558 = vmatprep.mubr.bf16.mxu0 0
    %1559 = vmatmul.mubr.bf16.gmra.mrb[0].mxu0 %v1333
    %v1560 = vpop.f32.mrb[0].mxu0
    %v1561 = vadd.f32 0.0, %v1560
    %v1562 = vpop.f32.mrb[0].mxu0
    %v1563 = vadd.f32 0.0, %v1562
    %v1564 = vpop.f32.mrb[0].mxu0
    %v1565 = vpop.f32.mrb[0].mxu0
    %1566 = vdwg.mxu0
    %1567 = vmatprep.subr.bf16.mxu0 %v1465
    %1568 = vmatpush1.bf16.msra.mxu0 %v1464
    %1569 = vmatprep.subr.bf16.mxu0 %v1469
    %1570 = vmatpush1.bf16.msra.mxu0 %v1468
    %1571 = vmatprep.subr.bf16.mxu0 %v1473
    %1572 = vmatpush1.bf16.msra.mxu0 %v1472
    %1573 = vmatprep.subr.bf16.mxu0 %v1477
    %1574 = vmatpush1.bf16.msra.mxu0 %v1476
    %1575 = vmatprep.subr.bf16.mxu0 %v1481
    %1576 = vmatpush1.bf16.msra.mxu0 %v1480
    %1577 = vmatprep.subr.bf16.mxu0 %v1485
    %1578 = vmatpush1.bf16.msra.mxu0 %v1484
    %1579 = vmatprep.subr.bf16.mxu0 %v1489
    %1580 = vmatpush1.bf16.msra.mxu0 %v1488
    %1581 = vmatprep.subr.bf16.mxu0 %v1493
    %1582 = vmatpush1.bf16.msra.mxu0 %v1492
    %1583 = vmatprep.subr.bf16.mxu0 0
    %1584 = vmatpush1.bf16.msra.mxu0 0
    %1585 = vmatprep.subr.bf16.mxu0 0
    %1586 = vmatpush1.bf16.msra.mxu0 0
    %1587 = vmatprep.subr.bf16.mxu0 0
    %1588 = vmatpush1.bf16.msra.mxu0 0
    %1589 = vmatprep.subr.bf16.mxu0 0
    %1590 = vmatpush1.bf16.msra.mxu0 0
    %1591 = vmatprep.subr.bf16.mxu0 0
    %1592 = vmatpush1.bf16.msra.mxu0 0
    %1593 = vmatprep.subr.bf16.mxu0 0
    %1594 = vmatpush1.bf16.msra.mxu0 0
    %1595 = vmatprep.subr.bf16.mxu0 0
    %1596 = vmatpush1.bf16.msra.mxu0 0
    %1597 = vmatprep.subr.bf16.mxu0 0
    %1598 = vmatpush1.bf16.msra.mxu0 0
    %1599 = vmatprep.mubr.bf16.mxu0 0
    %1600 = vmatmul.mubr.bf16.gmra.mrb[0].mxu0 %v1333
    %v1601 = vpop.f32.mrb[0].mxu0
    %v1602 = vadd.f32 0.0, %v1601
    %v1603 = vpop.f32.mrb[0].mxu0
    %v1604 = vadd.f32 0.0, %v1603
    %v1605 = vpop.f32.mrb[0].mxu0
    %v1606 = vpop.f32.mrb[0].mxu0
    %1607 = vdwg.mxu0
    %v1608 = vadd.f32 %v1329, %v1561
    %v1609 = vadd.f32 %v1330, %v1563
    %v1610 = vadd.f32 %v1331, %v1602
    %v1611 = vadd.f32 %v1332, %v1604
    %v1612 = vxor.u32 %v1608, 2147483648
    %v1613 = vxor.u32 %v1609, 2147483648
    %v1614 = vxor.u32 %v1610, 2147483648
    %v1615 = vmul.f32 %v1612, 1.442695
    %v1616 = vpow.pop %v1615
    %v1617 = vmul.f32 %v1613, 1.442695
    %v1618 = vpow.pop %v1617
    %v1619 = vmul.f32 %v1614, 1.442695
    %v1620 = vpow.pop %v1619
    %v1621 = vadd.f32 %v1616, 1.0
    %v1622 = vadd.f32 %v1618, 1.0
    %v1623 = vadd.f32 %v1620, 1.0
    %v1624 = vrcp.pop %v1621
    %v1625 = vmul.f32 1.0, %v1624
    %v1626 = vrcp.pop %v1622
    %v1627 = vmul.f32 1.0, %v1626
    %v1628 = vrcp.pop %v1623
    %v1629 = vmul.f32 1.0, %v1628
    %v1630 = vtanh.pop %v1611
    %v1631 = vmul.f32 %v1627, %v1323
    %v1632 = vmul.f32 %v1625, %v1630
    %v1633 = vadd.f32 %v1631, %v1632
    %v1634 = vtanh.pop %v1633
    %v1635 = vmul.f32 %v1629, %v1634
    %s1636 = scalar_lea.vmem [#allocation3], 16
    %1637 = vst [vmem:[%s1636] sm:$0xff] %v1635
    %s1638 = scalar_lea.vmem [#allocation2], 96
    %v1639 = vld [vmem:[%s1638] sm:$0xff]
    %v1640 = vld [vmem:[%s1638 + $0x8] sm:$0xff]
    %v1641 = vld [vmem:[%s1638 + $0x10] sm:$0xff]
    %v1642 = vld [vmem:[%s1638 + $0x18] sm:$0xff]
    %v1643 = vpack.c.bf16 %v1635, %v1635
    %v1644 = vld [vmem:[%s6] sm:$0xff]
    %v1645 = vld [vmem:[%s6 + $0x8] sm:$0xff]
    %v1646 = vld [vmem:[%s6 + $0x10] sm:$0xff]
    %v1647 = vld [vmem:[%s6 + $0x18] sm:$0xff]
    %v1648 = vld [vmem:[%s6 + $0x20] sm:$0xff]
    %v1649 = vld [vmem:[%s6 + $0x28] sm:$0xff]
    %v1650 = vld [vmem:[%s6 + $0x30] sm:$0xff]
    %v1651 = vld [vmem:[%s6 + $0x38] sm:$0xff]
    %v1652 = vld [vmem:[%s6 + $0x40] sm:$0xff]
    %v1653 = vld [vmem:[%s6 + $0x48] sm:$0xff]
    %v1654 = vld [vmem:[%s6 + $0x50] sm:$0xff]
    %v1655 = vld [vmem:[%s6 + $0x58] sm:$0xff]
    %v1656 = vld [vmem:[%s6 + $0x60] sm:$0xff]
    %v1657 = vld [vmem:[%s6 + $0x68] sm:$0xff]
    %v1658 = vld [vmem:[%s6 + $0x70] sm:$0xff]
    %v1659 = vld [vmem:[%s6 + $0x78] sm:$0xff]
    %v1660 = vld [vmem:[%s6 + $0x80] sm:$0xff]
    %v1661 = vld [vmem:[%s6 + $0x88] sm:$0xff]
    %v1662 = vld [vmem:[%s6 + $0x90] sm:$0xff]
    %v1663 = vld [vmem:[%s6 + $0x98] sm:$0xff]
    %v1664 = vld [vmem:[%s6 + $0xa0] sm:$0xff]
    %v1665 = vld [vmem:[%s6 + $0xa8] sm:$0xff]
    %v1666 = vld [vmem:[%s6 + $0xb0] sm:$0xff]
    %v1667 = vld [vmem:[%s6 + $0xb8] sm:$0xff]
    %v1668 = vld [vmem:[%s6 + $0xc0] sm:$0xff]
    %v1669 = vld [vmem:[%s6 + $0xc8] sm:$0xff]
    %v1670 = vld [vmem:[%s6 + $0xd0] sm:$0xff]
    %v1671 = vld [vmem:[%s6 + $0xd8] sm:$0xff]
    %v1672 = vld [vmem:[%s6 + $0xe0] sm:$0xff]
    %v1673 = vld [vmem:[%s6 + $0xe8] sm:$0xff]
    %v1674 = vld [vmem:[%s6 + $0xf0] sm:$0xff]
    %v1675 = vld [vmem:[%s6 + $0xf8] sm:$0xff]
    %v1708 = vunpack.c.l.b16 %v1644
    %v1709 = vunpack.c.h.b16 %v1644
    %v1710 = vunpack.c.l.b16 %v1645
    %v1711 = vunpack.c.h.b16 %v1645
    %v1712 = vunpack.c.l.b16 %v1646
    %v1713 = vunpack.c.h.b16 %v1646
    %v1714 = vunpack.c.l.b16 %v1647
    %v1715 = vunpack.c.h.b16 %v1647
    %v1716 = vunpack.c.l.b16 %v1648
    %v1717 = vunpack.c.h.b16 %v1648
    %v1718 = vunpack.c.l.b16 %v1649
    %v1719 = vunpack.c.h.b16 %v1649
    %v1720 = vunpack.c.l.b16 %v1650
    %v1721 = vunpack.c.h.b16 %v1650
    %v1722 = vunpack.c.l.b16 %v1651
    %v1723 = vunpack.c.h.b16 %v1651
    %v1724 = vunpack.c.l.b16 %v1652
    %v1725 = vunpack.c.h.b16 %v1652
    %v1726 = vunpack.c.l.b16 %v1653
    %v1727 = vunpack.c.h.b16 %v1653
    %v1728 = vunpack.c.l.b16 %v1654
    %v1729 = vunpack.c.h.b16 %v1654
    %v1730 = vunpack.c.l.b16 %v1655
    %v1731 = vunpack.c.h.b16 %v1655
    %v1732 = vunpack.c.l.b16 %v1656
    %v1733 = vunpack.c.h.b16 %v1656
    %v1734 = vunpack.c.l.b16 %v1657
    %v1735 = vunpack.c.h.b16 %v1657
    %v1736 = vunpack.c.l.b16 %v1658
    %v1737 = vunpack.c.h.b16 %v1658
    %v1738 = vunpack.c.l.b16 %v1659
    %v1739 = vunpack.c.h.b16 %v1659
    %v1740 = vunpack.c.l.b16 %v1660
    %v1741 = vunpack.c.h.b16 %v1660
    %v1742 = vunpack.c.l.b16 %v1661
    %v1743 = vunpack.c.h.b16 %v1661
    %v1744 = vunpack.c.l.b16 %v1662
    %v1745 = vunpack.c.h.b16 %v1662
    %v1746 = vunpack.c.l.b16 %v1663
    %v1747 = vunpack.c.h.b16 %v1663
    %v1748 = vunpack.c.l.b16 %v1664
    %v1749 = vunpack.c.h.b16 %v1664
    %v1750 = vunpack.c.l.b16 %v1665
    %v1751 = vunpack.c.h.b16 %v1665
    %v1752 = vunpack.c.l.b16 %v1666
    %v1753 = vunpack.c.h.b16 %v1666
    %v1754 = vunpack.c.l.b16 %v1667
    %v1755 = vunpack.c.h.b16 %v1667
    %v1756 = vunpack.c.l.b16 %v1668
    %v1757 = vunpack.c.h.b16 %v1668
    %v1758 = vunpack.c.l.b16 %v1669
    %v1759 = vunpack.c.h.b16 %v1669
    %v1760 = vunpack.c.l.b16 %v1670
    %v1761 = vunpack.c.h.b16 %v1670
    %v1762 = vunpack.c.l.b16 %v1671
    %v1763 = vunpack.c.h.b16 %v1671
    %v1764 = vunpack.c.l.b16 %v1672
    %v1765 = vunpack.c.h.b16 %v1672
    %v1766 = vunpack.c.l.b16 %v1673
    %v1767 = vunpack.c.h.b16 %v1673
    %v1768 = vunpack.c.l.b16 %v1674
    %v1769 = vunpack.c.h.b16 %v1674
    %v1770 = vunpack.c.l.b16 %v1675
    %v1771 = vunpack.c.h.b16 %v1675
    %v1772 = vpack.c.b16 %v1712, %v1708
    %v1773 = vpack.c.b16 %v1713, %v1709
    %v1774 = vpack.c.b16 %v1714, %v1710
    %v1775 = vpack.c.b16 %v1715, %v1711
    %v1776 = vpack.c.b16 %v1720, %v1716
    %v1777 = vpack.c.b16 %v1721, %v1717
    %v1778 = vpack.c.b16 %v1722, %v1718
    %v1779 = vpack.c.b16 %v1723, %v1719
    %v1780 = vpack.c.b16 %v1728, %v1724
    %v1781 = vpack.c.b16 %v1729, %v1725
    %v1782 = vpack.c.b16 %v1730, %v1726
    %v1783 = vpack.c.b16 %v1731, %v1727
    %v1784 = vpack.c.b16 %v1736, %v1732
    %v1785 = vpack.c.b16 %v1737, %v1733
    %v1786 = vpack.c.b16 %v1738, %v1734
    %v1787 = vpack.c.b16 %v1739, %v1735
    %v1788 = vpack.c.b16 %v1744, %v1740
    %v1789 = vpack.c.b16 %v1745, %v1741
    %v1790 = vpack.c.b16 %v1746, %v1742
    %v1791 = vpack.c.b16 %v1747, %v1743
    %v1792 = vpack.c.b16 %v1752, %v1748
    %v1793 = vpack.c.b16 %v1753, %v1749
    %v1794 = vpack.c.b16 %v1754, %v1750
    %v1795 = vpack.c.b16 %v1755, %v1751
    %v1796 = vpack.c.b16 %v1760, %v1756
    %v1797 = vpack.c.b16 %v1761, %v1757
    %v1798 = vpack.c.b16 %v1762, %v1758
    %v1799 = vpack.c.b16 %v1763, %v1759
    %v1800 = vpack.c.b16 %v1768, %v1764
    %v1801 = vpack.c.b16 %v1769, %v1765
    %v1802 = vpack.c.b16 %v1770, %v1766
    %v1803 = vpack.c.b16 %v1771, %v1767
    %1836 = vmatprep.subr.bf16.mxu0 %v1773
    %1837 = vmatpush1.bf16.msra.mxu0 %v1772
    %1838 = vmatprep.subr.bf16.mxu0 %v1777
    %1839 = vmatpush1.bf16.msra.mxu0 %v1776
    %1840 = vmatprep.subr.bf16.mxu0 %v1781
    %1841 = vmatpush1.bf16.msra.mxu0 %v1780
    %1842 = vmatprep.subr.bf16.mxu0 %v1785
    %1843 = vmatpush1.bf16.msra.mxu0 %v1784
    %1844 = vmatprep.subr.bf16.mxu0 %v1789
    %1845 = vmatpush1.bf16.msra.mxu0 %v1788
    %1846 = vmatprep.subr.bf16.mxu0 %v1793
    %1847 = vmatpush1.bf16.msra.mxu0 %v1792
    %1848 = vmatprep.subr.bf16.mxu0 %v1797
    %1849 = vmatpush1.bf16.msra.mxu0 %v1796
    %1850 = vmatprep.subr.bf16.mxu0 %v1801
    %1851 = vmatpush1.bf16.msra.mxu0 %v1800
    %1852 = vmatprep.subr.bf16.mxu0 0
    %1853 = vmatpush1.bf16.msra.mxu0 0
    %1854 = vmatprep.subr.bf16.mxu0 0
    %1855 = vmatpush1.bf16.msra.mxu0 0
    %1856 = vmatprep.subr.bf16.mxu0 0
    %1857 = vmatpush1.bf16.msra.mxu0 0
    %1858 = vmatprep.subr.bf16.mxu0 0
    %1859 = vmatpush1.bf16.msra.mxu0 0
    %1860 = vmatprep.subr.bf16.mxu0 0
    %1861 = vmatpush1.bf16.msra.mxu0 0
    %1862 = vmatprep.subr.bf16.mxu0 0
    %1863 = vmatpush1.bf16.msra.mxu0 0
    %1864 = vmatprep.subr.bf16.mxu0 0
    %1865 = vmatpush1.bf16.msra.mxu0 0
    %1866 = vmatprep.subr.bf16.mxu0 0
    %1867 = vmatpush1.bf16.msra.mxu0 0
    %1868 = vmatprep.mubr.bf16.mxu0 0
    %1869 = vmatmul.mubr.bf16.gmra.mrb[0].mxu0 %v1643
    %v1870 = vpop.f32.mrb[0].mxu0
    %v1871 = vadd.f32 0.0, %v1870
    %v1872 = vpop.f32.mrb[0].mxu0
    %v1873 = vadd.f32 0.0, %v1872
    %v1874 = vpop.f32.mrb[0].mxu0
    %v1875 = vpop.f32.mrb[0].mxu0
    %1876 = vdwg.mxu0
    %1877 = vmatprep.subr.bf16.mxu0 %v1775
    %1878 = vmatpush1.bf16.msra.mxu0 %v1774
    %1879 = vmatprep.subr.bf16.mxu0 %v1779
    %1880 = vmatpush1.bf16.msra.mxu0 %v1778
    %1881 = vmatprep.subr.bf16.mxu0 %v1783
    %1882 = vmatpush1.bf16.msra.mxu0 %v1782
    %1883 = vmatprep.subr.bf16.mxu0 %v1787
    %1884 = vmatpush1.bf16.msra.mxu0 %v1786
    %1885 = vmatprep.subr.bf16.mxu0 %v1791
    %1886 = vmatpush1.bf16.msra.mxu0 %v1790
    %1887 = vmatprep.subr.bf16.mxu0 %v1795
    %1888 = vmatpush1.bf16.msra.mxu0 %v1794
    %1889 = vmatprep.subr.bf16.mxu0 %v1799
    %1890 = vmatpush1.bf16.msra.mxu0 %v1798
    %1891 = vmatprep.subr.bf16.mxu0 %v1803
    %1892 = vmatpush1.bf16.msra.mxu0 %v1802
    %1893 = vmatprep.subr.bf16.mxu0 0
    %1894 = vmatpush1.bf16.msra.mxu0 0
    %1895 = vmatprep.subr.bf16.mxu0 0
    %1896 = vmatpush1.bf16.msra.mxu0 0
    %1897 = vmatprep.subr.bf16.mxu0 0
    %1898 = vmatpush1.bf16.msra.mxu0 0
    %1899 = vmatprep.subr.bf16.mxu0 0
    %1900 = vmatpush1.bf16.msra.mxu0 0
    %1901 = vmatprep.subr.bf16.mxu0 0
    %1902 = vmatpush1.bf16.msra.mxu0 0
    %1903 = vmatprep.subr.bf16.mxu0 0
    %1904 = vmatpush1.bf16.msra.mxu0 0
    %1905 = vmatprep.subr.bf16.mxu0 0
    %1906 = vmatpush1.bf16.msra.mxu0 0
    %1907 = vmatprep.subr.bf16.mxu0 0
    %1908 = vmatpush1.bf16.msra.mxu0 0
    %1909 = vmatprep.mubr.bf16.mxu0 0
    %1910 = vmatmul.mubr.bf16.gmra.mrb[0].mxu0 %v1643
    %v1911 = vpop.f32.mrb[0].mxu0
    %v1912 = vadd.f32 0.0, %v1911
    %v1913 = vpop.f32.mrb[0].mxu0
    %v1914 = vadd.f32 0.0, %v1913
    %v1915 = vpop.f32.mrb[0].mxu0
    %v1916 = vpop.f32.mrb[0].mxu0
    %1917 = vdwg.mxu0
    %v1918 = vadd.f32 %v1639, %v1871
    %v1919 = vadd.f32 %v1640, %v1873
    %v1920 = vadd.f32 %v1641, %v1912
    %v1921 = vadd.f32 %v1642, %v1914
    %v1922 = vxor.u32 %v1918, 2147483648
    %v1923 = vxor.u32 %v1919, 2147483648
    %v1924 = vxor.u32 %v1920, 2147483648
    %v1925 = vmul.f32 %v1922, 1.442695
    %v1926 = vpow.pop %v1925
    %v1927 = vmul.f32 %v1923, 1.442695
    %v1928 = vpow.pop %v1927
    %v1929 = vmul.f32 %v1924, 1.442695
    %v1930 = vpow.pop %v1929
    %v1931 = vadd.f32 %v1926, 1.0
    %v1932 = vadd.f32 %v1928, 1.0
    %v1933 = vadd.f32 %v1930, 1.0
    %v1934 = vrcp.pop %v1931
    %v1935 = vmul.f32 1.0, %v1934
    %v1936 = vrcp.pop %v1932
    %v1937 = vmul.f32 1.0, %v1936
    %v1938 = vrcp.pop %v1933
    %v1939 = vmul.f32 1.0, %v1938
    %v1940 = vtanh.pop %v1921
    %v1941 = vmul.f32 %v1937, %v1633
    %v1942 = vmul.f32 %v1935, %v1940
    %v1943 = vadd.f32 %v1941, %v1942
    %v1944 = vtanh.pop %v1943
    %v1945 = vmul.f32 %v1939, %v1944
    %s1946 = scalar_lea.vmem [#allocation3], 24
    %1947 = vst [vmem:[%s1946] sm:$0xff] %v1945
    %s1948 = scalar_lea.vmem [#allocation2], 128
    %v1949 = vld [vmem:[%s1948] sm:$0xff]
    %v1950 = vld [vmem:[%s1948 + $0x8] sm:$0xff]
    %v1951 = vld [vmem:[%s1948 + $0x10] sm:$0xff]
    %v1952 = vld [vmem:[%s1948 + $0x18] sm:$0xff]
    %v1953 = vpack.c.bf16 %v1945, %v1945
    %v1954 = vld [vmem:[%s6] sm:$0xff]
    %v1955 = vld [vmem:[%s6 + $0x8] sm:$0xff]
    %v1956 = vld [vmem:[%s6 + $0x10] sm:$0xff]
    %v1957 = vld [vmem:[%s6 + $0x18] sm:$0xff]
    %v1958 = vld [vmem:[%s6 + $0x20] sm:$0xff]
    %v1959 = vld [vmem:[%s6 + $0x28] sm:$0xff]
    %v1960 = vld [vmem:[%s6 + $0x30] sm:$0xff]
    %v1961 = vld [vmem:[%s6 + $0x38] sm:$0xff]
    %v1962 = vld [vmem:[%s6 + $0x40] sm:$0xff]
    %v1963 = vld [vmem:[%s6 + $0x48] sm:$0xff]
    %v1964 = vld [vmem:[%s6 + $0x50] sm:$0xff]
    %v1965 = vld [vmem:[%s6 + $0x58] sm:$0xff]
    %v1966 = vld [vmem:[%s6 + $0x60] sm:$0xff]
    %v1967 = vld [vmem:[%s6 + $0x68] sm:$0xff]
    %v1968 = vld [vmem:[%s6 + $0x70] sm:$0xff]
    %v1969 = vld [vmem:[%s6 + $0x78] sm:$0xff]
    %v1970 = vld [vmem:[%s6 + $0x80] sm:$0xff]
    %v1971 = vld [vmem:[%s6 + $0x88] sm:$0xff]
    %v1972 = vld [vmem:[%s6 + $0x90] sm:$0xff]
    %v1973 = vld [vmem:[%s6 + $0x98] sm:$0xff]
    %v1974 = vld [vmem:[%s6 + $0xa0] sm:$0xff]
    %v1975 = vld [vmem:[%s6 + $0xa8] sm:$0xff]
    %v1976 = vld [vmem:[%s6 + $0xb0] sm:$0xff]
    %v1977 = vld [vmem:[%s6 + $0xb8] sm:$0xff]
    %v1978 = vld [vmem:[%s6 + $0xc0] sm:$0xff]
    %v1979 = vld [vmem:[%s6 + $0xc8] sm:$0xff]
    %v1980 = vld [vmem:[%s6 + $0xd0] sm:$0xff]
    %v1981 = vld [vmem:[%s6 + $0xd8] sm:$0xff]
    %v1982 = vld [vmem:[%s6 + $0xe0] sm:$0xff]
    %v1983 = vld [vmem:[%s6 + $0xe8] sm:$0xff]
    %v1984 = vld [vmem:[%s6 + $0xf0] sm:$0xff]
    %v1985 = vld [vmem:[%s6 + $0xf8] sm:$0xff]
    %v2018 = vunpack.c.l.b16 %v1954
    %v2019 = vunpack.c.h.b16 %v1954
    %v2020 = vunpack.c.l.b16 %v1955
    %v2021 = vunpack.c.h.b16 %v1955
    %v2022 = vunpack.c.l.b16 %v1956
    %v2023 = vunpack.c.h.b16 %v1956
    %v2024 = vunpack.c.l.b16 %v1957
    %v2025 = vunpack.c.h.b16 %v1957
    %v2026 = vunpack.c.l.b16 %v1958
    %v2027 = vunpack.c.h.b16 %v1958
    %v2028 = vunpack.c.l.b16 %v1959
    %v2029 = vunpack.c.h.b16 %v1959
    %v2030 = vunpack.c.l.b16 %v1960
    %v2031 = vunpack.c.h.b16 %v1960
    %v2032 = vunpack.c.l.b16 %v1961
    %v2033 = vunpack.c.h.b16 %v1961
    %v2034 = vunpack.c.l.b16 %v1962
    %v2035 = vunpack.c.h.b16 %v1962
    %v2036 = vunpack.c.l.b16 %v1963
    %v2037 = vunpack.c.h.b16 %v1963
    %v2038 = vunpack.c.l.b16 %v1964
    %v2039 = vunpack.c.h.b16 %v1964
    %v2040 = vunpack.c.l.b16 %v1965
    %v2041 = vunpack.c.h.b16 %v1965
    %v2042 = vunpack.c.l.b16 %v1966
    %v2043 = vunpack.c.h.b16 %v1966
    %v2044 = vunpack.c.l.b16 %v1967
    %v2045 = vunpack.c.h.b16 %v1967
    %v2046 = vunpack.c.l.b16 %v1968
    %v2047 = vunpack.c.h.b16 %v1968
    %v2048 = vunpack.c.l.b16 %v1969
    %v2049 = vunpack.c.h.b16 %v1969
    %v2050 = vunpack.c.l.b16 %v1970
    %v2051 = vunpack.c.h.b16 %v1970
    %v2052 = vunpack.c.l.b16 %v1971
    %v2053 = vunpack.c.h.b16 %v1971
    %v2054 = vunpack.c.l.b16 %v1972
    %v2055 = vunpack.c.h.b16 %v1972
    %v2056 = vunpack.c.l.b16 %v1973
    %v2057 = vunpack.c.h.b16 %v1973
    %v2058 = vunpack.c.l.b16 %v1974
    %v2059 = vunpack.c.h.b16 %v1974
    %v2060 = vunpack.c.l.b16 %v1975
    %v2061 = vunpack.c.h.b16 %v1975
    %v2062 = vunpack.c.l.b16 %v1976
    %v2063 = vunpack.c.h.b16 %v1976
    %v2064 = vunpack.c.l.b16 %v1977
    %v2065 = vunpack.c.h.b16 %v1977
    %v2066 = vunpack.c.l.b16 %v1978
    %v2067 = vunpack.c.h.b16 %v1978
    %v2068 = vunpack.c.l.b16 %v1979
    %v2069 = vunpack.c.h.b16 %v1979
    %v2070 = vunpack.c.l.b16 %v1980
    %v2071 = vunpack.c.h.b16 %v1980
    %v2072 = vunpack.c.l.b16 %v1981
    %v2073 = vunpack.c.h.b16 %v1981
    %v2074 = vunpack.c.l.b16 %v1982
    %v2075 = vunpack.c.h.b16 %v1982
    %v2076 = vunpack.c.l.b16 %v1983
    %v2077 = vunpack.c.h.b16 %v1983
    %v2078 = vunpack.c.l.b16 %v1984
    %v2079 = vunpack.c.h.b16 %v1984
    %v2080 = vunpack.c.l.b16 %v1985
    %v2081 = vunpack.c.h.b16 %v1985
    %v2082 = vpack.c.b16 %v2022, %v2018
    %v2083 = vpack.c.b16 %v2023, %v2019
    %v2084 = vpack.c.b16 %v2024, %v2020
    %v2085 = vpack.c.b16 %v2025, %v2021
    %v2086 = vpack.c.b16 %v2030, %v2026
    %v2087 = vpack.c.b16 %v2031, %v2027
    %v2088 = vpack.c.b16 %v2032, %v2028
    %v2089 = vpack.c.b16 %v2033, %v2029
    %v2090 = vpack.c.b16 %v2038, %v2034
    %v2091 = vpack.c.b16 %v2039, %v2035
    %v2092 = vpack.c.b16 %v2040, %v2036
    %v2093 = vpack.c.b16 %v2041, %v2037
    %v2094 = vpack.c.b16 %v2046, %v2042
    %v2095 = vpack.c.b16 %v2047, %v2043
    %v2096 = vpack.c.b16 %v2048, %v2044
    %v2097 = vpack.c.b16 %v2049, %v2045
    %v2098 = vpack.c.b16 %v2054, %v2050
    %v2099 = vpack.c.b16 %v2055, %v2051
    %v2100 = vpack.c.b16 %v2056, %v2052
    %v2101 = vpack.c.b16 %v2057, %v2053
    %v2102 = vpack.c.b16 %v2062, %v2058
    %v2103 = vpack.c.b16 %v2063, %v2059
    %v2104 = vpack.c.b16 %v2064, %v2060
    %v2105 = vpack.c.b16 %v2065, %v2061
    %v2106 = vpack.c.b16 %v2070, %v2066
    %v2107 = vpack.c.b16 %v2071, %v2067
    %v2108 = vpack.c.b16 %v2072, %v2068
    %v2109 = vpack.c.b16 %v2073, %v2069
    %v2110 = vpack.c.b16 %v2078, %v2074
    %v2111 = vpack.c.b16 %v2079, %v2075
    %v2112 = vpack.c.b16 %v2080, %v2076
    %v2113 = vpack.c.b16 %v2081, %v2077
    %2146 = vmatprep.subr.bf16.mxu0 %v2083
    %2147 = vmatpush1.bf16.msra.mxu0 %v2082
    %2148 = vmatprep.subr.bf16.mxu0 %v2087
    %2149 = vmatpush1.bf16.msra.mxu0 %v2086
    %2150 = vmatprep.subr.bf16.mxu0 %v2091
    %2151 = vmatpush1.bf16.msra.mxu0 %v2090
    %2152 = vmatprep.subr.bf16.mxu0 %v2095
    %2153 = vmatpush1.bf16.msra.mxu0 %v2094
    %2154 = vmatprep.subr.bf16.mxu0 %v2099
    %2155 = vmatpush1.bf16.msra.mxu0 %v2098
    %2156 = vmatprep.subr.bf16.mxu0 %v2103
    %2157 = vmatpush1.bf16.msra.mxu0 %v2102
    %2158 = vmatprep.subr.bf16.mxu0 %v2107
    %2159 = vmatpush1.bf16.msra.mxu0 %v2106
    %2160 = vmatprep.subr.bf16.mxu0 %v2111
    %2161 = vmatpush1.bf16.msra.mxu0 %v2110
    %2162 = vmatprep.subr.bf16.mxu0 0
    %2163 = vmatpush1.bf16.msra.mxu0 0
    %2164 = vmatprep.subr.bf16.mxu0 0
    %2165 = vmatpush1.bf16.msra.mxu0 0
    %2166 = vmatprep.subr.bf16.mxu0 0
    %2167 = vmatpush1.bf16.msra.mxu0 0
    %2168 = vmatprep.subr.bf16.mxu0 0
    %2169 = vmatpush1.bf16.msra.mxu0 0
    %2170 = vmatprep.subr.bf16.mxu0 0
    %2171 = vmatpush1.bf16.msra.mxu0 0
    %2172 = vmatprep.subr.bf16.mxu0 0
    %2173 = vmatpush1.bf16.msra.mxu0 0
    %2174 = vmatprep.subr.bf16.mxu0 0
    %2175 = vmatpush1.bf16.msra.mxu0 0
    %2176 = vmatprep.subr.bf16.mxu0 0
    %2177 = vmatpush1.bf16.msra.mxu0 0
    %2178 = vmatprep.mubr.bf16.mxu0 0
    %2179 = vmatmul.mubr.bf16.gmra.mrb[0].mxu0 %v1953
    %v2180 = vpop.f32.mrb[0].mxu0
    %v2181 = vadd.f32 0.0, %v2180
    %v2182 = vpop.f32.mrb[0].mxu0
    %v2183 = vadd.f32 0.0, %v2182
    %v2184 = vpop.f32.mrb[0].mxu0
    %v2185 = vpop.f32.mrb[0].mxu0
    %2186 = vdwg.mxu0
    %2187 = vmatprep.subr.bf16.mxu0 %v2085
    %2188 = vmatpush1.bf16.msra.mxu0 %v2084
    %2189 = vmatprep.subr.bf16.mxu0 %v2089
    %2190 = vmatpush1.bf16.msra.mxu0 %v2088
    %2191 = vmatprep.subr.bf16.mxu0 %v2093
    %2192 = vmatpush1.bf16.msra.mxu0 %v2092
    %2193 = vmatprep.subr.bf16.mxu0 %v2097
    %2194 = vmatpush1.bf16.msra.mxu0 %v2096
    %2195 = vmatprep.subr.bf16.mxu0 %v2101
    %2196 = vmatpush1.bf16.msra.mxu0 %v2100
    %2197 = vmatprep.subr.bf16.mxu0 %v2105
    %2198 = vmatpush1.bf16.msra.mxu0 %v2104
    %2199 = vmatprep.subr.bf16.mxu0 %v2109
    %2200 = vmatpush1.bf16.msra.mxu0 %v2108
    %2201 = vmatprep.subr.bf16.mxu0 %v2113
    %2202 = vmatpush1.bf16.msra.mxu0 %v2112
    %2203 = vmatprep.subr.bf16.mxu0 0
    %2204 = vmatpush1.bf16.msra.mxu0 0
    %2205 = vmatprep.subr.bf16.mxu0 0
    %2206 = vmatpush1.bf16.msra.mxu0 0
    %2207 = vmatprep.subr.bf16.mxu0 0
    %2208 = vmatpush1.bf16.msra.mxu0 0
    %2209 = vmatprep.subr.bf16.mxu0 0
    %2210 = vmatpush1.bf16.msra.mxu0 0
    %2211 = vmatprep.subr.bf16.mxu0 0
    %2212 = vmatpush1.bf16.msra.mxu0 0
    %2213 = vmatprep.subr.bf16.mxu0 0
    %2214 = vmatpush1.bf16.msra.mxu0 0
    %2215 = vmatprep.subr.bf16.mxu0 0
    %2216 = vmatpush1.bf16.msra.mxu0 0
    %2217 = vmatprep.subr.bf16.mxu0 0
    %2218 = vmatpush1.bf16.msra.mxu0 0
    %2219 = vmatprep.mubr.bf16.mxu0 0
    %2220 = vmatmul.mubr.bf16.gmra.mrb[0].mxu0 %v1953
    %v2221 = vpop.f32.mrb[0].mxu0
    %v2222 = vadd.f32 0.0, %v2221
    %v2223 = vpop.f32.mrb[0].mxu0
    %v2224 = vadd.f32 0.0, %v2223
    %v2225 = vpop.f32.mrb[0].mxu0
    %v2226 = vpop.f32.mrb[0].mxu0
    %2227 = vdwg.mxu0
    %v2228 = vadd.f32 %v1949, %v2181
    %v2229 = vadd.f32 %v1950, %v2183
    %v2230 = vadd.f32 %v1951, %v2222
    %v2231 = vadd.f32 %v1952, %v2224
    %v2232 = vxor.u32 %v2228, 2147483648
    %v2233 = vxor.u32 %v2229, 2147483648
    %v2234 = vxor.u32 %v2230, 2147483648
    %v2235 = vmul.f32 %v2232, 1.442695
    %v2236 = vpow.pop %v2235
    %v2237 = vmul.f32 %v2233, 1.442695
    %v2238 = vpow.pop %v2237
    %v2239 = vmul.f32 %v2234, 1.442695
    %v2240 = vpow.pop %v2239
    %v2241 = vadd.f32 %v2236, 1.0
    %v2242 = vadd.f32 %v2238, 1.0
    %v2243 = vadd.f32 %v2240, 1.0
    %v2244 = vrcp.pop %v2241
    %v2245 = vmul.f32 1.0, %v2244
    %v2246 = vrcp.pop %v2242
    %v2247 = vmul.f32 1.0, %v2246
    %v2248 = vrcp.pop %v2243
    %v2249 = vmul.f32 1.0, %v2248
    %v2250 = vtanh.pop %v2231
    %v2251 = vmul.f32 %v2247, %v1943
    %v2252 = vmul.f32 %v2245, %v2250
    %v2253 = vadd.f32 %v2251, %v2252
    %v2254 = vtanh.pop %v2253
    %v2255 = vmul.f32 %v2249, %v2254
    %s2256 = scalar_lea.vmem [#allocation3], 32
    %2257 = vst [vmem:[%s2256] sm:$0xff] %v2255
    %s2258 = scalar_lea.vmem [#allocation2], 160
    %v2259 = vld [vmem:[%s2258] sm:$0xff]
    %v2260 = vld [vmem:[%s2258 + $0x8] sm:$0xff]
    %v2261 = vld [vmem:[%s2258 + $0x10] sm:$0xff]
    %v2262 = vld [vmem:[%s2258 + $0x18] sm:$0xff]
    %v2263 = vpack.c.bf16 %v2255, %v2255
    %v2264 = vld [vmem:[%s6] sm:$0xff]
    %v2265 = vld [vmem:[%s6 + $0x8] sm:$0xff]
    %v2266 = vld [vmem:[%s6 + $0x10] sm:$0xff]
    %v2267 = vld [vmem:[%s6 + $0x18] sm:$0xff]
    %v2268 = vld [vmem:[%s6 + $0x20] sm:$0xff]
    %v2269 = vld [vmem:[%s6 + $0x28] sm:$0xff]
    %v2270 = vld [vmem:[%s6 + $0x30] sm:$0xff]
    %v2271 = vld [vmem:[%s6 + $0x38] sm:$0xff]
    %v2272 = vld [vmem:[%s6 + $0x40] sm:$0xff]
    %v2273 = vld [vmem:[%s6 + $0x48] sm:$0xff]
    %v2274 = vld [vmem:[%s6 + $0x50] sm:$0xff]
    %v2275 = vld [vmem:[%s6 + $0x58] sm:$0xff]
    %v2276 = vld [vmem:[%s6 + $0x60] sm:$0xff]
    %v2277 = vld [vmem:[%s6 + $0x68] sm:$0xff]
    %v2278 = vld [vmem:[%s6 + $0x70] sm:$0xff]
    %v2279 = vld [vmem:[%s6 + $0x78] sm:$0xff]
    %v2280 = vld [vmem:[%s6 + $0x80] sm:$0xff]
    %v2281 = vld [vmem:[%s6 + $0x88] sm:$0xff]
    %v2282 = vld [vmem:[%s6 + $0x90] sm:$0xff]
    %v2283 = vld [vmem:[%s6 + $0x98] sm:$0xff]
    %v2284 = vld [vmem:[%s6 + $0xa0] sm:$0xff]
    %v2285 = vld [vmem:[%s6 + $0xa8] sm:$0xff]
    %v2286 = vld [vmem:[%s6 + $0xb0] sm:$0xff]
    %v2287 = vld [vmem:[%s6 + $0xb8] sm:$0xff]
    %v2288 = vld [vmem:[%s6 + $0xc0] sm:$0xff]
    %v2289 = vld [vmem:[%s6 + $0xc8] sm:$0xff]
    %v2290 = vld [vmem:[%s6 + $0xd0] sm:$0xff]
    %v2291 = vld [vmem:[%s6 + $0xd8] sm:$0xff]
    %v2292 = vld [vmem:[%s6 + $0xe0] sm:$0xff]
    %v2293 = vld [vmem:[%s6 + $0xe8] sm:$0xff]
    %v2294 = vld [vmem:[%s6 + $0xf0] sm:$0xff]
    %v2295 = vld [vmem:[%s6 + $0xf8] sm:$0xff]
    %v2328 = vunpack.c.l.b16 %v2264
    %v2329 = vunpack.c.h.b16 %v2264
    %v2330 = vunpack.c.l.b16 %v2265
    %v2331 = vunpack.c.h.b16 %v2265
    %v2332 = vunpack.c.l.b16 %v2266
    %v2333 = vunpack.c.h.b16 %v2266
    %v2334 = vunpack.c.l.b16 %v2267
    %v2335 = vunpack.c.h.b16 %v2267
    %v2336 = vunpack.c.l.b16 %v2268
    %v2337 = vunpack.c.h.b16 %v2268
    %v2338 = vunpack.c.l.b16 %v2269
    %v2339 = vunpack.c.h.b16 %v2269
    %v2340 = vunpack.c.l.b16 %v2270
    %v2341 = vunpack.c.h.b16 %v2270
    %v2342 = vunpack.c.l.b16 %v2271
    %v2343 = vunpack.c.h.b16 %v2271
    %v2344 = vunpack.c.l.b16 %v2272
    %v2345 = vunpack.c.h.b16 %v2272
    %v2346 = vunpack.c.l.b16 %v2273
    %v2347 = vunpack.c.h.b16 %v2273
    %v2348 = vunpack.c.l.b16 %v2274
    %v2349 = vunpack.c.h.b16 %v2274
    %v2350 = vunpack.c.l.b16 %v2275
    %v2351 = vunpack.c.h.b16 %v2275
    %v2352 = vunpack.c.l.b16 %v2276
    %v2353 = vunpack.c.h.b16 %v2276
    %v2354 = vunpack.c.l.b16 %v2277
    %v2355 = vunpack.c.h.b16 %v2277
    %v2356 = vunpack.c.l.b16 %v2278
    %v2357 = vunpack.c.h.b16 %v2278
    %v2358 = vunpack.c.l.b16 %v2279
    %v2359 = vunpack.c.h.b16 %v2279
    %v2360 = vunpack.c.l.b16 %v2280
    %v2361 = vunpack.c.h.b16 %v2280
    %v2362 = vunpack.c.l.b16 %v2281
    %v2363 = vunpack.c.h.b16 %v2281
    %v2364 = vunpack.c.l.b16 %v2282
    %v2365 = vunpack.c.h.b16 %v2282
    %v2366 = vunpack.c.l.b16 %v2283
    %v2367 = vunpack.c.h.b16 %v2283
    %v2368 = vunpack.c.l.b16 %v2284
    %v2369 = vunpack.c.h.b16 %v2284
    %v2370 = vunpack.c.l.b16 %v2285
    %v2371 = vunpack.c.h.b16 %v2285
    %v2372 = vunpack.c.l.b16 %v2286
    %v2373 = vunpack.c.h.b16 %v2286
    %v2374 = vunpack.c.l.b16 %v2287
    %v2375 = vunpack.c.h.b16 %v2287
    %v2376 = vunpack.c.l.b16 %v2288
    %v2377 = vunpack.c.h.b16 %v2288
    %v2378 = vunpack.c.l.b16 %v2289
    %v2379 = vunpack.c.h.b16 %v2289
    %v2380 = vunpack.c.l.b16 %v2290
    %v2381 = vunpack.c.h.b16 %v2290
    %v2382 = vunpack.c.l.b16 %v2291
    %v2383 = vunpack.c.h.b16 %v2291
    %v2384 = vunpack.c.l.b16 %v2292
    %v2385 = vunpack.c.h.b16 %v2292
    %v2386 = vunpack.c.l.b16 %v2293
    %v2387 = vunpack.c.h.b16 %v2293
    %v2388 = vunpack.c.l.b16 %v2294
    %v2389 = vunpack.c.h.b16 %v2294
    %v2390 = vunpack.c.l.b16 %v2295
    %v2391 = vunpack.c.h.b16 %v2295
    %v2392 = vpack.c.b16 %v2332, %v2328
    %v2393 = vpack.c.b16 %v2333, %v2329
    %v2394 = vpack.c.b16 %v2334, %v2330
    %v2395 = vpack.c.b16 %v2335, %v2331
    %v2396 = vpack.c.b16 %v2340, %v2336
    %v2397 = vpack.c.b16 %v2341, %v2337
    %v2398 = vpack.c.b16 %v2342, %v2338
    %v2399 = vpack.c.b16 %v2343, %v2339
    %v2400 = vpack.c.b16 %v2348, %v2344
    %v2401 = vpack.c.b16 %v2349, %v2345
    %v2402 = vpack.c.b16 %v2350, %v2346
    %v2403 = vpack.c.b16 %v2351, %v2347
    %v2404 = vpack.c.b16 %v2356, %v2352
    %v2405 = vpack.c.b16 %v2357, %v2353
    %v2406 = vpack.c.b16 %v2358, %v2354
    %v2407 = vpack.c.b16 %v2359, %v2355
    %v2408 = vpack.c.b16 %v2364, %v2360
    %v2409 = vpack.c.b16 %v2365, %v2361
    %v2410 = vpack.c.b16 %v2366, %v2362
    %v2411 = vpack.c.b16 %v2367, %v2363
    %v2412 = vpack.c.b16 %v2372, %v2368
    %v2413 = vpack.c.b16 %v2373, %v2369
    %v2414 = vpack.c.b16 %v2374, %v2370
    %v2415 = vpack.c.b16 %v2375, %v2371
    %v2416 = vpack.c.b16 %v2380, %v2376
    %v2417 = vpack.c.b16 %v2381, %v2377
    %v2418 = vpack.c.b16 %v2382, %v2378
    %v2419 = vpack.c.b16 %v2383, %v2379
    %v2420 = vpack.c.b16 %v2388, %v2384
    %v2421 = vpack.c.b16 %v2389, %v2385
    %v2422 = vpack.c.b16 %v2390, %v2386
    %v2423 = vpack.c.b16 %v2391, %v2387
    %2456 = vmatprep.subr.bf16.mxu0 %v2393
    %2457 = vmatpush1.bf16.msra.mxu0 %v2392
    %2458 = vmatprep.subr.bf16.mxu0 %v2397
    %2459 = vmatpush1.bf16.msra.mxu0 %v2396
    %2460 = vmatprep.subr.bf16.mxu0 %v2401
    %2461 = vmatpush1.bf16.msra.mxu0 %v2400
    %2462 = vmatprep.subr.bf16.mxu0 %v2405
    %2463 = vmatpush1.bf16.msra.mxu0 %v2404
    %2464 = vmatprep.subr.bf16.mxu0 %v2409
    %2465 = vmatpush1.bf16.msra.mxu0 %v2408
    %2466 = vmatprep.subr.bf16.mxu0 %v2413
    %2467 = vmatpush1.bf16.msra.mxu0 %v2412
    %2468 = vmatprep.subr.bf16.mxu0 %v2417
    %2469 = vmatpush1.bf16.msra.mxu0 %v2416
    %2470 = vmatprep.subr.bf16.mxu0 %v2421
    %2471 = vmatpush1.bf16.msra.mxu0 %v2420
    %2472 = vmatprep.subr.bf16.mxu0 0
    %2473 = vmatpush1.bf16.msra.mxu0 0
    %2474 = vmatprep.subr.bf16.mxu0 0
    %2475 = vmatpush1.bf16.msra.mxu0 0
    %2476 = vmatprep.subr.bf16.mxu0 0
    %2477 = vmatpush1.bf16.msra.mxu0 0
    %2478 = vmatprep.subr.bf16.mxu0 0
    %2479 = vmatpush1.bf16.msra.mxu0 0
    %2480 = vmatprep.subr.bf16.mxu0 0
    %2481 = vmatpush1.bf16.msra.mxu0 0
    %2482 = vmatprep.subr.bf16.mxu0 0
    %2483 = vmatpush1.bf16.msra.mxu0 0
    %2484 = vmatprep.subr.bf16.mxu0 0
    %2485 = vmatpush1.bf16.msra.mxu0 0
    %2486 = vmatprep.subr.bf16.mxu0 0
    %2487 = vmatpush1.bf16.msra.mxu0 0
    %2488 = vmatprep.mubr.bf16.mxu0 0
    %2489 = vmatmul.mubr.bf16.gmra.mrb[0].mxu0 %v2263
    %v2490 = vpop.f32.mrb[0].mxu0
    %v2491 = vadd.f32 0.0, %v2490
    %v2492 = vpop.f32.mrb[0].mxu0
    %v2493 = vadd.f32 0.0, %v2492
    %v2494 = vpop.f32.mrb[0].mxu0
    %v2495 = vpop.f32.mrb[0].mxu0
    %2496 = vdwg.mxu0
    %2497 = vmatprep.subr.bf16.mxu0 %v2395
    %2498 = vmatpush1.bf16.msra.mxu0 %v2394
    %2499 = vmatprep.subr.bf16.mxu0 %v2399
    %2500 = vmatpush1.bf16.msra.mxu0 %v2398
    %2501 = vmatprep.subr.bf16.mxu0 %v2403
    %2502 = vmatpush1.bf16.msra.mxu0 %v2402
    %2503 = vmatprep.subr.bf16.mxu0 %v2407
    %2504 = vmatpush1.bf16.msra.mxu0 %v2406
    %2505 = vmatprep.subr.bf16.mxu0 %v2411
    %2506 = vmatpush1.bf16.msra.mxu0 %v2410
    %2507 = vmatprep.subr.bf16.mxu0 %v2415
    %2508 = vmatpush1.bf16.msra.mxu0 %v2414
    %2509 = vmatprep.subr.bf16.mxu0 %v2419
    %2510 = vmatpush1.bf16.msra.mxu0 %v2418
    %2511 = vmatprep.subr.bf16.mxu0 %v2423
    %2512 = vmatpush1.bf16.msra.mxu0 %v2422
    %2513 = vmatprep.subr.bf16.mxu0 0
    %2514 = vmatpush1.bf16.msra.mxu0 0
    %2515 = vmatprep.subr.bf16.mxu0 0
    %2516 = vmatpush1.bf16.msra.mxu0 0
    %2517 = vmatprep.subr.bf16.mxu0 0
    %2518 = vmatpush1.bf16.msra.mxu0 0
    %2519 = vmatprep.subr.bf16.mxu0 0
    %2520 = vmatpush1.bf16.msra.mxu0 0
    %2521 = vmatprep.subr.bf16.mxu0 0
    %2522 = vmatpush1.bf16.msra.mxu0 0
    %2523 = vmatprep.subr.bf16.mxu0 0
    %2524 = vmatpush1.bf16.msra.mxu0 0
    %2525 = vmatprep.subr.bf16.mxu0 0
    %2526 = vmatpush1.bf16.msra.mxu0 0
    %2527 = vmatprep.subr.bf16.mxu0 0
    %2528 = vmatpush1.bf16.msra.mxu0 0
    %2529 = vmatprep.mubr.bf16.mxu0 0
    %2530 = vmatmul.mubr.bf16.gmra.mrb[0].mxu0 %v2263
    %v2531 = vpop.f32.mrb[0].mxu0
    %v2532 = vadd.f32 0.0, %v2531
    %v2533 = vpop.f32.mrb[0].mxu0
    %v2534 = vadd.f32 0.0, %v2533
    %v2535 = vpop.f32.mrb[0].mxu0
    %v2536 = vpop.f32.mrb[0].mxu0
    %2537 = vdwg.mxu0
    %v2538 = vadd.f32 %v2259, %v2491
    %v2539 = vadd.f32 %v2260, %v2493
    %v2540 = vadd.f32 %v2261, %v2532
    %v2541 = vadd.f32 %v2262, %v2534
    %v2542 = vxor.u32 %v2538, 2147483648
    %v2543 = vxor.u32 %v2539, 2147483648
    %v2544 = vxor.u32 %v2540, 2147483648
    %v2545 = vmul.f32 %v2542, 1.442695
    %v2546 = vpow.pop %v2545
    %v2547 = vmul.f32 %v2543, 1.442695
    %v2548 = vpow.pop %v2547
    %v2549 = vmul.f32 %v2544, 1.442695
    %v2550 = vpow.pop %v2549
    %v2551 = vadd.f32 %v2546, 1.0
    %v2552 = vadd.f32 %v2548, 1.0
    %v2553 = vadd.f32 %v2550, 1.0
    %v2554 = vrcp.pop %v2551
    %v2555 = vmul.f32 1.0, %v2554
    %v2556 = vrcp.pop %v2552
    %v2557 = vmul.f32 1.0, %v2556
    %v2558 = vrcp.pop %v2553
    %v2559 = vmul.f32 1.0, %v2558
    %v2560 = vtanh.pop %v2541
    %v2561 = vmul.f32 %v2557, %v2253
    %v2562 = vmul.f32 %v2555, %v2560
    %v2563 = vadd.f32 %v2561, %v2562
    %v2564 = vtanh.pop %v2563
    %v2565 = vmul.f32 %v2559, %v2564
    %s2566 = scalar_lea.vmem [#allocation3], 40
    %2567 = vst [vmem:[%s2566] sm:$0xff] %v2565
    %s2568 = scalar_lea.vmem [#allocation2], 192
    %v2569 = vld [vmem:[%s2568] sm:$0xff]
    %v2570 = vld [vmem:[%s2568 + $0x8] sm:$0xff]
    %v2571 = vld [vmem:[%s2568 + $0x10] sm:$0xff]
    %v2572 = vld [vmem:[%s2568 + $0x18] sm:$0xff]
    %v2573 = vpack.c.bf16 %v2565, %v2565
    %v2574 = vld [vmem:[%s6] sm:$0xff]
    %v2575 = vld [vmem:[%s6 + $0x8] sm:$0xff]
    %v2576 = vld [vmem:[%s6 + $0x10] sm:$0xff]
    %v2577 = vld [vmem:[%s6 + $0x18] sm:$0xff]
    %v2578 = vld [vmem:[%s6 + $0x20] sm:$0xff]
    %v2579 = vld [vmem:[%s6 + $0x28] sm:$0xff]
    %v2580 = vld [vmem:[%s6 + $0x30] sm:$0xff]
    %v2581 = vld [vmem:[%s6 + $0x38] sm:$0xff]
    %v2582 = vld [vmem:[%s6 + $0x40] sm:$0xff]
    %v2583 = vld [vmem:[%s6 + $0x48] sm:$0xff]
    %v2584 = vld [vmem:[%s6 + $0x50] sm:$0xff]
    %v2585 = vld [vmem:[%s6 + $0x58] sm:$0xff]
    %v2586 = vld [vmem:[%s6 + $0x60] sm:$0xff]
    %v2587 = vld [vmem:[%s6 + $0x68] sm:$0xff]
    %v2588 = vld [vmem:[%s6 + $0x70] sm:$0xff]
    %v2589 = vld [vmem:[%s6 + $0x78] sm:$0xff]
    %v2590 = vld [vmem:[%s6 + $0x80] sm:$0xff]
    %v2591 = vld [vmem:[%s6 + $0x88] sm:$0xff]
    %v2592 = vld [vmem:[%s6 + $0x90] sm:$0xff]
    %v2593 = vld [vmem:[%s6 + $0x98] sm:$0xff]
    %v2594 = vld [vmem:[%s6 + $0xa0] sm:$0xff]
    %v2595 = vld [vmem:[%s6 + $0xa8] sm:$0xff]
    %v2596 = vld [vmem:[%s6 + $0xb0] sm:$0xff]
    %v2597 = vld [vmem:[%s6 + $0xb8] sm:$0xff]
    %v2598 = vld [vmem:[%s6 + $0xc0] sm:$0xff]
    %v2599 = vld [vmem:[%s6 + $0xc8] sm:$0xff]
    %v2600 = vld [vmem:[%s6 + $0xd0] sm:$0xff]
    %v2601 = vld [vmem:[%s6 + $0xd8] sm:$0xff]
    %v2602 = vld [vmem:[%s6 + $0xe0] sm:$0xff]
    %v2603 = vld [vmem:[%s6 + $0xe8] sm:$0xff]
    %v2604 = vld [vmem:[%s6 + $0xf0] sm:$0xff]
    %v2605 = vld [vmem:[%s6 + $0xf8] sm:$0xff]
    %v2638 = vunpack.c.l.b16 %v2574
    %v2639 = vunpack.c.h.b16 %v2574
    %v2640 = vunpack.c.l.b16 %v2575
    %v2641 = vunpack.c.h.b16 %v2575
    %v2642 = vunpack.c.l.b16 %v2576
    %v2643 = vunpack.c.h.b16 %v2576
    %v2644 = vunpack.c.l.b16 %v2577
    %v2645 = vunpack.c.h.b16 %v2577
    %v2646 = vunpack.c.l.b16 %v2578
    %v2647 = vunpack.c.h.b16 %v2578
    %v2648 = vunpack.c.l.b16 %v2579
    %v2649 = vunpack.c.h.b16 %v2579
    %v2650 = vunpack.c.l.b16 %v2580
    %v2651 = vunpack.c.h.b16 %v2580
    %v2652 = vunpack.c.l.b16 %v2581
    %v2653 = vunpack.c.h.b16 %v2581
    %v2654 = vunpack.c.l.b16 %v2582
    %v2655 = vunpack.c.h.b16 %v2582
    %v2656 = vunpack.c.l.b16 %v2583
    %v2657 = vunpack.c.h.b16 %v2583
    %v2658 = vunpack.c.l.b16 %v2584
    %v2659 = vunpack.c.h.b16 %v2584
    %v2660 = vunpack.c.l.b16 %v2585
    %v2661 = vunpack.c.h.b16 %v2585
    %v2662 = vunpack.c.l.b16 %v2586
    %v2663 = vunpack.c.h.b16 %v2586
    %v2664 = vunpack.c.l.b16 %v2587
    %v2665 = vunpack.c.h.b16 %v2587
    %v2666 = vunpack.c.l.b16 %v2588
    %v2667 = vunpack.c.h.b16 %v2588
    %v2668 = vunpack.c.l.b16 %v2589
    %v2669 = vunpack.c.h.b16 %v2589
    %v2670 = vunpack.c.l.b16 %v2590
    %v2671 = vunpack.c.h.b16 %v2590
    %v2672 = vunpack.c.l.b16 %v2591
    %v2673 = vunpack.c.h.b16 %v2591
    %v2674 = vunpack.c.l.b16 %v2592
    %v2675 = vunpack.c.h.b16 %v2592
    %v2676 = vunpack.c.l.b16 %v2593
    %v2677 = vunpack.c.h.b16 %v2593
    %v2678 = vunpack.c.l.b16 %v2594
    %v2679 = vunpack.c.h.b16 %v2594
    %v2680 = vunpack.c.l.b16 %v2595
    %v2681 = vunpack.c.h.b16 %v2595
    %v2682 = vunpack.c.l.b16 %v2596
    %v2683 = vunpack.c.h.b16 %v2596
    %v2684 = vunpack.c.l.b16 %v2597
    %v2685 = vunpack.c.h.b16 %v2597
    %v2686 = vunpack.c.l.b16 %v2598
    %v2687 = vunpack.c.h.b16 %v2598
    %v2688 = vunpack.c.l.b16 %v2599
    %v2689 = vunpack.c.h.b16 %v2599
    %v2690 = vunpack.c.l.b16 %v2600
    %v2691 = vunpack.c.h.b16 %v2600
    %v2692 = vunpack.c.l.b16 %v2601
    %v2693 = vunpack.c.h.b16 %v2601
    %v2694 = vunpack.c.l.b16 %v2602
    %v2695 = vunpack.c.h.b16 %v2602
    %v2696 = vunpack.c.l.b16 %v2603
    %v2697 = vunpack.c.h.b16 %v2603
    %v2698 = vunpack.c.l.b16 %v2604
    %v2699 = vunpack.c.h.b16 %v2604
    %v2700 = vunpack.c.l.b16 %v2605
    %v2701 = vunpack.c.h.b16 %v2605
    %v2702 = vpack.c.b16 %v2642, %v2638
    %v2703 = vpack.c.b16 %v2643, %v2639
    %v2704 = vpack.c.b16 %v2644, %v2640
    %v2705 = vpack.c.b16 %v2645, %v2641
    %v2706 = vpack.c.b16 %v2650, %v2646
    %v2707 = vpack.c.b16 %v2651, %v2647
    %v2708 = vpack.c.b16 %v2652, %v2648
    %v2709 = vpack.c.b16 %v2653, %v2649
    %v2710 = vpack.c.b16 %v2658, %v2654
    %v2711 = vpack.c.b16 %v2659, %v2655
    %v2712 = vpack.c.b16 %v2660, %v2656
    %v2713 = vpack.c.b16 %v2661, %v2657
    %v2714 = vpack.c.b16 %v2666, %v2662
    %v2715 = vpack.c.b16 %v2667, %v2663
    %v2716 = vpack.c.b16 %v2668, %v2664
    %v2717 = vpack.c.b16 %v2669, %v2665
    %v2718 = vpack.c.b16 %v2674, %v2670
    %v2719 = vpack.c.b16 %v2675, %v2671
    %v2720 = vpack.c.b16 %v2676, %v2672
    %v2721 = vpack.c.b16 %v2677, %v2673
    %v2722 = vpack.c.b16 %v2682, %v2678
    %v2723 = vpack.c.b16 %v2683, %v2679
    %v2724 = vpack.c.b16 %v2684, %v2680
    %v2725 = vpack.c.b16 %v2685, %v2681
    %v2726 = vpack.c.b16 %v2690, %v2686
    %v2727 = vpack.c.b16 %v2691, %v2687
    %v2728 = vpack.c.b16 %v2692, %v2688
    %v2729 = vpack.c.b16 %v2693, %v2689
    %v2730 = vpack.c.b16 %v2698, %v2694
    %v2731 = vpack.c.b16 %v2699, %v2695
    %v2732 = vpack.c.b16 %v2700, %v2696
    %v2733 = vpack.c.b16 %v2701, %v2697
    %2766 = vmatprep.subr.bf16.mxu0 %v2703
    %2767 = vmatpush1.bf16.msra.mxu0 %v2702
    %2768 = vmatprep.subr.bf16.mxu0 %v2707
    %2769 = vmatpush1.bf16.msra.mxu0 %v2706
    %2770 = vmatprep.subr.bf16.mxu0 %v2711
    %2771 = vmatpush1.bf16.msra.mxu0 %v2710
    %2772 = vmatprep.subr.bf16.mxu0 %v2715
    %2773 = vmatpush1.bf16.msra.mxu0 %v2714
    %2774 = vmatprep.subr.bf16.mxu0 %v2719
    %2775 = vmatpush1.bf16.msra.mxu0 %v2718
    %2776 = vmatprep.subr.bf16.mxu0 %v2723
    %2777 = vmatpush1.bf16.msra.mxu0 %v2722
    %2778 = vmatprep.subr.bf16.mxu0 %v2727
    %2779 = vmatpush1.bf16.msra.mxu0 %v2726
    %2780 = vmatprep.subr.bf16.mxu0 %v2731
    %2781 = vmatpush1.bf16.msra.mxu0 %v2730
    %2782 = vmatprep.subr.bf16.mxu0 0
    %2783 = vmatpush1.bf16.msra.mxu0 0
    %2784 = vmatprep.subr.bf16.mxu0 0
    %2785 = vmatpush1.bf16.msra.mxu0 0
    %2786 = vmatprep.subr.bf16.mxu0 0
    %2787 = vmatpush1.bf16.msra.mxu0 0
    %2788 = vmatprep.subr.bf16.mxu0 0
    %2789 = vmatpush1.bf16.msra.mxu0 0
    %2790 = vmatprep.subr.bf16.mxu0 0
    %2791 = vmatpush1.bf16.msra.mxu0 0
    %2792 = vmatprep.subr.bf16.mxu0 0
    %2793 = vmatpush1.bf16.msra.mxu0 0
    %2794 = vmatprep.subr.bf16.mxu0 0
    %2795 = vmatpush1.bf16.msra.mxu0 0
    %2796 = vmatprep.subr.bf16.mxu0 0
    %2797 = vmatpush1.bf16.msra.mxu0 0
    %2798 = vmatprep.mubr.bf16.mxu0 0
    %2799 = vmatmul.mubr.bf16.gmra.mrb[0].mxu0 %v2573
    %v2800 = vpop.f32.mrb[0].mxu0
    %v2801 = vadd.f32 0.0, %v2800
    %v2802 = vpop.f32.mrb[0].mxu0
    %v2803 = vadd.f32 0.0, %v2802
    %v2804 = vpop.f32.mrb[0].mxu0
    %v2805 = vpop.f32.mrb[0].mxu0
    %2806 = vdwg.mxu0
    %2807 = vmatprep.subr.bf16.mxu0 %v2705
    %2808 = vmatpush1.bf16.msra.mxu0 %v2704
    %2809 = vmatprep.subr.bf16.mxu0 %v2709
    %2810 = vmatpush1.bf16.msra.mxu0 %v2708
    %2811 = vmatprep.subr.bf16.mxu0 %v2713
    %2812 = vmatpush1.bf16.msra.mxu0 %v2712
    %2813 = vmatprep.subr.bf16.mxu0 %v2717
    %2814 = vmatpush1.bf16.msra.mxu0 %v2716
    %2815 = vmatprep.subr.bf16.mxu0 %v2721
    %2816 = vmatpush1.bf16.msra.mxu0 %v2720
    %2817 = vmatprep.subr.bf16.mxu0 %v2725
    %2818 = vmatpush1.bf16.msra.mxu0 %v2724
    %2819 = vmatprep.subr.bf16.mxu0 %v2729
    %2820 = vmatpush1.bf16.msra.mxu0 %v2728
    %2821 = vmatprep.subr.bf16.mxu0 %v2733
    %2822 = vmatpush1.bf16.msra.mxu0 %v2732
    %2823 = vmatprep.subr.bf16.mxu0 0
    %2824 = vmatpush1.bf16.msra.mxu0 0
    %2825 = vmatprep.subr.bf16.mxu0 0
    %2826 = vmatpush1.bf16.msra.mxu0 0
    %2827 = vmatprep.subr.bf16.mxu0 0
    %2828 = vmatpush1.bf16.msra.mxu0 0
    %2829 = vmatprep.subr.bf16.mxu0 0
    %2830 = vmatpush1.bf16.msra.mxu0 0
    %2831 = vmatprep.subr.bf16.mxu0 0
    %2832 = vmatpush1.bf16.msra.mxu0 0
    %2833 = vmatprep.subr.bf16.mxu0 0
    %2834 = vmatpush1.bf16.msra.mxu0 0
    %2835 = vmatprep.subr.bf16.mxu0 0
    %2836 = vmatpush1.bf16.msra.mxu0 0
    %2837 = vmatprep.subr.bf16.mxu0 0
    %2838 = vmatpush1.bf16.msra.mxu0 0
    %2839 = vmatprep.mubr.bf16.mxu0 0
    %2840 = vmatmul.mubr.bf16.gmra.mrb[0].mxu0 %v2573
    %v2841 = vpop.f32.mrb[0].mxu0
    %v2842 = vadd.f32 0.0, %v2841
    %v2843 = vpop.f32.mrb[0].mxu0
    %v2844 = vadd.f32 0.0, %v2843
    %v2845 = vpop.f32.mrb[0].mxu0
    %v2846 = vpop.f32.mrb[0].mxu0
    %2847 = vdwg.mxu0
    %v2848 = vadd.f32 %v2569, %v2801
    %v2849 = vadd.f32 %v2570, %v2803
    %v2850 = vadd.f32 %v2571, %v2842
    %v2851 = vadd.f32 %v2572, %v2844
    %v2852 = vxor.u32 %v2848, 2147483648
    %v2853 = vxor.u32 %v2849, 2147483648
    %v2854 = vxor.u32 %v2850, 2147483648
    %v2855 = vmul.f32 %v2852, 1.442695
    %v2856 = vpow.pop %v2855
    %v2857 = vmul.f32 %v2853, 1.442695
    %v2858 = vpow.pop %v2857
    %v2859 = vmul.f32 %v2854, 1.442695
    %v2860 = vpow.pop %v2859
    %v2861 = vadd.f32 %v2856, 1.0
    %v2862 = vadd.f32 %v2858, 1.0
    %v2863 = vadd.f32 %v2860, 1.0
    %v2864 = vrcp.pop %v2861
    %v2865 = vmul.f32 1.0, %v2864
    %v2866 = vrcp.pop %v2862
    %v2867 = vmul.f32 1.0, %v2866
    %v2868 = vrcp.pop %v2863
    %v2869 = vmul.f32 1.0, %v2868
    %v2870 = vtanh.pop %v2851
    %v2871 = vmul.f32 %v2867, %v2563
    %v2872 = vmul.f32 %v2865, %v2870
    %v2873 = vadd.f32 %v2871, %v2872
    %v2874 = vtanh.pop %v2873
    %v2875 = vmul.f32 %v2869, %v2874
    %s2876 = scalar_lea.vmem [#allocation3], 48
    %2877 = vst [vmem:[%s2876] sm:$0xff] %v2875
    %s2878 = scalar_lea.vmem [#allocation2], 224
    %v2879 = vld [vmem:[%s2878] sm:$0xff]
    %v2880 = vld [vmem:[%s2878 + $0x8] sm:$0xff]
    %v2881 = vld [vmem:[%s2878 + $0x10] sm:$0xff]
    %v2882 = vld [vmem:[%s2878 + $0x18] sm:$0xff]
    %v2883 = vpack.c.bf16 %v2875, %v2875
    %v2884 = vld [vmem:[%s6] sm:$0xff]
    %v2885 = vld [vmem:[%s6 + $0x8] sm:$0xff]
    %v2886 = vld [vmem:[%s6 + $0x10] sm:$0xff]
    %v2887 = vld [vmem:[%s6 + $0x18] sm:$0xff]
    %v2888 = vld [vmem:[%s6 + $0x20] sm:$0xff]
    %v2889 = vld [vmem:[%s6 + $0x28] sm:$0xff]
    %v2890 = vld [vmem:[%s6 + $0x30] sm:$0xff]
    %v2891 = vld [vmem:[%s6 + $0x38] sm:$0xff]
    %v2892 = vld [vmem:[%s6 + $0x40] sm:$0xff]
    %v2893 = vld [vmem:[%s6 + $0x48] sm:$0xff]
    %v2894 = vld [vmem:[%s6 + $0x50] sm:$0xff]
    %v2895 = vld [vmem:[%s6 + $0x58] sm:$0xff]
    %v2896 = vld [vmem:[%s6 + $0x60] sm:$0xff]
    %v2897 = vld [vmem:[%s6 + $0x68] sm:$0xff]
    %v2898 = vld [vmem:[%s6 + $0x70] sm:$0xff]
    %v2899 = vld [vmem:[%s6 + $0x78] sm:$0xff]
    %v2900 = vld [vmem:[%s6 + $0x80] sm:$0xff]
    %v2901 = vld [vmem:[%s6 + $0x88] sm:$0xff]
    %v2902 = vld [vmem:[%s6 + $0x90] sm:$0xff]
    %v2903 = vld [vmem:[%s6 + $0x98] sm:$0xff]
    %v2904 = vld [vmem:[%s6 + $0xa0] sm:$0xff]
    %v2905 = vld [vmem:[%s6 + $0xa8] sm:$0xff]
    %v2906 = vld [vmem:[%s6 + $0xb0] sm:$0xff]
    %v2907 = vld [vmem:[%s6 + $0xb8] sm:$0xff]
    %v2908 = vld [vmem:[%s6 + $0xc0] sm:$0xff]
    %v2909 = vld [vmem:[%s6 + $0xc8] sm:$0xff]
    %v2910 = vld [vmem:[%s6 + $0xd0] sm:$0xff]
    %v2911 = vld [vmem:[%s6 + $0xd8] sm:$0xff]
    %v2912 = vld [vmem:[%s6 + $0xe0] sm:$0xff]
    %v2913 = vld [vmem:[%s6 + $0xe8] sm:$0xff]
    %v2914 = vld [vmem:[%s6 + $0xf0] sm:$0xff]
    %v2915 = vld [vmem:[%s6 + $0xf8] sm:$0xff]
    %v2948 = vunpack.c.l.b16 %v2884
    %v2949 = vunpack.c.h.b16 %v2884
    %v2950 = vunpack.c.l.b16 %v2885
    %v2951 = vunpack.c.h.b16 %v2885
    %v2952 = vunpack.c.l.b16 %v2886
    %v2953 = vunpack.c.h.b16 %v2886
    %v2954 = vunpack.c.l.b16 %v2887
    %v2955 = vunpack.c.h.b16 %v2887
    %v2956 = vunpack.c.l.b16 %v2888
    %v2957 = vunpack.c.h.b16 %v2888
    %v2958 = vunpack.c.l.b16 %v2889
    %v2959 = vunpack.c.h.b16 %v2889
    %v2960 = vunpack.c.l.b16 %v2890
    %v2961 = vunpack.c.h.b16 %v2890
    %v2962 = vunpack.c.l.b16 %v2891
    %v2963 = vunpack.c.h.b16 %v2891
    %v2964 = vunpack.c.l.b16 %v2892
    %v2965 = vunpack.c.h.b16 %v2892
    %v2966 = vunpack.c.l.b16 %v2893
    %v2967 = vunpack.c.h.b16 %v2893
    %v2968 = vunpack.c.l.b16 %v2894
    %v2969 = vunpack.c.h.b16 %v2894
    %v2970 = vunpack.c.l.b16 %v2895
    %v2971 = vunpack.c.h.b16 %v2895
    %v2972 = vunpack.c.l.b16 %v2896
    %v2973 = vunpack.c.h.b16 %v2896
    %v2974 = vunpack.c.l.b16 %v2897
    %v2975 = vunpack.c.h.b16 %v2897
    %v2976 = vunpack.c.l.b16 %v2898
    %v2977 = vunpack.c.h.b16 %v2898
    %v2978 = vunpack.c.l.b16 %v2899
    %v2979 = vunpack.c.h.b16 %v2899
    %v2980 = vunpack.c.l.b16 %v2900
    %v2981 = vunpack.c.h.b16 %v2900
    %v2982 = vunpack.c.l.b16 %v2901
    %v2983 = vunpack.c.h.b16 %v2901
    %v2984 = vunpack.c.l.b16 %v2902
    %v2985 = vunpack.c.h.b16 %v2902
    %v2986 = vunpack.c.l.b16 %v2903
    %v2987 = vunpack.c.h.b16 %v2903
    %v2988 = vunpack.c.l.b16 %v2904
    %v2989 = vunpack.c.h.b16 %v2904
    %v2990 = vunpack.c.l.b16 %v2905
    %v2991 = vunpack.c.h.b16 %v2905
    %v2992 = vunpack.c.l.b16 %v2906
    %v2993 = vunpack.c.h.b16 %v2906
    %v2994 = vunpack.c.l.b16 %v2907
    %v2995 = vunpack.c.h.b16 %v2907
    %v2996 = vunpack.c.l.b16 %v2908
    %v2997 = vunpack.c.h.b16 %v2908
    %v2998 = vunpack.c.l.b16 %v2909
    %v2999 = vunpack.c.h.b16 %v2909
    %v3000 = vunpack.c.l.b16 %v2910
    %v3001 = vunpack.c.h.b16 %v2910
    %v3002 = vunpack.c.l.b16 %v2911
    %v3003 = vunpack.c.h.b16 %v2911
    %v3004 = vunpack.c.l.b16 %v2912
    %v3005 = vunpack.c.h.b16 %v2912
    %v3006 = vunpack.c.l.b16 %v2913
    %v3007 = vunpack.c.h.b16 %v2913
    %v3008 = vunpack.c.l.b16 %v2914
    %v3009 = vunpack.c.h.b16 %v2914
    %v3010 = vunpack.c.l.b16 %v2915
    %v3011 = vunpack.c.h.b16 %v2915
    %v3012 = vpack.c.b16 %v2952, %v2948
    %v3013 = vpack.c.b16 %v2953, %v2949
    %v3014 = vpack.c.b16 %v2954, %v2950
    %v3015 = vpack.c.b16 %v2955, %v2951
    %v3016 = vpack.c.b16 %v2960, %v2956
    %v3017 = vpack.c.b16 %v2961, %v2957
    %v3018 = vpack.c.b16 %v2962, %v2958
    %v3019 = vpack.c.b16 %v2963, %v2959
    %v3020 = vpack.c.b16 %v2968, %v2964
    %v3021 = vpack.c.b16 %v2969, %v2965
    %v3022 = vpack.c.b16 %v2970, %v2966
    %v3023 = vpack.c.b16 %v2971, %v2967
    %v3024 = vpack.c.b16 %v2976, %v2972
    %v3025 = vpack.c.b16 %v2977, %v2973
    %v3026 = vpack.c.b16 %v2978, %v2974
    %v3027 = vpack.c.b16 %v2979, %v2975
    %v3028 = vpack.c.b16 %v2984, %v2980
    %v3029 = vpack.c.b16 %v2985, %v2981
    %v3030 = vpack.c.b16 %v2986, %v2982
    %v3031 = vpack.c.b16 %v2987, %v2983
    %v3032 = vpack.c.b16 %v2992, %v2988
    %v3033 = vpack.c.b16 %v2993, %v2989
    %v3034 = vpack.c.b16 %v2994, %v2990
    %v3035 = vpack.c.b16 %v2995, %v2991
    %v3036 = vpack.c.b16 %v3000, %v2996
    %v3037 = vpack.c.b16 %v3001, %v2997
    %v3038 = vpack.c.b16 %v3002, %v2998
    %v3039 = vpack.c.b16 %v3003, %v2999
    %v3040 = vpack.c.b16 %v3008, %v3004
    %v3041 = vpack.c.b16 %v3009, %v3005
    %v3042 = vpack.c.b16 %v3010, %v3006
    %v3043 = vpack.c.b16 %v3011, %v3007
    %3076 = vmatprep.subr.bf16.mxu0 %v3013
    %3077 = vmatpush1.bf16.msra.mxu0 %v3012
    %3078 = vmatprep.subr.bf16.mxu0 %v3017
    %3079 = vmatpush1.bf16.msra.mxu0 %v3016
    %3080 = vmatprep.subr.bf16.mxu0 %v3021
    %3081 = vmatpush1.bf16.msra.mxu0 %v3020
    %3082 = vmatprep.subr.bf16.mxu0 %v3025
    %3083 = vmatpush1.bf16.msra.mxu0 %v3024
    %3084 = vmatprep.subr.bf16.mxu0 %v3029
    %3085 = vmatpush1.bf16.msra.mxu0 %v3028
    %3086 = vmatprep.subr.bf16.mxu0 %v3033
    %3087 = vmatpush1.bf16.msra.mxu0 %v3032
    %3088 = vmatprep.subr.bf16.mxu0 %v3037
    %3089 = vmatpush1.bf16.msra.mxu0 %v3036
    %3090 = vmatprep.subr.bf16.mxu0 %v3041
    %3091 = vmatpush1.bf16.msra.mxu0 %v3040
    %3092 = vmatprep.subr.bf16.mxu0 0
    %3093 = vmatpush1.bf16.msra.mxu0 0
    %3094 = vmatprep.subr.bf16.mxu0 0
    %3095 = vmatpush1.bf16.msra.mxu0 0
    %3096 = vmatprep.subr.bf16.mxu0 0
    %3097 = vmatpush1.bf16.msra.mxu0 0
    %3098 = vmatprep.subr.bf16.mxu0 0
    %3099 = vmatpush1.bf16.msra.mxu0 0
    %3100 = vmatprep.subr.bf16.mxu0 0
    %3101 = vmatpush1.bf16.msra.mxu0 0
    %3102 = vmatprep.subr.bf16.mxu0 0
    %3103 = vmatpush1.bf16.msra.mxu0 0
    %3104 = vmatprep.subr.bf16.mxu0 0
    %3105 = vmatpush1.bf16.msra.mxu0 0
    %3106 = vmatprep.subr.bf16.mxu0 0
    %3107 = vmatpush1.bf16.msra.mxu0 0
    %3108 = vmatprep.mubr.bf16.mxu0 0
    %3109 = vmatmul.mubr.bf16.gmra.mrb[0].mxu0 %v2883
    %v3110 = vpop.f32.mrb[0].mxu0
    %v3111 = vadd.f32 0.0, %v3110
    %v3112 = vpop.f32.mrb[0].mxu0
    %v3113 = vadd.f32 0.0, %v3112
    %v3114 = vpop.f32.mrb[0].mxu0
    %v3115 = vpop.f32.mrb[0].mxu0
    %3116 = vdwg.mxu0
    %3117 = vmatprep.subr.bf16.mxu0 %v3015
    %3118 = vmatpush1.bf16.msra.mxu0 %v3014
    %3119 = vmatprep.subr.bf16.mxu0 %v3019
    %3120 = vmatpush1.bf16.msra.mxu0 %v3018
    %3121 = vmatprep.subr.bf16.mxu0 %v3023
    %3122 = vmatpush1.bf16.msra.mxu0 %v3022
    %3123 = vmatprep.subr.bf16.mxu0 %v3027
    %3124 = vmatpush1.bf16.msra.mxu0 %v3026
    %3125 = vmatprep.subr.bf16.mxu0 %v3031
    %3126 = vmatpush1.bf16.msra.mxu0 %v3030
    %3127 = vmatprep.subr.bf16.mxu0 %v3035
    %3128 = vmatpush1.bf16.msra.mxu0 %v3034
    %3129 = vmatprep.subr.bf16.mxu0 %v3039
    %3130 = vmatpush1.bf16.msra.mxu0 %v3038
    %3131 = vmatprep.subr.bf16.mxu0 %v3043
    %3132 = vmatpush1.bf16.msra.mxu0 %v3042
    %3133 = vmatprep.subr.bf16.mxu0 0
    %3134 = vmatpush1.bf16.msra.mxu0 0
    %3135 = vmatprep.subr.bf16.mxu0 0
    %3136 = vmatpush1.bf16.msra.mxu0 0
    %3137 = vmatprep.subr.bf16.mxu0 0
    %3138 = vmatpush1.bf16.msra.mxu0 0
    %3139 = vmatprep.subr.bf16.mxu0 0
    %3140 = vmatpush1.bf16.msra.mxu0 0
    %3141 = vmatprep.subr.bf16.mxu0 0
    %3142 = vmatpush1.bf16.msra.mxu0 0
    %3143 = vmatprep.subr.bf16.mxu0 0
    %3144 = vmatpush1.bf16.msra.mxu0 0
    %3145 = vmatprep.subr.bf16.mxu0 0
    %3146 = vmatpush1.bf16.msra.mxu0 0
    %3147 = vmatprep.subr.bf16.mxu0 0
    %3148 = vmatpush1.bf16.msra.mxu0 0
    %3149 = vmatprep.mubr.bf16.mxu0 0
    %3150 = vmatmul.mubr.bf16.gmra.mrb[0].mxu0 %v2883
    %v3151 = vpop.f32.mrb[0].mxu0
    %v3152 = vadd.f32 0.0, %v3151
    %v3153 = vpop.f32.mrb[0].mxu0
    %v3154 = vadd.f32 0.0, %v3153
    %v3155 = vpop.f32.mrb[0].mxu0
    %v3156 = vpop.f32.mrb[0].mxu0
    %3157 = vdwg.mxu0
    %v3158 = vadd.f32 %v2879, %v3111
    %v3159 = vadd.f32 %v2880, %v3113
    %v3160 = vadd.f32 %v2881, %v3152
    %v3161 = vadd.f32 %v2882, %v3154
    %v3162 = vxor.u32 %v3158, 2147483648
    %v3163 = vxor.u32 %v3159, 2147483648
    %v3164 = vxor.u32 %v3160, 2147483648
    %v3165 = vmul.f32 %v3162, 1.442695
    %v3166 = vpow.pop %v3165
    %v3167 = vmul.f32 %v3163, 1.442695
    %v3168 = vpow.pop %v3167
    %v3169 = vmul.f32 %v3164, 1.442695
    %v3170 = vpow.pop %v3169
    %v3171 = vadd.f32 %v3166, 1.0
    %v3172 = vadd.f32 %v3168, 1.0
    %v3173 = vadd.f32 %v3170, 1.0
    %v3174 = vrcp.pop %v3171
    %v3175 = vmul.f32 1.0, %v3174
    %v3176 = vrcp.pop %v3172
    %v3177 = vmul.f32 1.0, %v3176
    %v3178 = vrcp.pop %v3173
    %v3179 = vmul.f32 1.0, %v3178
    %v3180 = vtanh.pop %v3161
    %v3181 = vmul.f32 %v3177, %v2873
    %v3182 = vmul.f32 %v3175, %v3180
    %v3183 = vadd.f32 %v3181, %v3182
    %v3184 = vtanh.pop %v3183
    %v3185 = vmul.f32 %v3179, %v3184
    %s3186 = scalar_lea.vmem [#allocation3], 56
    %3187 = vst [vmem:[%s3186] sm:$0xff] %v3185
    %3188 = vst [vmem:[#allocation4] sm:$0xff] %v3185
    %3189 = vst [vmem:[#allocation5] sm:$0xff] %v3183
    %v3190 = vld [vmem:[#allocation3] sm:$0xff]
    %v3191 = vld [vmem:[#allocation3 + $0x8] sm:$0xff]
    %v3192 = vld [vmem:[#allocation3 + $0x10] sm:$0xff]
    %v3193 = vld [vmem:[#allocation3 + $0x18] sm:$0xff]
    %v3194 = vld [vmem:[#allocation3 + $0x20] sm:$0xff]
    %v3195 = vld [vmem:[#allocation3 + $0x28] sm:$0xff]
    %v3196 = vld [vmem:[#allocation3 + $0x30] sm:$0xff]
    %v3197 = vld [vmem:[#allocation3 + $0x38] sm:$0xff]
    %v3198 = vpack.c.bf16 %v3191, %v3190
    %v3199 = vpack.c.bf16 %v3193, %v3192
    %v3200 = vpack.c.bf16 %v3195, %v3194
    %v3201 = vpack.c.bf16 %v3197, %v3196
    %v3202 = vld [vmem:[%s7] sm:$0xf]
    %v3203 = vld [vmem:[%s7 + $0x4] sm:$0xf]
    %v3204 = vld [vmem:[%s7 + $0x8] sm:$0xf]
    %v3205 = vld [vmem:[%s7 + $0xc] sm:$0xf]
    %v3206 = vld [vmem:[%s7 + $0x10] sm:$0xf]
    %v3207 = vld [vmem:[%s7 + $0x14] sm:$0xf]
    %v3208 = vld [vmem:[%s7 + $0x18] sm:$0xf]
    %v3209 = vld [vmem:[%s7 + $0x1c] sm:$0xf]
    %v3210 = vld [vmem:[%s7 + $0x20] sm:$0xf]
    %v3211 = vld [vmem:[%s7 + $0x24] sm:$0xf]
    %v3212 = vld [vmem:[%s7 + $0x28] sm:$0xf]
    %v3213 = vld [vmem:[%s7 + $0x2c] sm:$0xf]
    %v3214 = vld [vmem:[%s7 + $0x30] sm:$0xf]
    %v3215 = vld [vmem:[%s7 + $0x34] sm:$0xf]
    %v3216 = vld [vmem:[%s7 + $0x38] sm:$0xf]
    %v3217 = vld [vmem:[%s7 + $0x3c] sm:$0xf]
    %v3218 = vld [vmem:[%s8] sm:$0x1]
    %v3220 = vlaneseq
    %v3221 = vshrl.u32 %v3220, 7
    %v3222 = vsub.s32 0, %v3221
    %v3223 = vrot.slane %v3218, %v3222
    %v3241 = vunpack.c.l.b16 %v3202
    %v3242 = vunpack.c.l.b16 %v3203
    %v3243 = vunpack.c.l.b16 %v3204
    %v3244 = vunpack.c.l.b16 %v3205
    %v3245 = vunpack.c.l.b16 %v3206
    %v3246 = vunpack.c.l.b16 %v3207
    %v3247 = vunpack.c.l.b16 %v3208
    %v3248 = vunpack.c.l.b16 %v3209
    %v3249 = vunpack.c.l.b16 %v3210
    %v3250 = vunpack.c.l.b16 %v3211
    %v3251 = vunpack.c.l.b16 %v3212
    %v3252 = vunpack.c.l.b16 %v3213
    %v3253 = vunpack.c.l.b16 %v3214
    %v3254 = vunpack.c.l.b16 %v3215
    %v3255 = vunpack.c.l.b16 %v3216
    %v3256 = vunpack.c.l.b16 %v3217
    %v3257 = vpack.c.b16 %v3242, %v3241
    %v3258 = vpack.c.b16 %v3244, %v3243
    %v3259 = vpack.c.b16 %v3246, %v3245
    %v3260 = vpack.c.b16 %v3248, %v3247
    %v3261 = vpack.c.b16 %v3250, %v3249
    %v3262 = vpack.c.b16 %v3252, %v3251
    %v3263 = vpack.c.b16 %v3254, %v3253
    %v3264 = vpack.c.b16 %v3256, %v3255
    %3273 = vmatprep.subr.bf16.mxu0 0
    %3274 = vmatpush1.bf16.msra.mxu0 %v3257
    %3275 = vmatprep.subr.bf16.mxu0 0
    %3276 = vmatpush1.bf16.msra.mxu0 %v3258
    %3277 = vmatprep.subr.bf16.mxu0 0
    %3278 = vmatpush1.bf16.msra.mxu0 %v3259
    %3279 = vmatprep.subr.bf16.mxu0 0
    %3280 = vmatpush1.bf16.msra.mxu0 %v3260
    %3281 = vmatprep.subr.bf16.mxu0 0
    %3282 = vmatpush1.bf16.msra.mxu0 %v3261
    %3283 = vmatprep.subr.bf16.mxu0 0
    %3284 = vmatpush1.bf16.msra.mxu0 %v3262
    %3285 = vmatprep.subr.bf16.mxu0 0
    %3286 = vmatpush1.bf16.msra.mxu0 %v3263
    %3287 = vmatprep.subr.bf16.mxu0 0
    %3288 = vmatpush1.bf16.msra.mxu0 %v3264
    %3289 = vmatprep.subr.bf16.mxu0 0
    %3290 = vmatpush1.bf16.msra.mxu0 0
    %3291 = vmatprep.subr.bf16.mxu0 0
    %3292 = vmatpush1.bf16.msra.mxu0 0
    %3293 = vmatprep.subr.bf16.mxu0 0
    %3294 = vmatpush1.bf16.msra.mxu0 0
    %3295 = vmatprep.subr.bf16.mxu0 0
    %3296 = vmatpush1.bf16.msra.mxu0 0
    %3297 = vmatprep.subr.bf16.mxu0 0
    %3298 = vmatpush1.bf16.msra.mxu0 0
    %3299 = vmatprep.subr.bf16.mxu0 0
    %3300 = vmatpush1.bf16.msra.mxu0 0
    %3301 = vmatprep.subr.bf16.mxu0 0
    %3302 = vmatpush1.bf16.msra.mxu0 0
    %3303 = vmatprep.subr.bf16.mxu0 0
    %3304 = vmatpush1.bf16.msra.mxu0 0
    %3305 = vmatprep.mubr.bf16.mxu0 0
    %3306 = vmatmul.mubr.bf16.gmra.mrb[0].mxu0 %v3198
    %v3307 = vpop.f32.mrb[0].mxu0
    %v3308 = vadd.f32 %v3223, %v3307
    %v3309 = vpop.f32.mrb[0].mxu0
    %v3310 = vpop.f32.mrb[0].mxu0
    %v3311 = vadd.f32 %v3223, %v3310
    %v3312 = vpop.f32.mrb[0].mxu0
    %3313 = vmatprep.mubr.bf16.mxu0 0
    %3314 = vmatmul.mubr.bf16.gmra.mrb[0].mxu0 %v3199
    %v3315 = vpop.f32.mrb[0].mxu0
    %v3316 = vadd.f32 %v3223, %v3315
    %v3317 = vpop.f32.mrb[0].mxu0
    %v3318 = vpop.f32.mrb[0].mxu0
    %v3319 = vadd.f32 %v3223, %v3318
    %v3320 = vpop.f32.mrb[0].mxu0
    %3321 = vmatprep.mubr.bf16.mxu0 0
    %3322 = vmatmul.mubr.bf16.gmra.mrb[0].mxu0 %v3200
    %v3323 = vpop.f32.mrb[0].mxu0
    %v3324 = vadd.f32 %v3223, %v3323
    %v3325 = vpop.f32.mrb[0].mxu0
    %v3326 = vpop.f32.mrb[0].mxu0
    %v3327 = vadd.f32 %v3223, %v3326
    %v3328 = vpop.f32.mrb[0].mxu0
    %3329 = vmatprep.mubr.bf16.mxu0 0
    %3330 = vmatmul.mubr.bf16.gmra.mrb[0].mxu0 %v3201
    %v3331 = vpop.f32.mrb[0].mxu0
    %v3332 = vadd.f32 %v3223, %v3331
    %v3333 = vpop.f32.mrb[0].mxu0
    %v3334 = vpop.f32.mrb[0].mxu0
    %v3335 = vadd.f32 %v3223, %v3334
    %v3336 = vpop.f32.mrb[0].mxu0
    %3337 = vdwg.mxu0
    %v3338 = vmax.f32 %v3308, 0.0
    %v3339 = vmax.f32 %v3311, 0.0
    %v3340 = vmax.f32 %v3316, 0.0
    %v3341 = vmax.f32 %v3319, 0.0
    %v3342 = vmax.f32 %v3324, 0.0
    %v3343 = vmax.f32 %v3327, 0.0
    %v3344 = vmax.f32 %v3332, 0.0
    %v3345 = vmax.f32 %v3335, 0.0
    %v3346 = vpack.c.bf16 %v3339, %v3338
    %v3347 = vpack.c.bf16 %v3341, %v3340
    %v3348 = vpack.c.bf16 %v3343, %v3342
    %v3349 = vpack.c.bf16 %v3345, %v3344
    %v3350 = vld [vmem:[%s9] sm:$0xf]
    %v3351 = vld [vmem:[%s9 + $0x4] sm:$0xf]
    %v3352 = vld [vmem:[%s9 + $0x8] sm:$0xf]
    %v3353 = vld [vmem:[%s9 + $0xc] sm:$0xf]
    %v3354 = vld [vmem:[%s9 + $0x10] sm:$0xf]
    %v3355 = vld [vmem:[%s9 + $0x14] sm:$0xf]
    %v3356 = vld [vmem:[%s9 + $0x18] sm:$0xf]
    %v3357 = vld [vmem:[%s9 + $0x1c] sm:$0xf]
    %v3358 = vld [vmem:[%s10] sm:$0x1]
    %v3360 = vlaneseq
    %v3361 = vshrl.u32 %v3360, 7
    %v3362 = vsub.s32 0, %v3361
    %v3363 = vrot.slane %v3358, %v3362
    %v3373 = vunpack.c.l.b16 %v3350
    %v3374 = vunpack.c.l.b16 %v3351
    %v3375 = vunpack.c.l.b16 %v3352
    %v3376 = vunpack.c.l.b16 %v3353
    %v3377 = vunpack.c.l.b16 %v3354
    %v3378 = vunpack.c.l.b16 %v3355
    %v3379 = vunpack.c.l.b16 %v3356
    %v3380 = vunpack.c.l.b16 %v3357
    %v3381 = vpack.c.b16 %v3374, %v3373
    %v3382 = vpack.c.b16 %v3376, %v3375
    %v3383 = vpack.c.b16 %v3378, %v3377
    %v3384 = vpack.c.b16 %v3380, %v3379
    %v3390 = vsel %vm431, %v3346, 0
    %v3393 = vsel %vm431, %v3347, 0
    %v3396 = vsel %vm431, %v3348, 0
    %v3399 = vsel %vm431, %v3349, 0
    %3401 = vmatprep.subr.bf16.mxu0 0
    %3402 = vmatpush1.bf16.msra.mxu0 %v3381
    %3403 = vmatprep.subr.bf16.mxu0 0
    %3404 = vmatpush1.bf16.msra.mxu0 %v3382
    %3405 = vmatprep.subr.bf16.mxu0 0
    %3406 = vmatpush1.bf16.msra.mxu0 %v3383
    %3407 = vmatprep.subr.bf16.mxu0 0
    %3408 = vmatpush1.bf16.msra.mxu0 %v3384
    %3409 = vmatprep.subr.bf16.mxu0 0
    %3410 = vmatpush1.bf16.msra.mxu0 0
    %3411 = vmatprep.subr.bf16.mxu0 0
    %3412 = vmatpush1.bf16.msra.mxu0 0
    %3413 = vmatprep.subr.bf16.mxu0 0
    %3414 = vmatpush1.bf16.msra.mxu0 0
    %3415 = vmatprep.subr.bf16.mxu0 0
    %3416 = vmatpush1.bf16.msra.mxu0 0
    %3417 = vmatprep.subr.bf16.mxu0 0
    %3418 = vmatpush1.bf16.msra.mxu0 0
    %3419 = vmatprep.subr.bf16.mxu0 0
    %3420 = vmatpush1.bf16.msra.mxu0 0
    %3421 = vmatprep.subr.bf16.mxu0 0
    %3422 = vmatpush1.bf16.msra.mxu0 0
    %3423 = vmatprep.subr.bf16.mxu0 0
    %3424 = vmatpush1.bf16.msra.mxu0 0
    %3425 = vmatprep.subr.bf16.mxu0 0
    %3426 = vmatpush1.bf16.msra.mxu0 0
    %3427 = vmatprep.subr.bf16.mxu0 0
    %3428 = vmatpush1.bf16.msra.mxu0 0
    %3429 = vmatprep.subr.bf16.mxu0 0
    %3430 = vmatpush1.bf16.msra.mxu0 0
    %3431 = vmatprep.subr.bf16.mxu0 0
    %3432 = vmatpush1.bf16.msra.mxu0 0
    %3433 = vmatprep.mubr.bf16.mxu0 0
    %3434 = vmatmul.mubr.bf16.gmra.mrb[0].mxu0 %v3390
    %v3435 = vpop.f32.mrb[0].mxu0
    %v3436 = vadd.f32 %v3363, %v3435
    %v3437 = vpop.f32.mrb[0].mxu0
    %v3438 = vpop.f32.mrb[0].mxu0
    %v3439 = vadd.f32 %v3363, %v3438
    %v3440 = vpop.f32.mrb[0].mxu0
    %3441 = vmatprep.mubr.bf16.mxu0 0
    %3442 = vmatmul.mubr.bf16.gmra.mrb[0].mxu0 %v3393
    %v3443 = vpop.f32.mrb[0].mxu0
    %v3444 = vadd.f32 %v3363, %v3443
    %v3445 = vpop.f32.mrb[0].mxu0
    %v3446 = vpop.f32.mrb[0].mxu0
    %v3447 = vadd.f32 %v3363, %v3446
    %v3448 = vpop.f32.mrb[0].mxu0
    %3449 = vmatprep.mubr.bf16.mxu0 0
    %3450 = vmatmul.mubr.bf16.gmra.mrb[0].mxu0 %v3396
    %v3451 = vpop.f32.mrb[0].mxu0
    %v3452 = vadd.f32 %v3363, %v3451
    %v3453 = vpop.f32.mrb[0].mxu0
    %v3454 = vpop.f32.mrb[0].mxu0
    %v3455 = vadd.f32 %v3363, %v3454
    %v3456 = vpop.f32.mrb[0].mxu0
    %3457 = vmatprep.mubr.bf16.mxu0 0
    %3458 = vmatmul.mubr.bf16.gmra.mrb[0].mxu0 %v3399
    %v3459 = vpop.f32.mrb[0].mxu0
    %v3460 = vadd.f32 %v3363, %v3459
    %v3461 = vpop.f32.mrb[0].mxu0
    %v3462 = vpop.f32.mrb[0].mxu0
    %v3463 = vadd.f32 %v3363, %v3462
    %v3464 = vpop.f32.mrb[0].mxu0
    %3465 = vdwg.mxu0
    %v3466 = vld [vmem:[%s0] sm:$0xff]
    %v3467 = vld [vmem:[%s0 + $0x8] sm:$0xff]
    %v3468 = vld [vmem:[%s0 + $0x10] sm:$0xff]
    %v3469 = vld [vmem:[%s0 + $0x18] sm:$0xff]
    %v3470 = vld [vmem:[%s0 + $0x20] sm:$0xff]
    %v3471 = vld [vmem:[%s0 + $0x28] sm:$0xff]
    %v3472 = vld [vmem:[%s0 + $0x30] sm:$0xff]
    %v3473 = vld [vmem:[%s0 + $0x38] sm:$0xff]
    %3475 = vset.pattern.permute.xlu0 6
    %3476 = vperm.xlu0 %3475, %v3466
    %v3477 = vpop.permute.xlu0 %3476
    %3480 = vset.pattern.permute.xlu0 6
    %3481 = vperm.xlu0 %3480, %v3467
    %v3482 = vpop.permute.xlu0 %3481
    %3485 = vset.pattern.permute.xlu0 6
    %3486 = vperm.xlu0 %3485, %v3468
    %v3487 = vpop.permute.xlu0 %3486
    %3490 = vset.pattern.permute.xlu0 6
    %3491 = vperm.xlu0 %3490, %v3469
    %v3492 = vpop.permute.xlu0 %3491
    %3495 = vset.pattern.permute.xlu0 6
    %3496 = vperm.xlu0 %3495, %v3470
    %v3497 = vpop.permute.xlu0 %3496
    %3500 = vset.pattern.permute.xlu0 6
    %3501 = vperm.xlu0 %3500, %v3471
    %v3502 = vpop.permute.xlu0 %3501
    %3505 = vset.pattern.permute.xlu0 6
    %3506 = vperm.xlu0 %3505, %v3472
    %v3507 = vpop.permute.xlu0 %3506
    %3510 = vset.pattern.permute.xlu0 6
    %3511 = vperm.xlu0 %3510, %v3473
    %v3512 = vpop.permute.xlu0 %3511
    %v3514 = vmul.f32 %v3436, %v3477
    %v3515 = vmul.f32 %v3439, %v3482
    %v3516 = vmul.f32 %v3444, %v3487
    %v3517 = vmul.f32 %v3447, %v3492
    %v3518 = vmul.f32 %v3452, %v3497
    %v3519 = vmul.f32 %v3455, %v3502
    %v3520 = vmul.f32 %v3460, %v3507
    %v3521 = vmul.f32 %v3463, %v3512
    %vm3522 = vcmask 15360
    %3523 = vst.msk [vmem:[%s11] sm:$0xff] %vm3522, %v3514
    %3524 = vst.msk [vmem:[%s11 + $0x8] sm:$0xff] %vm3522, %v3515
    %3525 = vst.msk [vmem:[%s11 + $0x10] sm:$0xff] %vm3522, %v3516
    %3526 = vst.msk [vmem:[%s11 + $0x18] sm:$0xff] %vm3522, %v3517
    %3527 = vst.msk [vmem:[%s11 + $0x20] sm:$0xff] %vm3522, %v3518
    %3528 = vst.msk [vmem:[%s11 + $0x28] sm:$0xff] %vm3522, %v3519
    %3529 = vst.msk [vmem:[%s11 + $0x30] sm:$0xff] %vm3522, %v3520
    %3530 = vst.msk [vmem:[%s11 + $0x38] sm:$0xff] %vm3522, %v3521
    // Predicated region
    $region58: #{tpu_custom_call.1} parent=1 // pred_check
      _
    $region59: #{tpu_custom_call.1} parent=1 // pred_check_branch
      %3532 = sbr.rel (0) target = $region61
    $region60: #{tpu_custom_call.1} parent=1 // pred_region
      _
    $region61: #{tpu_custom_call.1} parent=1 // pred_fallthru
      _
    // Predicated region
    $region62: #{tpu_custom_call.1} parent=1 // pred_check
      _
    $region63: #{tpu_custom_call.1} parent=1 // pred_check_branch
      %3534 = sbr.rel (0) target = $region65
    $region64: #{tpu_custom_call.1} parent=1 // pred_region
      _
    $region65: #{tpu_custom_call.1} parent=1 // pred_fallthru
      _
    %3535 = vsyncpa [#allocation7], 1
    %3536 = vsyncpa [#allocation9], 1

</llo_original>
